<compile_context>
chip_gen: v7x
topology: tpu7x:2x2x1
jax: 0.10.0
libtpu: 0.0.40
codegen_flags: <defaults>
</compile_context>

<pallas_src>
import numpy as np

import jax
import jax.numpy as jnp
from jax.experimental import pallas as pl
from jax.experimental.pallas import tpu as pltpu  # noqa: F401  (TPU backend)

# ----------------------------- model sizes (small) ---------------------------
BATCH = 2
IMG_C = 4
IMG_H = 16
IMG_W = 16
LATENT_DIM = 16
GF = 8      # generator base feature maps
DF = 8      # discriminator base feature maps


# ----------------------------- fused Pallas kernel ---------------------------
def _dcgan_kernel(
    z_ref, xr_ref,
    gfw_ref, gfb_ref, gfe_ref,
    u1v_ref, u1h_ref,
    g1g_ref, g1m_ref, g1b_ref,
    u2v_ref, u2h_ref,
    g2g_ref, g2m_ref, g2b_ref,
    d1gr_ref, d1gf_ref, d1m_ref, d1b_ref,
    d2g_ref, d2m_ref, d2b_ref,
    dq_ref, dv_ref, dfb_ref,
    out_ref,
):
    """Whole DCGAN forward.  Activation layout: rows=(batch, y), cols=(x, chan)."""
    f32 = jnp.float32

    def mm(a, b):
        return jnp.dot(a, b, preferred_element_type=f32)

    # ---------------- generator ----------------
    z = z_ref[...]                                              # (B, LATENT)
    x = jnp.zeros((BATCH * 4, 4 * GF), f32)                     # 4x4xGF seed map
    for y in range(4):                                          # fc, per output row
        row = jnp.maximum(mm(z, gfw_ref[y]) + gfb_ref[y], 0.0)  # (B, 4*GF), relu
        x = x + mm(gfe_ref[y], row)                             # place into row (b, y)

    x = mm(mm(u1v_ref[...], x), u1h_ref[...])                   # NN upsample 4x4 -> 8x8
    acc = jnp.zeros((BATCH * 8, 8 * GF), f32)
    for ky in range(3):                                         # conv 3x3 s1 p1
        acc = acc + mm(mm(g1g_ref[ky], x), g1m_ref[ky])
    x = jnp.maximum(acc + g1b_ref[...], 0.0)                    # relu

    x = mm(mm(u2v_ref[...], x), u2h_ref[...])                   # NN upsample 8x8 -> 16x16
    acc = jnp.zeros((BATCH * 16, 16 * IMG_C), f32)
    for ky in range(3):                                         # conv 3x3 s1 p1
        acc = acc + mm(mm(g2g_ref[ky], x), g2m_ref[ky])
    gen = jnp.tanh(acc + g2b_ref[...])                          # generated images

    # -------- discriminator on [real ; fake] (batch 2B, single pass) --------
    xr = xr_ref[...]                                            # real images, same layout
    acc = jnp.zeros((2 * BATCH * 8, 8 * DF), f32)
    for ky in range(4):                                         # conv 4x4 s2 p1
        rows = mm(d1gr_ref[ky], xr) + mm(d1gf_ref[ky], gen)     # gather rows of [real;fake]
        acc = acc + mm(rows, d1m_ref[ky])
    h = acc + d1b_ref[...]
    h = jnp.where(h >= 0.0, h, 0.2 * h)                         # leaky relu

    acc = jnp.zeros((2 * BATCH * 4, 4 * 2 * DF), f32)
    for ky in range(4):                                         # conv 4x4 s2 p1
        acc = acc + mm(mm(d2g_ref[ky], h), d2m_ref[ky])
    h = acc + d2b_ref[...]
    h = jnp.where(h >= 0.0, h, 0.2 * h)                         # leaky relu

    logit = jnp.zeros((2 * BATCH, 1), f32)
    for hh in range(4):                                         # fc over flattened feature
        logit = logit + mm(mm(dq_ref[hh], h), dv_ref[hh])
    logit = logit + dfb_ref[...]
    out_ref[...] = pl.reciprocal(1.0 + jnp.exp(-logit), approx=True)  # sigmoid


def _full_spec(shape):
    zeros = (0,) * len(shape)
    return pl.BlockSpec(shape, lambda: zeros)


@jax.jit
def dcgan_forward(consts, real_images, key):
    """Mirrors DCGAN.forward: sample latents, generate, score real & fake."""
    batch = real_images.shape[0]
    random_latent_vectors = jax.random.normal(
        key, (1, batch, LATENT_DIM), dtype=jnp.float32)
    z = random_latent_vectors.reshape(batch, LATENT_DIM)
    # single boundary layout change: NCHW -> rows=(b,y), cols=(x,c)
    xr = jnp.transpose(real_images, (0, 2, 3, 1)).reshape(batch * IMG_H, IMG_W * IMG_C)

    operands = (z, xr) + consts
    preds = pl.pallas_call(
        _dcgan_kernel,
        out_shape=jax.ShapeDtypeStruct((2 * batch, 1), jnp.float32),
        in_specs=[_full_spec(op.shape) for op in operands],
        out_specs=_full_spec((2 * batch, 1)),
    )(*operands)
    return preds[:batch], preds[batch:]


# -------------------- one-time folding of weights into kernel constants ------
def _row_gather(batch, h_in, h_out, kh, stride, pad):
    """G[ky]: (batch*h_out, batch*h_in) 0/1 matrix picking row hi=ho*s+ky-pad."""
    g = np.zeros((kh, batch * h_out, batch * h_in), np.float32)
    for ky in range(kh):
        for b in range(batch):
            for ho in range(h_out):
                hi = ho * stride + ky - pad
                if 0 <= hi < h_in:
                    g[ky, b * h_out + ho, b * h_in + hi] = 1.0
    return g


def _col_mix(w, w_in, w_out, stride, pad):
    """M[ky]: (w_in*C, w_out*F) folding the horizontal taps + channel mixing."""
    f, c, kh, kw = w.shape
    w = np.asarray(w, np.float32)
    m = np.zeros((kh, w_in * c, w_out * f), np.float32)
    for ky in range(kh):
        for wo in range(w_out):
            for kx in range(kw):
                wi = wo * stride + kx - pad
                if 0 <= wi < w_in:
                    m[ky, wi * c:(wi + 1) * c, wo * f:(wo + 1) * f] = w[:, :, ky, kx].T
    return m


def _upsample_mats(batch, h, w, c):
    """Nearest-neighbour x2 upsample as (row-duplicate, col-duplicate) matrices."""
    uv = np.zeros((batch * 2 * h, batch * h), np.float32)
    for b in range(batch):
        for y in range(2 * h):
            uv[b * 2 * h + y, b * h + y // 2] = 1.0
    uh = np.zeros((w * c, 2 * w * c), np.float32)
    for x in range(w):
        for cc in range(c):
            uh[x * c + cc, (2 * x) * c + cc] = 1.0
            uh[x * c + cc, (2 * x + 1) * c + cc] = 1.0
    return uv, uh


def prepare_kernel_constants(params):
    """Fold model weights + geometry into the matrices consumed by the kernel."""
    gen, disc = params["gen"], params["disc"]

    # generator fc: reorder columns from PyTorch (c,y,x) to per-row-y (x,c)
    fc_w = np.asarray(gen["fc_w"], np.float32)
    fc_b = np.asarray(gen["fc_b"], np.float32)
    gfw = np.zeros((4, LATENT_DIM, 4 * GF), np.float32)
    gfb = np.zeros((4, 1, 4 * GF), np.float32)
    gfe = np.zeros((4, BATCH * 4, BATCH), np.float32)
    for y in range(4):
        for x in range(4):
            for c in range(GF):
                src = c * 16 + y * 4 + x
                gfw[y, :, x * GF + c] = fc_w[:, src]
                gfb[y, 0, x * GF + c] = fc_b[src]
        for b in range(BATCH):
            gfe[y, b * 4 + y, b] = 1.0

    u1v, u1h = _upsample_mats(BATCH, 4, 4, GF)
    u2v, u2h = _upsample_mats(BATCH, 8, 8, GF)

    g1g = _row_gather(BATCH, 8, 8, 3, 1, 1)
    g1m = _col_mix(np.asarray(gen["c1_w"]), 8, 8, 1, 1)
    g1b = np.tile(np.asarray(gen["c1_b"], np.float32), 8)[None, :]

    g2g = _row_gather(BATCH, 16, 16, 3, 1, 1)
    g2m = _col_mix(np.asarray(gen["c2_w"]), 16, 16, 1, 1)
    g2b = np.tile(np.asarray(gen["c2_b"], np.float32), 16)[None, :]

    dg1 = _row_gather(2 * BATCH, 16, 8, 4, 2, 1)
    d1gr = dg1[:, :, :BATCH * 16]     # gathers from real rows
    d1gf = dg1[:, :, BATCH * 16:]     # gathers from generated rows
    d1m = _col_mix(np.asarray(disc["c1_w"]), 16, 8, 2, 1)
    d1b = np.tile(np.asarray(disc["c1_b"], np.float32), 8)[None, :]

    d2g = _row_gather(2 * BATCH, 8, 4, 4, 2, 1)
    d2m = _col_mix(np.asarray(disc["c2_w"]), 8, 4, 2, 1)
    d2b = np.tile(np.asarray(disc["c2_b"], np.float32), 4)[None, :]

    # discriminator fc: per-h row selection (dq) and flattened-order weights (dv)
    dfc_w = np.asarray(disc["fc_w"], np.float32)        # (2DF*4*4, 1), idx f*16+h*4+w
    dq = np.zeros((4, 2 * BATCH, 2 * BATCH * 4), np.float32)
    dv = np.zeros((4, 4 * 2 * DF, 1), np.float32)
    for h in range(4):
        for b in range(2 * BATCH):
            dq[h, b, b * 4 + h] = 1.0
        for w in range(4):
            for f in range(2 * DF):
                dv[h, w * 2 * DF + f, 0] = dfc_w[f * 16 + h * 4 + w, 0]
    dfb = np.asarray(disc["fc_b"], np.float32).reshape(1, 1)

    consts = (gfw, gfb, gfe, u1v, u1h, g1g, g1m, g1b, u2v, u2h,
              g2g, g2m, g2b, d1gr, d1gf, d1m, d1b, d2g, d2m, d2b,
              dq, dv, dfb)
    return tuple(jnp.asarray(c) for c in consts)


# ----------------------------- deterministic params --------------------------
def init_params(key):
    ks = jax.random.split(key, 8)
    s = 0.02  # DCGAN-style init scale
    gen = {
        "fc_w": s * jax.random.normal(ks[0], (LATENT_DIM, GF * 4 * 4), jnp.float32),
        "fc_b": jnp.zeros((GF * 4 * 4,), jnp.float32),
        "c1_w": s * jax.random.normal(ks[1], (GF, GF, 3, 3), jnp.float32),
        "c1_b": jnp.zeros((GF,), jnp.float32),
        "c2_w": s * jax.random.normal(ks[2], (IMG_C, GF, 3, 3), jnp.float32),
        "c2_b": jnp.zeros((IMG_C,), jnp.float32),
    }
    disc = {
        "c1_w": s * jax.random.normal(ks[3], (DF, IMG_C, 4, 4), jnp.float32),
        "c1_b": jnp.zeros((DF,), jnp.float32),
        "c2_w": s * jax.random.normal(ks[4], (2 * DF, DF, 4, 4), jnp.float32),
        "c2_b": jnp.zeros((2 * DF,), jnp.float32),
        "fc_w": s * jax.random.normal(ks[5], (2 * DF * 4 * 4, 1), jnp.float32),
        "fc_b": jnp.zeros((1,), jnp.float32),
    }
    return {"gen": gen, "disc": disc}


# ----------------------------- pure-JAX reference (for checking) -------------
def _ref_act(y, act):
    if act == "relu":
        return jnp.maximum(y, 0.0)
    if act == "leaky_relu":
        return jnp.where(y >= 0.0, y, 0.2 * y)
    if act == "tanh":
        return jnp.tanh(y)
    if act == "sigmoid":
        return 1.0 / (1.0 + jnp.exp(-y))
    return y


def _ref_im2col(x, kh, kw, stride, pad):
    B, C, H, W = x.shape
    xp = jnp.pad(x, ((0, 0), (0, 0), (pad, pad), (pad, pad)))
    OH = (H + 2 * pad - kh) // stride + 1
    OW = (W + 2 * pad - kw) // stride + 1
    cols = []
    for i in range(kh):
        for j in range(kw):
            cols.append(xp[:, :, i:i + stride * OH:stride, j:j + stride * OW:stride])
    col = jnp.stack(cols, axis=0).reshape(kh, kw, B, C, OH, OW)
    col = col.transpose(2, 4, 5, 3, 0, 1)
    return col.reshape(B * OH * OW, C * kh * kw), OH, OW


def _ref_conv(x, w, b, stride, pad, act):
    B = x.shape[0]
    F, C, kh, kw = w.shape
    col, OH, OW = _ref_im2col(x, kh, kw, stride, pad)
    out = _ref_act(col @ w.reshape(F, C * kh * kw).T + b[None, :], act)
    return out.reshape(B, OH, OW, F).transpose(0, 3, 1, 2)


def _ref_forward(params, real_images, z):
    gen, disc = params["gen"], params["disc"]
    B = real_images.shape[0]
    zb = z.reshape(B, LATENT_DIM)
    h = _ref_act(zb @ gen["fc_w"] + gen["fc_b"][None, :], "relu").reshape(B, GF, 4, 4)
    h = jnp.repeat(jnp.repeat(h, 2, axis=2), 2, axis=3)
    h = _ref_conv(h, gen["c1_w"], gen["c1_b"], 1, 1, "relu")
    h = jnp.repeat(jnp.repeat(h, 2, axis=2), 2, axis=3)
    imgs = _ref_conv(h, gen["c2_w"], gen["c2_b"], 1, 1, "tanh")

    def disc_fwd(x):
        d = _ref_conv(x, disc["c1_w"], disc["c1_b"], 2, 1, "leaky_relu")
        d = _ref_conv(d, disc["c2_w"], disc["c2_b"], 2, 1, "leaky_relu")
        d = d.reshape(x.shape[0], -1)
        return _ref_act(d @ disc["fc_w"] + disc["fc_b"][None, :], "sigmoid")

    return disc_fwd(real_images), disc_fwd(imgs)


# ----------------------------- main -------------------------------------------
if __name__ == "__main__":
    root = jax.random.PRNGKey(0)
    k_img, k_params, k_latent = jax.random.split(root, 3)

    real_images = jax.random.normal(k_img, (BATCH, IMG_C, IMG_H, IMG_W), jnp.float32)
    params = init_params(k_params)
    consts = prepare_kernel_constants(params)   # one-time weight folding

    real_pred, fake_pred = dcgan_forward(consts, real_images, k_latent)
    jax.block_until_ready((real_pred, fake_pred))

    assert real_pred.shape == (BATCH, 1), real_pred.shape
    assert fake_pred.shape == (BATCH, 1), fake_pred.shape

    # correctness check against a pure-JAX reference of the same forward
    z = jax.random.normal(k_latent, (1, BATCH, LATENT_DIM), jnp.float32)
    ref_real, ref_fake = _ref_forward(params, real_images, z)
    assert bool(jnp.allclose(real_pred, ref_real, atol=2e-3)), (real_pred, ref_real)
    assert bool(jnp.allclose(fake_pred, ref_fake, atol=2e-3)), (fake_pred, ref_fake)
    assert bool(jnp.all((real_pred >= -1e-3) & (real_pred <= 1.0 + 1e-3)))
    assert bool(jnp.all((fake_pred >= -1e-3) & (fake_pred <= 1.0 + 1e-3)))
    print("KERNEL_OK")
</pallas_src>

<mosaic_0001>
module attributes {stable_mosaic.version = 11 : i64} {
  func.func @_dcgan_kernel(%arg0: memref<2x16xf32, #tpu.memory_space<vmem>>, %arg1: memref<32x64xf32, #tpu.memory_space<vmem>>, %arg2: memref<4x16x32xf32, #tpu.memory_space<vmem>>, %arg3: memref<4x1x32xf32, #tpu.memory_space<vmem>>, %arg4: memref<4x8x2xf32, #tpu.memory_space<vmem>>, %arg5: memref<16x8xf32, #tpu.memory_space<vmem>>, %arg6: memref<32x64xf32, #tpu.memory_space<vmem>>, %arg7: memref<3x16x16xf32, #tpu.memory_space<vmem>>, %arg8: memref<3x64x64xf32, #tpu.memory_space<vmem>>, %arg9: memref<1x64xf32, #tpu.memory_space<vmem>>, %arg10: memref<32x16xf32, #tpu.memory_space<vmem>>, %arg11: memref<64x128xf32, #tpu.memory_space<vmem>>, %arg12: memref<3x32x32xf32, #tpu.memory_space<vmem>>, %arg13: memref<3x128x64xf32, #tpu.memory_space<vmem>>, %arg14: memref<1x64xf32, #tpu.memory_space<vmem>>, %arg15: memref<4x32x32xf32, #tpu.memory_space<vmem>>, %arg16: memref<4x32x32xf32, #tpu.memory_space<vmem>>, %arg17: memref<4x64x64xf32, #tpu.memory_space<vmem>>, %arg18: memref<1x64xf32, #tpu.memory_space<vmem>>, %arg19: memref<4x16x32xf32, #tpu.memory_space<vmem>>, %arg20: memref<4x64x64xf32, #tpu.memory_space<vmem>>, %arg21: memref<1x64xf32, #tpu.memory_space<vmem>>, %arg22: memref<4x4x16xf32, #tpu.memory_space<vmem>>, %arg23: memref<4x64x1xf32, #tpu.memory_space<vmem>>, %arg24: memref<1x1xf32, #tpu.memory_space<vmem>>, %arg25: memref<4x1xf32, #tpu.memory_space<vmem>>) attributes {dimension_semantics = [], scalar_prefetch = 0 : i64, scratch_operands = 0 : i64, tpu.core_type = #tpu.core_type<tc>} {
    %c0 = arith.constant 0 : index
    %c0_0 = arith.constant 0 : index
    %0 = vector.load %arg0[%c0, %c0_0] : memref<2x16xf32, #tpu.memory_space<vmem>>, vector<2x16xf32>
    %cst = arith.constant 0.000000e+00 : f32
    %1 = vector.broadcast %cst : f32 to vector<8x32xf32>
    %c0_1 = arith.constant 0 : index
    %c0_2 = arith.constant 0 : index
    %c0_3 = arith.constant 0 : index
    %2 = vector.load %arg2[%c0_1, %c0_2, %c0_3] : memref<4x16x32xf32, #tpu.memory_space<vmem>>, vector<1x16x32xf32>
    %3 = vector.shape_cast %2 : vector<1x16x32xf32> to vector<16x32xf32>
    %cst_4 = arith.constant dense<0.000000e+00> : vector<2x32xf32>
    %4 = tpu.matmul %0, %3, %cst_4 {dimension_numbers = #tpu.dot_dimension_numbers<[1], [0], [0], [1], [0, 0, 1, 1], [], []>} : vector<2x16xf32>, vector<16x32xf32>, vector<2x32xf32> -> vector<2x32xf32>
    %c0_5 = arith.constant 0 : index
    %c0_6 = arith.constant 0 : index
    %c0_7 = arith.constant 0 : index
    %5 = vector.load %arg3[%c0_5, %c0_6, %c0_7] : memref<4x1x32xf32, #tpu.memory_space<vmem>>, vector<1x1x32xf32>
    %6 = vector.shape_cast %5 : vector<1x1x32xf32> to vector<1x32xf32>
    %7 = vector.broadcast %6 : vector<1x32xf32> to vector<2x32xf32>
    %8 = arith.addf %4, %7 : vector<2x32xf32>
    %cst_8 = arith.constant 0.000000e+00 : f32
    %9 = vector.broadcast %cst_8 : f32 to vector<2x32xf32>
    %10 = arith.maximumf %8, %9 : vector<2x32xf32>
    %c0_9 = arith.constant 0 : index
    %c0_10 = arith.constant 0 : index
    %c0_11 = arith.constant 0 : index
    %11 = vector.load %arg4[%c0_9, %c0_10, %c0_11] : memref<4x8x2xf32, #tpu.memory_space<vmem>>, vector<1x8x2xf32>
    %12 = vector.shape_cast %11 : vector<1x8x2xf32> to vector<8x2xf32>
    %cst_12 = arith.constant dense<0.000000e+00> : vector<8x32xf32>
    %13 = tpu.matmul %12, %10, %cst_12 {dimension_numbers = #tpu.dot_dimension_numbers<[1], [0], [0], [1], [0, 0, 1, 1], [], []>} : vector<8x2xf32>, vector<2x32xf32>, vector<8x32xf32> -> vector<8x32xf32>
    %14 = arith.addf %1, %13 : vector<8x32xf32>
    %c1 = arith.constant 1 : index
    %c0_13 = arith.constant 0 : index
    %c0_14 = arith.constant 0 : index
    %15 = vector.load %arg2[%c1, %c0_13, %c0_14] : memref<4x16x32xf32, #tpu.memory_space<vmem>>, vector<1x16x32xf32>
    %16 = vector.shape_cast %15 : vector<1x16x32xf32> to vector<16x32xf32>
    %cst_15 = arith.constant dense<0.000000e+00> : vector<2x32xf32>
    %17 = tpu.matmul %0, %16, %cst_15 {dimension_numbers = #tpu.dot_dimension_numbers<[1], [0], [0], [1], [0, 0, 1, 1], [], []>} : vector<2x16xf32>, vector<16x32xf32>, vector<2x32xf32> -> vector<2x32xf32>
    %c1_16 = arith.constant 1 : index
    %c0_17 = arith.constant 0 : index
    %c0_18 = arith.constant 0 : index
    %18 = vector.load %arg3[%c1_16, %c0_17, %c0_18] : memref<4x1x32xf32, #tpu.memory_space<vmem>>, vector<1x1x32xf32>
    %19 = vector.shape_cast %18 : vector<1x1x32xf32> to vector<1x32xf32>
    %20 = vector.broadcast %19 : vector<1x32xf32> to vector<2x32xf32>
    %21 = arith.addf %17, %20 : vector<2x32xf32>
    %cst_19 = arith.constant 0.000000e+00 : f32
    %22 = vector.broadcast %cst_19 : f32 to vector<2x32xf32>
    %23 = arith.maximumf %21, %22 : vector<2x32xf32>
    %c1_20 = arith.constant 1 : index
    %c0_21 = arith.constant 0 : index
    %c0_22 = arith.constant 0 : index
    %24 = vector.load %arg4[%c1_20, %c0_21, %c0_22] : memref<4x8x2xf32, #tpu.memory_space<vmem>>, vector<1x8x2xf32>
    %25 = vector.shape_cast %24 : vector<1x8x2xf32> to vector<8x2xf32>
    %cst_23 = arith.constant dense<0.000000e+00> : vector<8x32xf32>
    %26 = tpu.matmul %25, %23, %cst_23 {dimension_numbers = #tpu.dot_dimension_numbers<[1], [0], [0], [1], [0, 0, 1, 1], [], []>} : vector<8x2xf32>, vector<2x32xf32>, vector<8x32xf32> -> vector<8x32xf32>
    %27 = arith.addf %14, %26 : vector<8x32xf32>
    %c2 = arith.constant 2 : index
    %c0_24 = arith.constant 0 : index
    %c0_25 = arith.constant 0 : index
    %28 = vector.load %arg2[%c2, %c0_24, %c0_25] : memref<4x16x32xf32, #tpu.memory_space<vmem>>, vector<1x16x32xf32>
    %29 = vector.shape_cast %28 : vector<1x16x32xf32> to vector<16x32xf32>
    %cst_26 = arith.constant dense<0.000000e+00> : vector<2x32xf32>
    %30 = tpu.matmul %0, %29, %cst_26 {dimension_numbers = #tpu.dot_dimension_numbers<[1], [0], [0], [1], [0, 0, 1, 1], [], []>} : vector<2x16xf32>, vector<16x32xf32>, vector<2x32xf32> -> vector<2x32xf32>
    %c2_27 = arith.constant 2 : index
    %c0_28 = arith.constant 0 : index
    %c0_29 = arith.constant 0 : index
    %31 = vector.load %arg3[%c2_27, %c0_28, %c0_29] : memref<4x1x32xf32, #tpu.memory_space<vmem>>, vector<1x1x32xf32>
    %32 = vector.shape_cast %31 : vector<1x1x32xf32> to vector<1x32xf32>
    %33 = vector.broadcast %32 : vector<1x32xf32> to vector<2x32xf32>
    %34 = arith.addf %30, %33 : vector<2x32xf32>
    %cst_30 = arith.constant 0.000000e+00 : f32
    %35 = vector.broadcast %cst_30 : f32 to vector<2x32xf32>
    %36 = arith.maximumf %34, %35 : vector<2x32xf32>
    %c2_31 = arith.constant 2 : index
    %c0_32 = arith.constant 0 : index
    %c0_33 = arith.constant 0 : index
    %37 = vector.load %arg4[%c2_31, %c0_32, %c0_33] : memref<4x8x2xf32, #tpu.memory_space<vmem>>, vector<1x8x2xf32>
    %38 = vector.shape_cast %37 : vector<1x8x2xf32> to vector<8x2xf32>
    %cst_34 = arith.constant dense<0.000000e+00> : vector<8x32xf32>
    %39 = tpu.matmul %38, %36, %cst_34 {dimension_numbers = #tpu.dot_dimension_numbers<[1], [0], [0], [1], [0, 0, 1, 1], [], []>} : vector<8x2xf32>, vector<2x32xf32>, vector<8x32xf32> -> vector<8x32xf32>
    %40 = arith.addf %27, %39 : vector<8x32xf32>
    %c3 = arith.constant 3 : index
    %c0_35 = arith.constant 0 : index
    %c0_36 = arith.constant 0 : index
    %41 = vector.load %arg2[%c3, %c0_35, %c0_36] : memref<4x16x32xf32, #tpu.memory_space<vmem>>, vector<1x16x32xf32>
    %42 = vector.shape_cast %41 : vector<1x16x32xf32> to vector<16x32xf32>
    %cst_37 = arith.constant dense<0.000000e+00> : vector<2x32xf32>
    %43 = tpu.matmul %0, %42, %cst_37 {dimension_numbers = #tpu.dot_dimension_numbers<[1], [0], [0], [1], [0, 0, 1, 1], [], []>} : vector<2x16xf32>, vector<16x32xf32>, vector<2x32xf32> -> vector<2x32xf32>
    %c3_38 = arith.constant 3 : index
    %c0_39 = arith.constant 0 : index
    %c0_40 = arith.constant 0 : index
    %44 = vector.load %arg3[%c3_38, %c0_39, %c0_40] : memref<4x1x32xf32, #tpu.memory_space<vmem>>, vector<1x1x32xf32>
    %45 = vector.shape_cast %44 : vector<1x1x32xf32> to vector<1x32xf32>
    %46 = vector.broadcast %45 : vector<1x32xf32> to vector<2x32xf32>
    %47 = arith.addf %43, %46 : vector<2x32xf32>
    %cst_41 = arith.constant 0.000000e+00 : f32
    %48 = vector.broadcast %cst_41 : f32 to vector<2x32xf32>
    %49 = arith.maximumf %47, %48 : vector<2x32xf32>
    %c3_42 = arith.constant 3 : index
    %c0_43 = arith.constant 0 : index
    %c0_44 = arith.constant 0 : index
    %50 = vector.load %arg4[%c3_42, %c0_43, %c0_44] : memref<4x8x2xf32, #tpu.memory_space<vmem>>, vector<1x8x2xf32>
    %51 = vector.shape_cast %50 : vector<1x8x2xf32> to vector<8x2xf32>
    %cst_45 = arith.constant dense<0.000000e+00> : vector<8x32xf32>
    %52 = tpu.matmul %51, %49, %cst_45 {dimension_numbers = #tpu.dot_dimension_numbers<[1], [0], [0], [1], [0, 0, 1, 1], [], []>} : vector<8x2xf32>, vector<2x32xf32>, vector<8x32xf32> -> vector<8x32xf32>
    %53 = arith.addf %40, %52 : vector<8x32xf32>
    %c0_46 = arith.constant 0 : index
    %c0_47 = arith.constant 0 : index
    %54 = vector.load %arg5[%c0_46, %c0_47] : memref<16x8xf32, #tpu.memory_space<vmem>>, vector<16x8xf32>
    %cst_48 = arith.constant dense<0.000000e+00> : vector<16x32xf32>
    %55 = tpu.matmul %54, %53, %cst_48 {dimension_numbers = #tpu.dot_dimension_numbers<[1], [0], [0], [1], [0, 0, 1, 1], [], []>} : vector<16x8xf32>, vector<8x32xf32>, vector<16x32xf32> -> vector<16x32xf32>
    %c0_49 = arith.constant 0 : index
    %c0_50 = arith.constant 0 : index
    %56 = vector.load %arg6[%c0_49, %c0_50] : memref<32x64xf32, #tpu.memory_space<vmem>>, vector<32x64xf32>
    %cst_51 = arith.constant dense<0.000000e+00> : vector<16x64xf32>
    %57 = tpu.matmul %55, %56, %cst_51 {dimension_numbers = #tpu.dot_dimension_numbers<[1], [0], [0], [1], [0, 0, 1, 1], [], []>} : vector<16x32xf32>, vector<32x64xf32>, vector<16x64xf32> -> vector<16x64xf32>
    %cst_52 = arith.constant 0.000000e+00 : f32
    %58 = vector.broadcast %cst_52 : f32 to vector<16x64xf32>
    %c0_53 = arith.constant 0 : index
    %c0_54 = arith.constant 0 : index
    %c0_55 = arith.constant 0 : index
    %59 = vector.load %arg7[%c0_53, %c0_54, %c0_55] : memref<3x16x16xf32, #tpu.memory_space<vmem>>, vector<1x16x16xf32>
    %60 = vector.shape_cast %59 : vector<1x16x16xf32> to vector<16x16xf32>
    %cst_56 = arith.constant dense<0.000000e+00> : vector<16x64xf32>
    %61 = tpu.matmul %60, %57, %cst_56 {dimension_numbers = #tpu.dot_dimension_numbers<[1], [0], [0], [1], [0, 0, 1, 1], [], []>} : vector<16x16xf32>, vector<16x64xf32>, vector<16x64xf32> -> vector<16x64xf32>
    %c0_57 = arith.constant 0 : index
    %c0_58 = arith.constant 0 : index
    %c0_59 = arith.constant 0 : index
    %62 = vector.load %arg8[%c0_57, %c0_58, %c0_59] : memref<3x64x64xf32, #tpu.memory_space<vmem>>, vector<1x64x64xf32>
    %63 = vector.shape_cast %62 : vector<1x64x64xf32> to vector<64x64xf32>
    %cst_60 = arith.constant dense<0.000000e+00> : vector<16x64xf32>
    %64 = tpu.matmul %61, %63, %cst_60 {dimension_numbers = #tpu.dot_dimension_numbers<[1], [0], [0], [1], [0, 0, 1, 1], [], []>} : vector<16x64xf32>, vector<64x64xf32>, vector<16x64xf32> -> vector<16x64xf32>
    %65 = arith.addf %58, %64 : vector<16x64xf32>
    %c1_61 = arith.constant 1 : index
    %c0_62 = arith.constant 0 : index
    %c0_63 = arith.constant 0 : index
    %66 = vector.load %arg7[%c1_61, %c0_62, %c0_63] : memref<3x16x16xf32, #tpu.memory_space<vmem>>, vector<1x16x16xf32>
    %67 = vector.shape_cast %66 : vector<1x16x16xf32> to vector<16x16xf32>
    %cst_64 = arith.constant dense<0.000000e+00> : vector<16x64xf32>
    %68 = tpu.matmul %67, %57, %cst_64 {dimension_numbers = #tpu.dot_dimension_numbers<[1], [0], [0], [1], [0, 0, 1, 1], [], []>} : vector<16x16xf32>, vector<16x64xf32>, vector<16x64xf32> -> vector<16x64xf32>
    %c1_65 = arith.constant 1 : index
    %c0_66 = arith.constant 0 : index
    %c0_67 = arith.constant 0 : index
    %69 = vector.load %arg8[%c1_65, %c0_66, %c0_67] : memref<3x64x64xf32, #tpu.memory_space<vmem>>, vector<1x64x64xf32>
    %70 = vector.shape_cast %69 : vector<1x64x64xf32> to vector<64x64xf32>
    %cst_68 = arith.constant dense<0.000000e+00> : vector<16x64xf32>
    %71 = tpu.matmul %68, %70, %cst_68 {dimension_numbers = #tpu.dot_dimension_numbers<[1], [0], [0], [1], [0, 0, 1, 1], [], []>} : vector<16x64xf32>, vector<64x64xf32>, vector<16x64xf32> -> vector<16x64xf32>
    %72 = arith.addf %65, %71 : vector<16x64xf32>
    %c2_69 = arith.constant 2 : index
    %c0_70 = arith.constant 0 : index
    %c0_71 = arith.constant 0 : index
    %73 = vector.load %arg7[%c2_69, %c0_70, %c0_71] : memref<3x16x16xf32, #tpu.memory_space<vmem>>, vector<1x16x16xf32>
    %74 = vector.shape_cast %73 : vector<1x16x16xf32> to vector<16x16xf32>
    %cst_72 = arith.constant dense<0.000000e+00> : vector<16x64xf32>
    %75 = tpu.matmul %74, %57, %cst_72 {dimension_numbers = #tpu.dot_dimension_numbers<[1], [0], [0], [1], [0, 0, 1, 1], [], []>} : vector<16x16xf32>, vector<16x64xf32>, vector<16x64xf32> -> vector<16x64xf32>
    %c2_73 = arith.constant 2 : index
    %c0_74 = arith.constant 0 : index
    %c0_75 = arith.constant 0 : index
    %76 = vector.load %arg8[%c2_73, %c0_74, %c0_75] : memref<3x64x64xf32, #tpu.memory_space<vmem>>, vector<1x64x64xf32>
    %77 = vector.shape_cast %76 : vector<1x64x64xf32> to vector<64x64xf32>
    %cst_76 = arith.constant dense<0.000000e+00> : vector<16x64xf32>
    %78 = tpu.matmul %75, %77, %cst_76 {dimension_numbers = #tpu.dot_dimension_numbers<[1], [0], [0], [1], [0, 0, 1, 1], [], []>} : vector<16x64xf32>, vector<64x64xf32>, vector<16x64xf32> -> vector<16x64xf32>
    %79 = arith.addf %72, %78 : vector<16x64xf32>
    %c0_77 = arith.constant 0 : index
    %c0_78 = arith.constant 0 : index
    %80 = vector.load %arg9[%c0_77, %c0_78] : memref<1x64xf32, #tpu.memory_space<vmem>>, vector<1x64xf32>
    %81 = vector.broadcast %80 : vector<1x64xf32> to vector<16x64xf32>
    %82 = arith.addf %79, %81 : vector<16x64xf32>
    %cst_79 = arith.constant 0.000000e+00 : f32
    %83 = vector.broadcast %cst_79 : f32 to vector<16x64xf32>
    %84 = arith.maximumf %82, %83 : vector<16x64xf32>
    %c0_80 = arith.constant 0 : index
    %c0_81 = arith.constant 0 : index
    %85 = vector.load %arg10[%c0_80, %c0_81] : memref<32x16xf32, #tpu.memory_space<vmem>>, vector<32x16xf32>
    %cst_82 = arith.constant dense<0.000000e+00> : vector<32x64xf32>
    %86 = tpu.matmul %85, %84, %cst_82 {dimension_numbers = #tpu.dot_dimension_numbers<[1], [0], [0], [1], [0, 0, 1, 1], [], []>} : vector<32x16xf32>, vector<16x64xf32>, vector<32x64xf32> -> vector<32x64xf32>
    %c0_83 = arith.constant 0 : index
    %c0_84 = arith.constant 0 : index
    %87 = vector.load %arg11[%c0_83, %c0_84] : memref<64x128xf32, #tpu.memory_space<vmem>>, vector<64x128xf32>
    %cst_85 = arith.constant dense<0.000000e+00> : vector<32x128xf32>
    %88 = tpu.matmul %86, %87, %cst_85 {dimension_numbers = #tpu.dot_dimension_numbers<[1], [0], [0], [1], [0, 0, 1, 1], [], []>} : vector<32x64xf32>, vector<64x128xf32>, vector<32x128xf32> -> vector<32x128xf32>
    %cst_86 = arith.constant 0.000000e+00 : f32
    %89 = vector.broadcast %cst_86 : f32 to vector<32x64xf32>
    %c0_87 = arith.constant 0 : index
    %c0_88 = arith.constant 0 : index
    %c0_89 = arith.constant 0 : index
    %90 = vector.load %arg12[%c0_87, %c0_88, %c0_89] : memref<3x32x32xf32, #tpu.memory_space<vmem>>, vector<1x32x32xf32>
    %91 = vector.shape_cast %90 : vector<1x32x32xf32> to vector<32x32xf32>
    %cst_90 = arith.constant dense<0.000000e+00> : vector<32x128xf32>
    %92 = tpu.matmul %91, %88, %cst_90 {dimension_numbers = #tpu.dot_dimension_numbers<[1], [0], [0], [1], [0, 0, 1, 1], [], []>} : vector<32x32xf32>, vector<32x128xf32>, vector<32x128xf32> -> vector<32x128xf32>
    %c0_91 = arith.constant 0 : index
    %c0_92 = arith.constant 0 : index
    %c0_93 = arith.constant 0 : index
    %93 = vector.load %arg13[%c0_91, %c0_92, %c0_93] : memref<3x128x64xf32, #tpu.memory_space<vmem>>, vector<1x128x64xf32>
    %94 = vector.shape_cast %93 : vector<1x128x64xf32> to vector<128x64xf32>
    %cst_94 = arith.constant dense<0.000000e+00> : vector<32x64xf32>
    %95 = tpu.matmul %92, %94, %cst_94 {dimension_numbers = #tpu.dot_dimension_numbers<[1], [0], [0], [1], [0, 0, 1, 1], [], []>} : vector<32x128xf32>, vector<128x64xf32>, vector<32x64xf32> -> vector<32x64xf32>
    %96 = arith.addf %89, %95 : vector<32x64xf32>
    %c1_95 = arith.constant 1 : index
    %c0_96 = arith.constant 0 : index
    %c0_97 = arith.constant 0 : index
    %97 = vector.load %arg12[%c1_95, %c0_96, %c0_97] : memref<3x32x32xf32, #tpu.memory_space<vmem>>, vector<1x32x32xf32>
    %98 = vector.shape_cast %97 : vector<1x32x32xf32> to vector<32x32xf32>
    %cst_98 = arith.constant dense<0.000000e+00> : vector<32x128xf32>
    %99 = tpu.matmul %98, %88, %cst_98 {dimension_numbers = #tpu.dot_dimension_numbers<[1], [0], [0], [1], [0, 0, 1, 1], [], []>} : vector<32x32xf32>, vector<32x128xf32>, vector<32x128xf32> -> vector<32x128xf32>
    %c1_99 = arith.constant 1 : index
    %c0_100 = arith.constant 0 : index
    %c0_101 = arith.constant 0 : index
    %100 = vector.load %arg13[%c1_99, %c0_100, %c0_101] : memref<3x128x64xf32, #tpu.memory_space<vmem>>, vector<1x128x64xf32>
    %101 = vector.shape_cast %100 : vector<1x128x64xf32> to vector<128x64xf32>
    %cst_102 = arith.constant dense<0.000000e+00> : vector<32x64xf32>
    %102 = tpu.matmul %99, %101, %cst_102 {dimension_numbers = #tpu.dot_dimension_numbers<[1], [0], [0], [1], [0, 0, 1, 1], [], []>} : vector<32x128xf32>, vector<128x64xf32>, vector<32x64xf32> -> vector<32x64xf32>
    %103 = arith.addf %96, %102 : vector<32x64xf32>
    %c2_103 = arith.constant 2 : index
    %c0_104 = arith.constant 0 : index
    %c0_105 = arith.constant 0 : index
    %104 = vector.load %arg12[%c2_103, %c0_104, %c0_105] : memref<3x32x32xf32, #tpu.memory_space<vmem>>, vector<1x32x32xf32>
    %105 = vector.shape_cast %104 : vector<1x32x32xf32> to vector<32x32xf32>
    %cst_106 = arith.constant dense<0.000000e+00> : vector<32x128xf32>
    %106 = tpu.matmul %105, %88, %cst_106 {dimension_numbers = #tpu.dot_dimension_numbers<[1], [0], [0], [1], [0, 0, 1, 1], [], []>} : vector<32x32xf32>, vector<32x128xf32>, vector<32x128xf32> -> vector<32x128xf32>
    %c2_107 = arith.constant 2 : index
    %c0_108 = arith.constant 0 : index
    %c0_109 = arith.constant 0 : index
    %107 = vector.load %arg13[%c2_107, %c0_108, %c0_109] : memref<3x128x64xf32, #tpu.memory_space<vmem>>, vector<1x128x64xf32>
    %108 = vector.shape_cast %107 : vector<1x128x64xf32> to vector<128x64xf32>
    %cst_110 = arith.constant dense<0.000000e+00> : vector<32x64xf32>
    %109 = tpu.matmul %106, %108, %cst_110 {dimension_numbers = #tpu.dot_dimension_numbers<[1], [0], [0], [1], [0, 0, 1, 1], [], []>} : vector<32x128xf32>, vector<128x64xf32>, vector<32x64xf32> -> vector<32x64xf32>
    %110 = arith.addf %103, %109 : vector<32x64xf32>
    %c0_111 = arith.constant 0 : index
    %c0_112 = arith.constant 0 : index
    %111 = vector.load %arg14[%c0_111, %c0_112] : memref<1x64xf32, #tpu.memory_space<vmem>>, vector<1x64xf32>
    %112 = vector.broadcast %111 : vector<1x64xf32> to vector<32x64xf32>
    %113 = arith.addf %110, %112 : vector<32x64xf32>
    %114 = math.tanh %113 : vector<32x64xf32>
    %c0_113 = arith.constant 0 : index
    %c0_114 = arith.constant 0 : index
    %115 = vector.load %arg1[%c0_113, %c0_114] : memref<32x64xf32, #tpu.memory_space<vmem>>, vector<32x64xf32>
    %cst_115 = arith.constant 0.000000e+00 : f32
    %116 = vector.broadcast %cst_115 : f32 to vector<32x64xf32>
    %c0_116 = arith.constant 0 : index
    %c0_117 = arith.constant 0 : index
    %c0_118 = arith.constant 0 : index
    %117 = vector.load %arg15[%c0_116, %c0_117, %c0_118] : memref<4x32x32xf32, #tpu.memory_space<vmem>>, vector<1x32x32xf32>
    %118 = vector.shape_cast %117 : vector<1x32x32xf32> to vector<32x32xf32>
    %cst_119 = arith.constant dense<0.000000e+00> : vector<32x64xf32>
    %119 = tpu.matmul %118, %115, %cst_119 {dimension_numbers = #tpu.dot_dimension_numbers<[1], [0], [0], [1], [0, 0, 1, 1], [], []>} : vector<32x32xf32>, vector<32x64xf32>, vector<32x64xf32> -> vector<32x64xf32>
    %c0_120 = arith.constant 0 : index
    %c0_121 = arith.constant 0 : index
    %c0_122 = arith.constant 0 : index
    %120 = vector.load %arg16[%c0_120, %c0_121, %c0_122] : memref<4x32x32xf32, #tpu.memory_space<vmem>>, vector<1x32x32xf32>
    %121 = vector.shape_cast %120 : vector<1x32x32xf32> to vector<32x32xf32>
    %cst_123 = arith.constant dense<0.000000e+00> : vector<32x64xf32>
    %122 = tpu.matmul %121, %114, %cst_123 {dimension_numbers = #tpu.dot_dimension_numbers<[1], [0], [0], [1], [0, 0, 1, 1], [], []>} : vector<32x32xf32>, vector<32x64xf32>, vector<32x64xf32> -> vector<32x64xf32>
    %123 = arith.addf %119, %122 : vector<32x64xf32>
    %c0_124 = arith.constant 0 : index
    %c0_125 = arith.constant 0 : index
    %c0_126 = arith.constant 0 : index
    %124 = vector.load %arg17[%c0_124, %c0_125, %c0_126] : memref<4x64x64xf32, #tpu.memory_space<vmem>>, vector<1x64x64xf32>
    %125 = vector.shape_cast %124 : vector<1x64x64xf32> to vector<64x64xf32>
    %cst_127 = arith.constant dense<0.000000e+00> : vector<32x64xf32>
    %126 = tpu.matmul %123, %125, %cst_127 {dimension_numbers = #tpu.dot_dimension_numbers<[1], [0], [0], [1], [0, 0, 1, 1], [], []>} : vector<32x64xf32>, vector<64x64xf32>, vector<32x64xf32> -> vector<32x64xf32>
    %127 = arith.addf %116, %126 : vector<32x64xf32>
    %c1_128 = arith.constant 1 : index
    %c0_129 = arith.constant 0 : index
    %c0_130 = arith.constant 0 : index
    %128 = vector.load %arg15[%c1_128, %c0_129, %c0_130] : memref<4x32x32xf32, #tpu.memory_space<vmem>>, vector<1x32x32xf32>
    %129 = vector.shape_cast %128 : vector<1x32x32xf32> to vector<32x32xf32>
    %cst_131 = arith.constant dense<0.000000e+00> : vector<32x64xf32>
    %130 = tpu.matmul %129, %115, %cst_131 {dimension_numbers = #tpu.dot_dimension_numbers<[1], [0], [0], [1], [0, 0, 1, 1], [], []>} : vector<32x32xf32>, vector<32x64xf32>, vector<32x64xf32> -> vector<32x64xf32>
    %c1_132 = arith.constant 1 : index
    %c0_133 = arith.constant 0 : index
    %c0_134 = arith.constant 0 : index
    %131 = vector.load %arg16[%c1_132, %c0_133, %c0_134] : memref<4x32x32xf32, #tpu.memory_space<vmem>>, vector<1x32x32xf32>
    %132 = vector.shape_cast %131 : vector<1x32x32xf32> to vector<32x32xf32>
    %cst_135 = arith.constant dense<0.000000e+00> : vector<32x64xf32>
    %133 = tpu.matmul %132, %114, %cst_135 {dimension_numbers = #tpu.dot_dimension_numbers<[1], [0], [0], [1], [0, 0, 1, 1], [], []>} : vector<32x32xf32>, vector<32x64xf32>, vector<32x64xf32> -> vector<32x64xf32>
    %134 = arith.addf %130, %133 : vector<32x64xf32>
    %c1_136 = arith.constant 1 : index
    %c0_137 = arith.constant 0 : index
    %c0_138 = arith.constant 0 : index
    %135 = vector.load %arg17[%c1_136, %c0_137, %c0_138] : memref<4x64x64xf32, #tpu.memory_space<vmem>>, vector<1x64x64xf32>
    %136 = vector.shape_cast %135 : vector<1x64x64xf32> to vector<64x64xf32>
    %cst_139 = arith.constant dense<0.000000e+00> : vector<32x64xf32>
    %137 = tpu.matmul %134, %136, %cst_139 {dimension_numbers = #tpu.dot_dimension_numbers<[1], [0], [0], [1], [0, 0, 1, 1], [], []>} : vector<32x64xf32>, vector<64x64xf32>, vector<32x64xf32> -> vector<32x64xf32>
    %138 = arith.addf %127, %137 : vector<32x64xf32>
    %c2_140 = arith.constant 2 : index
    %c0_141 = arith.constant 0 : index
    %c0_142 = arith.constant 0 : index
    %139 = vector.load %arg15[%c2_140, %c0_141, %c0_142] : memref<4x32x32xf32, #tpu.memory_space<vmem>>, vector<1x32x32xf32>
    %140 = vector.shape_cast %139 : vector<1x32x32xf32> to vector<32x32xf32>
    %cst_143 = arith.constant dense<0.000000e+00> : vector<32x64xf32>
    %141 = tpu.matmul %140, %115, %cst_143 {dimension_numbers = #tpu.dot_dimension_numbers<[1], [0], [0], [1], [0, 0, 1, 1], [], []>} : vector<32x32xf32>, vector<32x64xf32>, vector<32x64xf32> -> vector<32x64xf32>
    %c2_144 = arith.constant 2 : index
    %c0_145 = arith.constant 0 : index
    %c0_146 = arith.constant 0 : index
    %142 = vector.load %arg16[%c2_144, %c0_145, %c0_146] : memref<4x32x32xf32, #tpu.memory_space<vmem>>, vector<1x32x32xf32>
    %143 = vector.shape_cast %142 : vector<1x32x32xf32> to vector<32x32xf32>
    %cst_147 = arith.constant dense<0.000000e+00> : vector<32x64xf32>
    %144 = tpu.matmul %143, %114, %cst_147 {dimension_numbers = #tpu.dot_dimension_numbers<[1], [0], [0], [1], [0, 0, 1, 1], [], []>} : vector<32x32xf32>, vector<32x64xf32>, vector<32x64xf32> -> vector<32x64xf32>
    %145 = arith.addf %141, %144 : vector<32x64xf32>
    %c2_148 = arith.constant 2 : index
    %c0_149 = arith.constant 0 : index
    %c0_150 = arith.constant 0 : index
    %146 = vector.load %arg17[%c2_148, %c0_149, %c0_150] : memref<4x64x64xf32, #tpu.memory_space<vmem>>, vector<1x64x64xf32>
    %147 = vector.shape_cast %146 : vector<1x64x64xf32> to vector<64x64xf32>
    %cst_151 = arith.constant dense<0.000000e+00> : vector<32x64xf32>
    %148 = tpu.matmul %145, %147, %cst_151 {dimension_numbers = #tpu.dot_dimension_numbers<[1], [0], [0], [1], [0, 0, 1, 1], [], []>} : vector<32x64xf32>, vector<64x64xf32>, vector<32x64xf32> -> vector<32x64xf32>
    %149 = arith.addf %138, %148 : vector<32x64xf32>
    %c3_152 = arith.constant 3 : index
    %c0_153 = arith.constant 0 : index
    %c0_154 = arith.constant 0 : index
    %150 = vector.load %arg15[%c3_152, %c0_153, %c0_154] : memref<4x32x32xf32, #tpu.memory_space<vmem>>, vector<1x32x32xf32>
    %151 = vector.shape_cast %150 : vector<1x32x32xf32> to vector<32x32xf32>
    %cst_155 = arith.constant dense<0.000000e+00> : vector<32x64xf32>
    %152 = tpu.matmul %151, %115, %cst_155 {dimension_numbers = #tpu.dot_dimension_numbers<[1], [0], [0], [1], [0, 0, 1, 1], [], []>} : vector<32x32xf32>, vector<32x64xf32>, vector<32x64xf32> -> vector<32x64xf32>
    %c3_156 = arith.constant 3 : index
    %c0_157 = arith.constant 0 : index
    %c0_158 = arith.constant 0 : index
    %153 = vector.load %arg16[%c3_156, %c0_157, %c0_158] : memref<4x32x32xf32, #tpu.memory_space<vmem>>, vector<1x32x32xf32>
    %154 = vector.shape_cast %153 : vector<1x32x32xf32> to vector<32x32xf32>
    %cst_159 = arith.constant dense<0.000000e+00> : vector<32x64xf32>
    %155 = tpu.matmul %154, %114, %cst_159 {dimension_numbers = #tpu.dot_dimension_numbers<[1], [0], [0], [1], [0, 0, 1, 1], [], []>} : vector<32x32xf32>, vector<32x64xf32>, vector<32x64xf32> -> vector<32x64xf32>
    %156 = arith.addf %152, %155 : vector<32x64xf32>
    %c3_160 = arith.constant 3 : index
    %c0_161 = arith.constant 0 : index
    %c0_162 = arith.constant 0 : index
    %157 = vector.load %arg17[%c3_160, %c0_161, %c0_162] : memref<4x64x64xf32, #tpu.memory_space<vmem>>, vector<1x64x64xf32>
    %158 = vector.shape_cast %157 : vector<1x64x64xf32> to vector<64x64xf32>
    %cst_163 = arith.constant dense<0.000000e+00> : vector<32x64xf32>
    %159 = tpu.matmul %156, %158, %cst_163 {dimension_numbers = #tpu.dot_dimension_numbers<[1], [0], [0], [1], [0, 0, 1, 1], [], []>} : vector<32x64xf32>, vector<64x64xf32>, vector<32x64xf32> -> vector<32x64xf32>
    %160 = arith.addf %149, %159 : vector<32x64xf32>
    %c0_164 = arith.constant 0 : index
    %c0_165 = arith.constant 0 : index
    %161 = vector.load %arg18[%c0_164, %c0_165] : memref<1x64xf32, #tpu.memory_space<vmem>>, vector<1x64xf32>
    %162 = vector.broadcast %161 : vector<1x64xf32> to vector<32x64xf32>
    %163 = arith.addf %160, %162 : vector<32x64xf32>
    %cst_166 = arith.constant 0.000000e+00 : f32
    %164 = vector.broadcast %cst_166 : f32 to vector<32x64xf32>
    %165 = arith.cmpf oge, %163, %164 : vector<32x64xf32>
    %cst_167 = arith.constant 2.000000e-01 : f32
    %166 = vector.broadcast %cst_167 : f32 to vector<32x64xf32>
    %167 = arith.mulf %166, %163 : vector<32x64xf32>
    %168 = arith.select %165, %163, %167 : vector<32x64xi1>, vector<32x64xf32>
    %cst_168 = arith.constant 0.000000e+00 : f32
    %169 = vector.broadcast %cst_168 : f32 to vector<16x64xf32>
    %c0_169 = arith.constant 0 : index
    %c0_170 = arith.constant 0 : index
    %c0_171 = arith.constant 0 : index
    %170 = vector.load %arg19[%c0_169, %c0_170, %c0_171] : memref<4x16x32xf32, #tpu.memory_space<vmem>>, vector<1x16x32xf32>
    %171 = vector.shape_cast %170 : vector<1x16x32xf32> to vector<16x32xf32>
    %cst_172 = arith.constant dense<0.000000e+00> : vector<16x64xf32>
    %172 = tpu.matmul %171, %168, %cst_172 {dimension_numbers = #tpu.dot_dimension_numbers<[1], [0], [0], [1], [0, 0, 1, 1], [], []>} : vector<16x32xf32>, vector<32x64xf32>, vector<16x64xf32> -> vector<16x64xf32>
    %c0_173 = arith.constant 0 : index
    %c0_174 = arith.constant 0 : index
    %c0_175 = arith.constant 0 : index
    %173 = vector.load %arg20[%c0_173, %c0_174, %c0_175] : memref<4x64x64xf32, #tpu.memory_space<vmem>>, vector<1x64x64xf32>
    %174 = vector.shape_cast %173 : vector<1x64x64xf32> to vector<64x64xf32>
    %cst_176 = arith.constant dense<0.000000e+00> : vector<16x64xf32>
    %175 = tpu.matmul %172, %174, %cst_176 {dimension_numbers = #tpu.dot_dimension_numbers<[1], [0], [0], [1], [0, 0, 1, 1], [], []>} : vector<16x64xf32>, vector<64x64xf32>, vector<16x64xf32> -> vector<16x64xf32>
    %176 = arith.addf %169, %175 : vector<16x64xf32>
    %c1_177 = arith.constant 1 : index
    %c0_178 = arith.constant 0 : index
    %c0_179 = arith.constant 0 : index
    %177 = vector.load %arg19[%c1_177, %c0_178, %c0_179] : memref<4x16x32xf32, #tpu.memory_space<vmem>>, vector<1x16x32xf32>
    %178 = vector.shape_cast %177 : vector<1x16x32xf32> to vector<16x32xf32>
    %cst_180 = arith.constant dense<0.000000e+00> : vector<16x64xf32>
    %179 = tpu.matmul %178, %168, %cst_180 {dimension_numbers = #tpu.dot_dimension_numbers<[1], [0], [0], [1], [0, 0, 1, 1], [], []>} : vector<16x32xf32>, vector<32x64xf32>, vector<16x64xf32> -> vector<16x64xf32>
    %c1_181 = arith.constant 1 : index
    %c0_182 = arith.constant 0 : index
    %c0_183 = arith.constant 0 : index
    %180 = vector.load %arg20[%c1_181, %c0_182, %c0_183] : memref<4x64x64xf32, #tpu.memory_space<vmem>>, vector<1x64x64xf32>
    %181 = vector.shape_cast %180 : vector<1x64x64xf32> to vector<64x64xf32>
    %cst_184 = arith.constant dense<0.000000e+00> : vector<16x64xf32>
    %182 = tpu.matmul %179, %181, %cst_184 {dimension_numbers = #tpu.dot_dimension_numbers<[1], [0], [0], [1], [0, 0, 1, 1], [], []>} : vector<16x64xf32>, vector<64x64xf32>, vector<16x64xf32> -> vector<16x64xf32>
    %183 = arith.addf %176, %182 : vector<16x64xf32>
    %c2_185 = arith.constant 2 : index
    %c0_186 = arith.constant 0 : index
    %c0_187 = arith.constant 0 : index
    %184 = vector.load %arg19[%c2_185, %c0_186, %c0_187] : memref<4x16x32xf32, #tpu.memory_space<vmem>>, vector<1x16x32xf32>
    %185 = vector.shape_cast %184 : vector<1x16x32xf32> to vector<16x32xf32>
    %cst_188 = arith.constant dense<0.000000e+00> : vector<16x64xf32>
    %186 = tpu.matmul %185, %168, %cst_188 {dimension_numbers = #tpu.dot_dimension_numbers<[1], [0], [0], [1], [0, 0, 1, 1], [], []>} : vector<16x32xf32>, vector<32x64xf32>, vector<16x64xf32> -> vector<16x64xf32>
    %c2_189 = arith.constant 2 : index
    %c0_190 = arith.constant 0 : index
    %c0_191 = arith.constant 0 : index
    %187 = vector.load %arg20[%c2_189, %c0_190, %c0_191] : memref<4x64x64xf32, #tpu.memory_space<vmem>>, vector<1x64x64xf32>
    %188 = vector.shape_cast %187 : vector<1x64x64xf32> to vector<64x64xf32>
    %cst_192 = arith.constant dense<0.000000e+00> : vector<16x64xf32>
    %189 = tpu.matmul %186, %188, %cst_192 {dimension_numbers = #tpu.dot_dimension_numbers<[1], [0], [0], [1], [0, 0, 1, 1], [], []>} : vector<16x64xf32>, vector<64x64xf32>, vector<16x64xf32> -> vector<16x64xf32>
    %190 = arith.addf %183, %189 : vector<16x64xf32>
    %c3_193 = arith.constant 3 : index
    %c0_194 = arith.constant 0 : index
    %c0_195 = arith.constant 0 : index
    %191 = vector.load %arg19[%c3_193, %c0_194, %c0_195] : memref<4x16x32xf32, #tpu.memory_space<vmem>>, vector<1x16x32xf32>
    %192 = vector.shape_cast %191 : vector<1x16x32xf32> to vector<16x32xf32>
    %cst_196 = arith.constant dense<0.000000e+00> : vector<16x64xf32>
    %193 = tpu.matmul %192, %168, %cst_196 {dimension_numbers = #tpu.dot_dimension_numbers<[1], [0], [0], [1], [0, 0, 1, 1], [], []>} : vector<16x32xf32>, vector<32x64xf32>, vector<16x64xf32> -> vector<16x64xf32>
    %c3_197 = arith.constant 3 : index
    %c0_198 = arith.constant 0 : index
    %c0_199 = arith.constant 0 : index
    %194 = vector.load %arg20[%c3_197, %c0_198, %c0_199] : memref<4x64x64xf32, #tpu.memory_space<vmem>>, vector<1x64x64xf32>
    %195 = vector.shape_cast %194 : vector<1x64x64xf32> to vector<64x64xf32>
    %cst_200 = arith.constant dense<0.000000e+00> : vector<16x64xf32>
    %196 = tpu.matmul %193, %195, %cst_200 {dimension_numbers = #tpu.dot_dimension_numbers<[1], [0], [0], [1], [0, 0, 1, 1], [], []>} : vector<16x64xf32>, vector<64x64xf32>, vector<16x64xf32> -> vector<16x64xf32>
    %197 = arith.addf %190, %196 : vector<16x64xf32>
    %c0_201 = arith.constant 0 : index
    %c0_202 = arith.constant 0 : index
    %198 = vector.load %arg21[%c0_201, %c0_202] : memref<1x64xf32, #tpu.memory_space<vmem>>, vector<1x64xf32>
    %199 = vector.broadcast %198 : vector<1x64xf32> to vector<16x64xf32>
    %200 = arith.addf %197, %199 : vector<16x64xf32>
    %cst_203 = arith.constant 0.000000e+00 : f32
    %201 = vector.broadcast %cst_203 : f32 to vector<16x64xf32>
    %202 = arith.cmpf oge, %200, %201 : vector<16x64xf32>
    %cst_204 = arith.constant 2.000000e-01 : f32
    %203 = vector.broadcast %cst_204 : f32 to vector<16x64xf32>
    %204 = arith.mulf %203, %200 : vector<16x64xf32>
    %205 = arith.select %202, %200, %204 : vector<16x64xi1>, vector<16x64xf32>
    %cst_205 = arith.constant 0.000000e+00 : f32
    %206 = vector.broadcast %cst_205 : f32 to vector<4x1xf32>
    %c0_206 = arith.constant 0 : index
    %c0_207 = arith.constant 0 : index
    %c0_208 = arith.constant 0 : index
    %207 = vector.load %arg22[%c0_206, %c0_207, %c0_208] : memref<4x4x16xf32, #tpu.memory_space<vmem>>, vector<1x4x16xf32>
    %208 = vector.shape_cast %207 : vector<1x4x16xf32> to vector<4x16xf32>
    %cst_209 = arith.constant dense<0.000000e+00> : vector<4x64xf32>
    %209 = tpu.matmul %208, %205, %cst_209 {dimension_numbers = #tpu.dot_dimension_numbers<[1], [0], [0], [1], [0, 0, 1, 1], [], []>} : vector<4x16xf32>, vector<16x64xf32>, vector<4x64xf32> -> vector<4x64xf32>
    %c0_210 = arith.constant 0 : index
    %c0_211 = arith.constant 0 : index
    %c0_212 = arith.constant 0 : index
    %210 = vector.load %arg23[%c0_210, %c0_211, %c0_212] : memref<4x64x1xf32, #tpu.memory_space<vmem>>, vector<1x64x1xf32>
    %211 = vector.shape_cast %210 : vector<1x64x1xf32> to vector<64x1xf32>
    %cst_213 = arith.constant dense<0.000000e+00> : vector<4x1xf32>
    %212 = tpu.matmul %209, %211, %cst_213 {dimension_numbers = #tpu.dot_dimension_numbers<[1], [0], [0], [1], [0, 0, 1, 1], [], []>} : vector<4x64xf32>, vector<64x1xf32>, vector<4x1xf32> -> vector<4x1xf32>
    %213 = arith.addf %206, %212 : vector<4x1xf32>
    %c1_214 = arith.constant 1 : index
    %c0_215 = arith.constant 0 : index
    %c0_216 = arith.constant 0 : index
    %214 = vector.load %arg22[%c1_214, %c0_215, %c0_216] : memref<4x4x16xf32, #tpu.memory_space<vmem>>, vector<1x4x16xf32>
    %215 = vector.shape_cast %214 : vector<1x4x16xf32> to vector<4x16xf32>
    %cst_217 = arith.constant dense<0.000000e+00> : vector<4x64xf32>
    %216 = tpu.matmul %215, %205, %cst_217 {dimension_numbers = #tpu.dot_dimension_numbers<[1], [0], [0], [1], [0, 0, 1, 1], [], []>} : vector<4x16xf32>, vector<16x64xf32>, vector<4x64xf32> -> vector<4x64xf32>
    %c1_218 = arith.constant 1 : index
    %c0_219 = arith.constant 0 : index
    %c0_220 = arith.constant 0 : index
    %217 = vector.load %arg23[%c1_218, %c0_219, %c0_220] : memref<4x64x1xf32, #tpu.memory_space<vmem>>, vector<1x64x1xf32>
    %218 = vector.shape_cast %217 : vector<1x64x1xf32> to vector<64x1xf32>
    %cst_221 = arith.constant dense<0.000000e+00> : vector<4x1xf32>
    %219 = tpu.matmul %216, %218, %cst_221 {dimension_numbers = #tpu.dot_dimension_numbers<[1], [0], [0], [1], [0, 0, 1, 1], [], []>} : vector<4x64xf32>, vector<64x1xf32>, vector<4x1xf32> -> vector<4x1xf32>
    %220 = arith.addf %213, %219 : vector<4x1xf32>
    %c2_222 = arith.constant 2 : index
    %c0_223 = arith.constant 0 : index
    %c0_224 = arith.constant 0 : index
    %221 = vector.load %arg22[%c2_222, %c0_223, %c0_224] : memref<4x4x16xf32, #tpu.memory_space<vmem>>, vector<1x4x16xf32>
    %222 = vector.shape_cast %221 : vector<1x4x16xf32> to vector<4x16xf32>
    %cst_225 = arith.constant dense<0.000000e+00> : vector<4x64xf32>
    %223 = tpu.matmul %222, %205, %cst_225 {dimension_numbers = #tpu.dot_dimension_numbers<[1], [0], [0], [1], [0, 0, 1, 1], [], []>} : vector<4x16xf32>, vector<16x64xf32>, vector<4x64xf32> -> vector<4x64xf32>
    %c2_226 = arith.constant 2 : index
    %c0_227 = arith.constant 0 : index
    %c0_228 = arith.constant 0 : index
    %224 = vector.load %arg23[%c2_226, %c0_227, %c0_228] : memref<4x64x1xf32, #tpu.memory_space<vmem>>, vector<1x64x1xf32>
    %225 = vector.shape_cast %224 : vector<1x64x1xf32> to vector<64x1xf32>
    %cst_229 = arith.constant dense<0.000000e+00> : vector<4x1xf32>
    %226 = tpu.matmul %223, %225, %cst_229 {dimension_numbers = #tpu.dot_dimension_numbers<[1], [0], [0], [1], [0, 0, 1, 1], [], []>} : vector<4x64xf32>, vector<64x1xf32>, vector<4x1xf32> -> vector<4x1xf32>
    %227 = arith.addf %220, %226 : vector<4x1xf32>
    %c3_230 = arith.constant 3 : index
    %c0_231 = arith.constant 0 : index
    %c0_232 = arith.constant 0 : index
    %228 = vector.load %arg22[%c3_230, %c0_231, %c0_232] : memref<4x4x16xf32, #tpu.memory_space<vmem>>, vector<1x4x16xf32>
    %229 = vector.shape_cast %228 : vector<1x4x16xf32> to vector<4x16xf32>
    %cst_233 = arith.constant dense<0.000000e+00> : vector<4x64xf32>
    %230 = tpu.matmul %229, %205, %cst_233 {dimension_numbers = #tpu.dot_dimension_numbers<[1], [0], [0], [1], [0, 0, 1, 1], [], []>} : vector<4x16xf32>, vector<16x64xf32>, vector<4x64xf32> -> vector<4x64xf32>
    %c3_234 = arith.constant 3 : index
    %c0_235 = arith.constant 0 : index
    %c0_236 = arith.constant 0 : index
    %231 = vector.load %arg23[%c3_234, %c0_235, %c0_236] : memref<4x64x1xf32, #tpu.memory_space<vmem>>, vector<1x64x1xf32>
    %232 = vector.shape_cast %231 : vector<1x64x1xf32> to vector<64x1xf32>
    %cst_237 = arith.constant dense<0.000000e+00> : vector<4x1xf32>
    %233 = tpu.matmul %230, %232, %cst_237 {dimension_numbers = #tpu.dot_dimension_numbers<[1], [0], [0], [1], [0, 0, 1, 1], [], []>} : vector<4x64xf32>, vector<64x1xf32>, vector<4x1xf32> -> vector<4x1xf32>
    %234 = arith.addf %227, %233 : vector<4x1xf32>
    %c0_238 = arith.constant 0 : index
    %c0_239 = arith.constant 0 : index
    %235 = vector.load %arg24[%c0_238, %c0_239] : memref<1x1xf32, #tpu.memory_space<vmem>>, vector<1x1xf32>
    %236 = vector.broadcast %235 : vector<1x1xf32> to vector<4x1xf32>
    %237 = arith.addf %234, %236 : vector<4x1xf32>
    %cst_240 = arith.constant 0.000000e+00 : f32
    %238 = vector.broadcast %cst_240 : f32 to vector<4x1xf32>
    %239 = arith.subf %238, %237 : vector<4x1xf32>
    %240 = math.exp %239 : vector<4x1xf32>
    %cst_241 = arith.constant 1.000000e+00 : f32
    %241 = vector.broadcast %cst_241 : f32 to vector<4x1xf32>
    %242 = arith.addf %241, %240 : vector<4x1xf32>
    %243 = tpu.reciprocal %242 {approx = true} : vector<4x1xf32> -> vector<4x1xf32>
    %c0_242 = arith.constant 0 : index
    %c0_243 = arith.constant 0 : index
    %244 = vector.load %arg25[%c0_242, %c0_243] : memref<4x1xf32, #tpu.memory_space<vmem>>, vector<4x1xf32>
    tpu.vector_store %arg25[%c0_242, %c0_243], %243 {strides = array<i32>} : memref<4x1xf32, #tpu.memory_space<vmem>>, vector<4x1xf32>,
    return
  }
}

</mosaic_0001>

<llo_original>
// kernel: dcgan_forward.1
$region0: #{dcgan_forward.1}
  #allocation0 [shape = 'u32[]', space=smem, size = 0x4, offset = 0x4, fixed_abs, tag = 'smem constant byte address 0x4 - core index']
  #allocation1 [shape = 'u32[144,128]{1,0:T(1,128)}', space=vmem, size = 0x12000, scoped, tag = 'internal scratch']
  #allocation2 [shape = 'f32[1,1]{1,0:T(1,128)S(1)}', space=vmem, size = 0x200, scoped, tag = 'scoped memory for dcgan_forward.1']
  %s0 = inlined_call_operand.vmem [shape: f32[2,16], index: 0, kind: input, shape index: {}]
  %s1 = inlined_call_operand.vmem [shape: f32[32,64], index: 1, kind: input, shape index: {}]
  %s2 = inlined_call_operand.vmem [shape: f32[4,16,32], index: 2, kind: input, shape index: {}]
  %s3 = inlined_call_operand.hbm [shape: f32[4,1,32], index: 3, kind: input, shape index: {}]
  %s4 = inlined_call_operand.vmem [shape: f32[4,8,2], index: 4, kind: input, shape index: {}]
  %s5 = inlined_call_operand.vmem [shape: f32[16,8], index: 5, kind: input, shape index: {}]
  %s6 = inlined_call_operand.hbm [shape: f32[32,64], index: 6, kind: input, shape index: {}]
  %s7 = inlined_call_operand.hbm [shape: f32[3,16,16], index: 7, kind: input, shape index: {}]
  %s8 = inlined_call_operand.vmem [shape: f32[3,64,64], index: 8, kind: input, shape index: {}]
  %s9 = inlined_call_operand.vmem [shape: f32[1,64], index: 9, kind: input, shape index: {}]
  %s10 = inlined_call_operand.vmem [shape: f32[32,16], index: 10, kind: input, shape index: {}]
  %s11 = inlined_call_operand.vmem [shape: f32[64,128], index: 11, kind: input, shape index: {}]
  %s12 = inlined_call_operand.vmem [shape: f32[3,32,32], index: 12, kind: input, shape index: {}]
  %s13 = inlined_call_operand.vmem [shape: f32[3,128,64], index: 13, kind: input, shape index: {}]
  %s14 = inlined_call_operand.vmem [shape: f32[1,64], index: 14, kind: input, shape index: {}]
  %s15 = inlined_call_operand.vmem [shape: f32[4,32,32], index: 15, kind: input, shape index: {}]
  %s16 = inlined_call_operand.vmem [shape: f32[4,32,32], index: 16, kind: input, shape index: {}]
  %s17 = inlined_call_operand.vmem [shape: f32[4,64,64], index: 17, kind: input, shape index: {}]
  %s18 = inlined_call_operand.vmem [shape: f32[1,64], index: 18, kind: input, shape index: {}]
  %s19 = inlined_call_operand.vmem [shape: f32[4,16,32], index: 19, kind: input, shape index: {}]
  %s20 = inlined_call_operand.vmem [shape: f32[4,64,64], index: 20, kind: input, shape index: {}]
  %s21 = inlined_call_operand.vmem [shape: f32[1,64], index: 21, kind: input, shape index: {}]
  %s22 = inlined_call_operand.vmem [shape: f32[4,4,16], index: 22, kind: input, shape index: {}]
  %s23 = inlined_call_operand.vmem [shape: f32[4,64,1], index: 23, kind: input, shape index: {}]
  %s24 = inlined_call_operand.<no memory space> [shape: f32[1,1], index: 24, kind: input, shape index: {}]
  %s25 = inlined_call_operand.vmem [shape: f32[4,1], index: 25, kind: output, shape index: {}]
  %s26 = sld [smem:[#allocation0]]
  $region122: #{dcgan_forward.1} parent=0
    _
  %s28 = ssub.s32 1, %s26
  %s29 = scalar_select 0, %s28, %s26
  %v30 = vstv %s24
  %31 = vst [vmem:[#allocation2] sm:$0x1] %v30
  $region1: #{dcgan_forward.1} parent=0
    #allocation3 [shape = 'u8[2048]{0}', space=vmem, size = 0x800, scoped, tag = 'input window, operand 3, single buffered']
    #allocation4 [shape = 's32[1]{0}', space=sflag, size = 0x4, scoped, tag = 'scoped memory for dcgan_forward.1']
    #allocation5 [shape = 'u8[16384]{0}', space=vmem, size = 0x4000, scoped, tag = 'input window, operand 6, single buffered']
    #allocation6 [shape = 's32[1]{0}', space=sflag, size = 0x4, scoped, tag = 'scoped memory for dcgan_forward.1']
    #allocation7 [shape = 'u8[24576]{0}', space=vmem, size = 0x6000, scoped, tag = 'input window, operand 7, single buffered']
    %32 = vsyncpa [#allocation4], 0
    %33 = vsyncpa [#allocation6], 0
    // Predicated region
    $region2: #{dcgan_forward.1} parent=1 // pred_check
      _
    $region3: #{dcgan_forward.1} parent=1 // pred_check_branch
      %35 = sbr.rel (0) target = $region5
    $region4: #{dcgan_forward.1} parent=1 // pred_region
      _
    $region5: #{dcgan_forward.1} parent=1 // pred_fallthru
      _
    // Predicated region
    $region6: #{dcgan_forward.1} parent=1 // pred_check
      _
    $region7: #{dcgan_forward.1} parent=1 // pred_check_branch
      %37 = sbr.rel (0) target = $region9
    $region8: #{dcgan_forward.1} parent=1 // pred_region
      _
    $region9: #{dcgan_forward.1} parent=1 // pred_fallthru
      _
    // Predicated region
    $region10: #{dcgan_forward.1} parent=1 // pred_check
      _
    $region11: #{dcgan_forward.1} parent=1 // pred_check_branch
      %39 = sbr.rel (0) target = $region13
    $region12: #{dcgan_forward.1} parent=1 // pred_region
      _
    $region13: #{dcgan_forward.1} parent=1 // pred_fallthru
      _
    // Predicated region
    $region14: #{dcgan_forward.1} parent=1 // pred_check
      _
    $region15: #{dcgan_forward.1} parent=1 // pred_check_branch
      %41 = sbr.rel (0) target = $region17
    $region16: #{dcgan_forward.1} parent=1 // pred_region
      %s43 = ssub.s32 64, 64
      %44 = vsyncadd [#allocation4], %s43
      %s45 = sshll.u32 [#allocation3], 4
      %s46 = int_to_ptr.vmem [resolvable:$true] %s45
      %51 = dma.hbm_to_vmem [thread:$0]  %s3, 64, %s46, [#allocation4], 16, 16, 1
    $region17: #{dcgan_forward.1} parent=1 // pred_fallthru
      _
    // Predicated region
    $region18: #{dcgan_forward.1} parent=1 // pred_check
      _
    $region19: #{dcgan_forward.1} parent=1 // pred_check_branch
      %53 = sbr.rel (0) target = $region21
    $region20: #{dcgan_forward.1} parent=1 // pred_region
      _
    $region21: #{dcgan_forward.1} parent=1 // pred_fallthru
      _
    // Predicated region
    $region22: #{dcgan_forward.1} parent=1 // pred_check
      _
    $region23: #{dcgan_forward.1} parent=1 // pred_check_branch
      %55 = sbr.rel (0) target = $region25
    $region24: #{dcgan_forward.1} parent=1 // pred_region
      _
    $region25: #{dcgan_forward.1} parent=1 // pred_fallthru
      _
    // Predicated region
    $region26: #{dcgan_forward.1} parent=1 // pred_check
      _
    $region27: #{dcgan_forward.1} parent=1 // pred_check_branch
      %57 = sbr.rel (0) target = $region29
    $region28: #{dcgan_forward.1} parent=1 // pred_region
      %s59 = ssub.s32 512, 512
      %60 = vsyncadd [#allocation6], %s59
      %s61 = sshll.u32 [#allocation5], 4
      %s62 = int_to_ptr.vmem [resolvable:$true] %s61
      %67 = dma.hbm_to_vmem [thread:$0]  %s6, 512, %s62, [#allocation6], 128, 128, 8
    $region29: #{dcgan_forward.1} parent=1 // pred_fallthru
      _
    // Predicated region
    $region30: #{dcgan_forward.1} parent=1 // pred_check
      _
    $region31: #{dcgan_forward.1} parent=1 // pred_check_branch
      %69 = sbr.rel (0) target = $region33
    $region32: #{dcgan_forward.1} parent=1 // pred_region
      %s71 = ssub.s32 768, 768
      %72 = vsyncadd [#allocation6], %s71
      %s73 = sshll.u32 [#allocation7], 4
      %s74 = int_to_ptr.vmem [resolvable:$true] %s73
      %79 = dma.hbm_to_vmem [thread:$0]  %s7, 768, %s74, [#allocation6], 128, 128, 8
    $region33: #{dcgan_forward.1} parent=1 // pred_fallthru
      _
    // Predicated region
    $region34: #{dcgan_forward.1} parent=1 // pred_check
      _
    $region35: #{dcgan_forward.1} parent=1 // pred_check_branch
      %81 = sbr.rel (0) target = $region37
    $region36: #{dcgan_forward.1} parent=1 // pred_region
      _
    $region37: #{dcgan_forward.1} parent=1 // pred_fallthru
      _
    // Predicated region
    $region38: #{dcgan_forward.1} parent=1 // pred_check
      _
    $region39: #{dcgan_forward.1} parent=1 // pred_check_branch
      %83 = sbr.rel (0) target = $region41
    $region40: #{dcgan_forward.1} parent=1 // pred_region
      _
    $region41: #{dcgan_forward.1} parent=1 // pred_fallthru
      _
    // Predicated region
    $region42: #{dcgan_forward.1} parent=1 // pred_check
      _
    $region43: #{dcgan_forward.1} parent=1 // pred_check_branch
      %85 = sbr.rel (0) target = $region45
    $region44: #{dcgan_forward.1} parent=1 // pred_region
      _
    $region45: #{dcgan_forward.1} parent=1 // pred_fallthru
      _
    // Predicated region
    $region46: #{dcgan_forward.1} parent=1 // pred_check
      _
    $region47: #{dcgan_forward.1} parent=1 // pred_check_branch
      %87 = sbr.rel (0) target = $region49
    $region48: #{dcgan_forward.1} parent=1 // pred_region
      _
    $region49: #{dcgan_forward.1} parent=1 // pred_fallthru
      _
    // Predicated region
    $region50: #{dcgan_forward.1} parent=1 // pred_check
      _
    $region51: #{dcgan_forward.1} parent=1 // pred_check_branch
      %89 = sbr.rel (0) target = $region53
    $region52: #{dcgan_forward.1} parent=1 // pred_region
      _
    $region53: #{dcgan_forward.1} parent=1 // pred_fallthru
      _
    // Predicated region
    $region54: #{dcgan_forward.1} parent=1 // pred_check
      _
    $region55: #{dcgan_forward.1} parent=1 // pred_check_branch
      %91 = sbr.rel (0) target = $region57
    $region56: #{dcgan_forward.1} parent=1 // pred_region
      _
    $region57: #{dcgan_forward.1} parent=1 // pred_fallthru
      _
    // Predicated region
    $region58: #{dcgan_forward.1} parent=1 // pred_check
      _
    $region59: #{dcgan_forward.1} parent=1 // pred_check_branch
      %93 = sbr.rel (0) target = $region61
    $region60: #{dcgan_forward.1} parent=1 // pred_region
      _
    $region61: #{dcgan_forward.1} parent=1 // pred_fallthru
      _
    // Predicated region
    $region62: #{dcgan_forward.1} parent=1 // pred_check
      _
    $region63: #{dcgan_forward.1} parent=1 // pred_check_branch
      %95 = sbr.rel (0) target = $region65
    $region64: #{dcgan_forward.1} parent=1 // pred_region
      _
    $region65: #{dcgan_forward.1} parent=1 // pred_fallthru
      _
    // Predicated region
    $region66: #{dcgan_forward.1} parent=1 // pred_check
      _
    $region67: #{dcgan_forward.1} parent=1 // pred_check_branch
      %97 = sbr.rel (0) target = $region69
    $region68: #{dcgan_forward.1} parent=1 // pred_region
      _
    $region69: #{dcgan_forward.1} parent=1 // pred_fallthru
      _
    // Predicated region
    $region70: #{dcgan_forward.1} parent=1 // pred_check
      _
    $region71: #{dcgan_forward.1} parent=1 // pred_check_branch
      %99 = sbr.rel (0) target = $region73
    $region72: #{dcgan_forward.1} parent=1 // pred_region
      _
    $region73: #{dcgan_forward.1} parent=1 // pred_fallthru
      _
    // Predicated region
    $region74: #{dcgan_forward.1} parent=1 // pred_check
      _
    $region75: #{dcgan_forward.1} parent=1 // pred_check_branch
      %101 = sbr.rel (0) target = $region77
    $region76: #{dcgan_forward.1} parent=1 // pred_region
      _
    $region77: #{dcgan_forward.1} parent=1 // pred_fallthru
      _
    // Predicated region
    $region78: #{dcgan_forward.1} parent=1 // pred_check
      _
    $region79: #{dcgan_forward.1} parent=1 // pred_check_branch
      %103 = sbr.rel (0) target = $region81
    $region80: #{dcgan_forward.1} parent=1 // pred_region
      _
    $region81: #{dcgan_forward.1} parent=1 // pred_fallthru
      _
    // Predicated region
    $region82: #{dcgan_forward.1} parent=1 // pred_check
      _
    $region83: #{dcgan_forward.1} parent=1 // pred_check_branch
      %105 = sbr.rel (0) target = $region85
    $region84: #{dcgan_forward.1} parent=1 // pred_region
      _
    $region85: #{dcgan_forward.1} parent=1 // pred_fallthru
      _
    // Predicated region
    $region86: #{dcgan_forward.1} parent=1 // pred_check
      _
    $region87: #{dcgan_forward.1} parent=1 // pred_check_branch
      %107 = sbr.rel (0) target = $region89
    $region88: #{dcgan_forward.1} parent=1 // pred_region
      _
    $region89: #{dcgan_forward.1} parent=1 // pred_fallthru
      _
    // Predicated region
    $region90: #{dcgan_forward.1} parent=1 // pred_check
      _
    $region91: #{dcgan_forward.1} parent=1 // pred_check_branch
      %109 = sbr.rel (0) target = $region93
    $region92: #{dcgan_forward.1} parent=1 // pred_region
      _
    $region93: #{dcgan_forward.1} parent=1 // pred_fallthru
      _
    // Predicated region
    $region94: #{dcgan_forward.1} parent=1 // pred_check
      _
    $region95: #{dcgan_forward.1} parent=1 // pred_check_branch
      %111 = sbr.rel (0) target = $region97
    $region96: #{dcgan_forward.1} parent=1 // pred_region
      _
    $region97: #{dcgan_forward.1} parent=1 // pred_fallthru
      _
    // Predicated region
    $region98: #{dcgan_forward.1} parent=1 // pred_check
      _
    $region99: #{dcgan_forward.1} parent=1 // pred_check_branch
      %113 = sbr.rel (0) target = $region101
    $region100: #{dcgan_forward.1} parent=1 // pred_region
      _
    $region101: #{dcgan_forward.1} parent=1 // pred_fallthru
      _
    // Predicated region
    $region102: #{dcgan_forward.1} parent=1 // pred_check
      _
    $region103: #{dcgan_forward.1} parent=1 // pred_check_branch
      %115 = sbr.rel (0) target = $region105
    $region104: #{dcgan_forward.1} parent=1 // pred_region
      %116 = dma.done [#allocation4], 64
    $region105: #{dcgan_forward.1} parent=1 // pred_fallthru
      _
    // Predicated region
    $region106: #{dcgan_forward.1} parent=1 // pred_check
      _
    $region107: #{dcgan_forward.1} parent=1 // pred_check_branch
      %118 = sbr.rel (0) target = $region109
    $region108: #{dcgan_forward.1} parent=1 // pred_region
      %119 = dma.done [#allocation6], 512
    $region109: #{dcgan_forward.1} parent=1 // pred_fallthru
      _
    // Predicated region
    $region110: #{dcgan_forward.1} parent=1 // pred_check
      _
    $region111: #{dcgan_forward.1} parent=1 // pred_check_branch
      %121 = sbr.rel (0) target = $region113
    $region112: #{dcgan_forward.1} parent=1 // pred_region
      %122 = dma.done [#allocation6], 768
    $region113: #{dcgan_forward.1} parent=1 // pred_fallthru
      _
    %v123 = vld [vmem:[%s0] sm:$0x3]
    %v124 = vld [vmem:[%s2] sm:$0xff]
    %v125 = vld [vmem:[%s2 + $0x8] sm:$0xff]
    %v126 = vld [vmem:[#allocation3] sm:$0x1]
    %v128 = vlaneseq
    %v129 = vshrl.u32 %v128, 7
    %v130 = vsub.s32 0, %v129
    %v131 = vrot.slane %v126, %v130
    %vm133 = vcmask 130048
    %v135 = vsel %vm133, %v123, 0
    %137 = vmatprep.subr.mxu0 0.0
    %138 = vmatpush1.msra.mxu0 %v124
    %139 = vmatprep.subr.mxu0 0.0
    %140 = vmatpush1.msra.mxu0 %v125
    %141 = vmatprep.subr.mxu0 0.0
    %142 = vmatpush1.msra.mxu0 0.0
    %143 = vmatprep.subr.mxu0 0.0
    %144 = vmatpush1.msra.mxu0 0.0
    %145 = vmatprep.subr.mxu0 0.0
    %146 = vmatpush1.msra.mxu0 0.0
    %147 = vmatprep.subr.mxu0 0.0
    %148 = vmatpush1.msra.mxu0 0.0
    %149 = vmatprep.subr.mxu0 0.0
    %150 = vmatpush1.msra.mxu0 0.0
    %151 = vmatprep.subr.mxu0 0.0
    %152 = vmatpush1.msra.mxu0 0.0
    %153 = vmatprep.subr.mxu0 0.0
    %154 = vmatpush1.msra.mxu0 0.0
    %155 = vmatprep.subr.mxu0 0.0
    %156 = vmatpush1.msra.mxu0 0.0
    %157 = vmatprep.subr.mxu0 0.0
    %158 = vmatpush1.msra.mxu0 0.0
    %159 = vmatprep.subr.mxu0 0.0
    %160 = vmatpush1.msra.mxu0 0.0
    %161 = vmatprep.subr.mxu0 0.0
    %162 = vmatpush1.msra.mxu0 0.0
    %163 = vmatprep.subr.mxu0 0.0
    %164 = vmatpush1.msra.mxu0 0.0
    %165 = vmatprep.subr.mxu0 0.0
    %166 = vmatpush1.msra.mxu0 0.0
    %167 = vmatprep.subr.mxu0 0.0
    %168 = vmatpush1.msra.mxu0 0.0
    %169 = vmatprep.subr.mxu0 0.0
    %170 = vmatpush1.msra.mxu0 0.0
    %171 = vmatprep.subr.mxu0 0.0
    %172 = vmatpush1.msra.mxu0 0.0
    %173 = vmatprep.subr.mxu0 0.0
    %174 = vmatpush1.msra.mxu0 0.0
    %175 = vmatprep.subr.mxu0 0.0
    %176 = vmatpush1.msra.mxu0 0.0
    %177 = vmatprep.subr.mxu0 0.0
    %178 = vmatpush1.msra.mxu0 0.0
    %179 = vmatprep.subr.mxu0 0.0
    %180 = vmatpush1.msra.mxu0 0.0
    %181 = vmatprep.subr.mxu0 0.0
    %182 = vmatpush1.msra.mxu0 0.0
    %183 = vmatprep.subr.mxu0 0.0
    %184 = vmatpush1.msra.mxu0 0.0
    %185 = vmatprep.subr.mxu0 0.0
    %186 = vmatpush1.msra.mxu0 0.0
    %187 = vmatprep.subr.mxu0 0.0
    %188 = vmatpush1.msra.mxu0 0.0
    %189 = vmatprep.subr.mxu0 0.0
    %190 = vmatpush1.msra.mxu0 0.0
    %191 = vmatprep.subr.mxu0 0.0
    %192 = vmatpush1.msra.mxu0 0.0
    %193 = vmatprep.subr.mxu0 0.0
    %194 = vmatpush1.msra.mxu0 0.0
    %195 = vmatprep.subr.mxu0 0.0
    %196 = vmatpush1.msra.mxu0 0.0
    %197 = vmatprep.subr.mxu0 0.0
    %198 = vmatpush1.msra.mxu0 0.0
    %199 = vmatprep.subr.mxu0 0.0
    %200 = vmatpush1.msra.mxu0 0.0
    %201 = vmatprep.mubr.f32.mxu0 0.0
    %202 = vmatmul.mubr.f32.gmra.mrb[0].mxu0 %v135
    %v203 = vpop.f32.mrb[0].mxu0
    %v204 = vadd.f32 %v131, %v203
    %v205 = vpop.f32.mrb[0].mxu0
    %206 = vdwg.mxu0
    %v207 = vmax.f32 %v204, 0.0
    %v208 = vld [vmem:[%s4] sm:$0xff]
    %s209 = scalar_lea.vmem %s2, 16
    %v210 = vld [vmem:[%s209] sm:$0xff]
    %v211 = vld [vmem:[%s209 + $0x8] sm:$0xff]
    %s212 = scalar_lea.vmem [#allocation3], 1
    %v213 = vld [vmem:[%s212] sm:$0x1]
    %v215 = vlaneseq
    %v216 = vshrl.u32 %v215, 7
    %v217 = vsub.s32 0, %v216
    %v218 = vrot.slane %v213, %v217
    %220 = vmatprep.subr.mxu0 0.0
    %221 = vmatpush1.msra.mxu0 %v210
    %222 = vmatprep.subr.mxu0 0.0
    %223 = vmatpush1.msra.mxu0 %v211
    %224 = vmatprep.subr.mxu0 0.0
    %225 = vmatpush1.msra.mxu0 0.0
    %226 = vmatprep.subr.mxu0 0.0
    %227 = vmatpush1.msra.mxu0 0.0
    %228 = vmatprep.subr.mxu0 0.0
    %229 = vmatpush1.msra.mxu0 0.0
    %230 = vmatprep.subr.mxu0 0.0
    %231 = vmatpush1.msra.mxu0 0.0
    %232 = vmatprep.subr.mxu0 0.0
    %233 = vmatpush1.msra.mxu0 0.0
    %234 = vmatprep.subr.mxu0 0.0
    %235 = vmatpush1.msra.mxu0 0.0
    %236 = vmatprep.subr.mxu0 0.0
    %237 = vmatpush1.msra.mxu0 0.0
    %238 = vmatprep.subr.mxu0 0.0
    %239 = vmatpush1.msra.mxu0 0.0
    %240 = vmatprep.subr.mxu0 0.0
    %241 = vmatpush1.msra.mxu0 0.0
    %242 = vmatprep.subr.mxu0 0.0
    %243 = vmatpush1.msra.mxu0 0.0
    %244 = vmatprep.subr.mxu0 0.0
    %245 = vmatpush1.msra.mxu0 0.0
    %246 = vmatprep.subr.mxu0 0.0
    %247 = vmatpush1.msra.mxu0 0.0
    %248 = vmatprep.subr.mxu0 0.0
    %249 = vmatpush1.msra.mxu0 0.0
    %250 = vmatprep.subr.mxu0 0.0
    %251 = vmatpush1.msra.mxu0 0.0
    %252 = vmatprep.subr.mxu0 0.0
    %253 = vmatpush1.msra.mxu0 0.0
    %254 = vmatprep.subr.mxu0 0.0
    %255 = vmatpush1.msra.mxu0 0.0
    %256 = vmatprep.subr.mxu0 0.0
    %257 = vmatpush1.msra.mxu0 0.0
    %258 = vmatprep.subr.mxu0 0.0
    %259 = vmatpush1.msra.mxu0 0.0
    %260 = vmatprep.subr.mxu0 0.0
    %261 = vmatpush1.msra.mxu0 0.0
    %262 = vmatprep.subr.mxu0 0.0
    %263 = vmatpush1.msra.mxu0 0.0
    %264 = vmatprep.subr.mxu0 0.0
    %265 = vmatpush1.msra.mxu0 0.0
    %266 = vmatprep.subr.mxu0 0.0
    %267 = vmatpush1.msra.mxu0 0.0
    %268 = vmatprep.subr.mxu0 0.0
    %269 = vmatpush1.msra.mxu0 0.0
    %270 = vmatprep.subr.mxu0 0.0
    %271 = vmatpush1.msra.mxu0 0.0
    %272 = vmatprep.subr.mxu0 0.0
    %273 = vmatpush1.msra.mxu0 0.0
    %274 = vmatprep.subr.mxu0 0.0
    %275 = vmatpush1.msra.mxu0 0.0
    %276 = vmatprep.subr.mxu0 0.0
    %277 = vmatpush1.msra.mxu0 0.0
    %278 = vmatprep.subr.mxu0 0.0
    %279 = vmatpush1.msra.mxu0 0.0
    %280 = vmatprep.subr.mxu0 0.0
    %281 = vmatpush1.msra.mxu0 0.0
    %282 = vmatprep.subr.mxu0 0.0
    %283 = vmatpush1.msra.mxu0 0.0
    %284 = vmatprep.mubr.f32.mxu0 0.0
    %285 = vmatmul.mubr.f32.gmra.mrb[0].mxu0 %v135
    %v286 = vpop.f32.mrb[0].mxu0
    %v287 = vadd.f32 %v218, %v286
    %v288 = vpop.f32.mrb[0].mxu0
    %289 = vdwg.mxu0
    %v290 = vmax.f32 %v287, 0.0
    %s291 = scalar_lea.vmem %s4, 8
    %v292 = vld [vmem:[%s291] sm:$0xff]
    %vm293 = vcmask 15360
    %v295 = vsel %vm293, %v292, 0
    %vm297 = vcmask 1041408
    %v299 = vsel %vm297, %v290, 0
    %301 = vmatprep.subr.mxu0 0.0
    %302 = vmatpush1.msra.mxu0 %v299
    %303 = vmatprep.subr.mxu0 0.0
    %304 = vmatpush1.msra.mxu0 0.0
    %305 = vmatprep.subr.mxu0 0.0
    %306 = vmatpush1.msra.mxu0 0.0
    %307 = vmatprep.subr.mxu0 0.0
    %308 = vmatpush1.msra.mxu0 0.0
    %309 = vmatprep.subr.mxu0 0.0
    %310 = vmatpush1.msra.mxu0 0.0
    %311 = vmatprep.subr.mxu0 0.0
    %312 = vmatpush1.msra.mxu0 0.0
    %313 = vmatprep.subr.mxu0 0.0
    %314 = vmatpush1.msra.mxu0 0.0
    %315 = vmatprep.subr.mxu0 0.0
    %316 = vmatpush1.msra.mxu0 0.0
    %317 = vmatprep.subr.mxu0 0.0
    %318 = vmatpush1.msra.mxu0 0.0
    %319 = vmatprep.subr.mxu0 0.0
    %320 = vmatpush1.msra.mxu0 0.0
    %321 = vmatprep.subr.mxu0 0.0
    %322 = vmatpush1.msra.mxu0 0.0
    %323 = vmatprep.subr.mxu0 0.0
    %324 = vmatpush1.msra.mxu0 0.0
    %325 = vmatprep.subr.mxu0 0.0
    %326 = vmatpush1.msra.mxu0 0.0
    %327 = vmatprep.subr.mxu0 0.0
    %328 = vmatpush1.msra.mxu0 0.0
    %329 = vmatprep.subr.mxu0 0.0
    %330 = vmatpush1.msra.mxu0 0.0
    %331 = vmatprep.subr.mxu0 0.0
    %332 = vmatpush1.msra.mxu0 0.0
    %333 = vmatprep.subr.mxu0 0.0
    %334 = vmatpush1.msra.mxu0 0.0
    %335 = vmatprep.subr.mxu0 0.0
    %336 = vmatpush1.msra.mxu0 0.0
    %337 = vmatprep.subr.mxu0 0.0
    %338 = vmatpush1.msra.mxu0 0.0
    %339 = vmatprep.subr.mxu0 0.0
    %340 = vmatpush1.msra.mxu0 0.0
    %341 = vmatprep.subr.mxu0 0.0
    %342 = vmatpush1.msra.mxu0 0.0
    %343 = vmatprep.subr.mxu0 0.0
    %344 = vmatpush1.msra.mxu0 0.0
    %345 = vmatprep.subr.mxu0 0.0
    %346 = vmatpush1.msra.mxu0 0.0
    %347 = vmatprep.subr.mxu0 0.0
    %348 = vmatpush1.msra.mxu0 0.0
    %349 = vmatprep.subr.mxu0 0.0
    %350 = vmatpush1.msra.mxu0 0.0
    %351 = vmatprep.subr.mxu0 0.0
    %352 = vmatpush1.msra.mxu0 0.0
    %353 = vmatprep.subr.mxu0 0.0
    %354 = vmatpush1.msra.mxu0 0.0
    %355 = vmatprep.subr.mxu0 0.0
    %356 = vmatpush1.msra.mxu0 0.0
    %357 = vmatprep.subr.mxu0 0.0
    %358 = vmatpush1.msra.mxu0 0.0
    %359 = vmatprep.subr.mxu0 0.0
    %360 = vmatpush1.msra.mxu0 0.0
    %361 = vmatprep.subr.mxu0 0.0
    %362 = vmatpush1.msra.mxu0 0.0
    %363 = vmatprep.subr.mxu0 0.0
    %364 = vmatpush1.msra.mxu0 0.0
    %365 = vmatprep.mubr.f32.mxu0 0.0
    %366 = vmatmul.mubr.f32.gmra.mrb[0].mxu0 %v295
    %v367 = vpop.f32.mrb[0].mxu0
    %v368 = vadd.f32 0.0, %v367
    %v369 = vpop.f32.mrb[0].mxu0
    %370 = vdwg.mxu0
    %v372 = vsel %vm293, %v208, 0
    %v375 = vsel %vm297, %v207, 0
    %377 = vmatprep.subr.mxu0 0.0
    %378 = vmatpush1.msra.mxu0 %v375
    %379 = vmatprep.subr.mxu0 0.0
    %380 = vmatpush1.msra.mxu0 0.0
    %381 = vmatprep.subr.mxu0 0.0
    %382 = vmatpush1.msra.mxu0 0.0
    %383 = vmatprep.subr.mxu0 0.0
    %384 = vmatpush1.msra.mxu0 0.0
    %385 = vmatprep.subr.mxu0 0.0
    %386 = vmatpush1.msra.mxu0 0.0
    %387 = vmatprep.subr.mxu0 0.0
    %388 = vmatpush1.msra.mxu0 0.0
    %389 = vmatprep.subr.mxu0 0.0
    %390 = vmatpush1.msra.mxu0 0.0
    %391 = vmatprep.subr.mxu0 0.0
    %392 = vmatpush1.msra.mxu0 0.0
    %393 = vmatprep.subr.mxu0 0.0
    %394 = vmatpush1.msra.mxu0 0.0
    %395 = vmatprep.subr.mxu0 0.0
    %396 = vmatpush1.msra.mxu0 0.0
    %397 = vmatprep.subr.mxu0 0.0
    %398 = vmatpush1.msra.mxu0 0.0
    %399 = vmatprep.subr.mxu0 0.0
    %400 = vmatpush1.msra.mxu0 0.0
    %401 = vmatprep.subr.mxu0 0.0
    %402 = vmatpush1.msra.mxu0 0.0
    %403 = vmatprep.subr.mxu0 0.0
    %404 = vmatpush1.msra.mxu0 0.0
    %405 = vmatprep.subr.mxu0 0.0
    %406 = vmatpush1.msra.mxu0 0.0
    %407 = vmatprep.subr.mxu0 0.0
    %408 = vmatpush1.msra.mxu0 0.0
    %409 = vmatprep.subr.mxu0 0.0
    %410 = vmatpush1.msra.mxu0 0.0
    %411 = vmatprep.subr.mxu0 0.0
    %412 = vmatpush1.msra.mxu0 0.0
    %413 = vmatprep.subr.mxu0 0.0
    %414 = vmatpush1.msra.mxu0 0.0
    %415 = vmatprep.subr.mxu0 0.0
    %416 = vmatpush1.msra.mxu0 0.0
    %417 = vmatprep.subr.mxu0 0.0
    %418 = vmatpush1.msra.mxu0 0.0
    %419 = vmatprep.subr.mxu0 0.0
    %420 = vmatpush1.msra.mxu0 0.0
    %421 = vmatprep.subr.mxu0 0.0
    %422 = vmatpush1.msra.mxu0 0.0
    %423 = vmatprep.subr.mxu0 0.0
    %424 = vmatpush1.msra.mxu0 0.0
    %425 = vmatprep.subr.mxu0 0.0
    %426 = vmatpush1.msra.mxu0 0.0
    %427 = vmatprep.subr.mxu0 0.0
    %428 = vmatpush1.msra.mxu0 0.0
    %429 = vmatprep.subr.mxu0 0.0
    %430 = vmatpush1.msra.mxu0 0.0
    %431 = vmatprep.subr.mxu0 0.0
    %432 = vmatpush1.msra.mxu0 0.0
    %433 = vmatprep.subr.mxu0 0.0
    %434 = vmatpush1.msra.mxu0 0.0
    %435 = vmatprep.subr.mxu0 0.0
    %436 = vmatpush1.msra.mxu0 0.0
    %437 = vmatprep.subr.mxu0 0.0
    %438 = vmatpush1.msra.mxu0 0.0
    %439 = vmatprep.subr.mxu0 0.0
    %440 = vmatpush1.msra.mxu0 0.0
    %441 = vmatprep.mubr.f32.mxu0 0.0
    %442 = vmatmul.mubr.f32.gmra.mrb[0].mxu0 %v372
    %v443 = vpop.f32.mrb[0].mxu0
    %v444 = vadd.f32 %v368, %v443
    %v445 = vpop.f32.mrb[0].mxu0
    %446 = vdwg.mxu0
    %s447 = scalar_lea.vmem %s2, 32
    %v448 = vld [vmem:[%s447] sm:$0xff]
    %v449 = vld [vmem:[%s447 + $0x8] sm:$0xff]
    %s450 = scalar_lea.vmem [#allocation3], 2
    %v451 = vld [vmem:[%s450] sm:$0x1]
    %v453 = vlaneseq
    %v454 = vshrl.u32 %v453, 7
    %v455 = vsub.s32 0, %v454
    %v456 = vrot.slane %v451, %v455
    %458 = vmatprep.subr.mxu0 0.0
    %459 = vmatpush1.msra.mxu0 %v448
    %460 = vmatprep.subr.mxu0 0.0
    %461 = vmatpush1.msra.mxu0 %v449
    %462 = vmatprep.subr.mxu0 0.0
    %463 = vmatpush1.msra.mxu0 0.0
    %464 = vmatprep.subr.mxu0 0.0
    %465 = vmatpush1.msra.mxu0 0.0
    %466 = vmatprep.subr.mxu0 0.0
    %467 = vmatpush1.msra.mxu0 0.0
    %468 = vmatprep.subr.mxu0 0.0
    %469 = vmatpush1.msra.mxu0 0.0
    %470 = vmatprep.subr.mxu0 0.0
    %471 = vmatpush1.msra.mxu0 0.0
    %472 = vmatprep.subr.mxu0 0.0
    %473 = vmatpush1.msra.mxu0 0.0
    %474 = vmatprep.subr.mxu0 0.0
    %475 = vmatpush1.msra.mxu0 0.0
    %476 = vmatprep.subr.mxu0 0.0
    %477 = vmatpush1.msra.mxu0 0.0
    %478 = vmatprep.subr.mxu0 0.0
    %479 = vmatpush1.msra.mxu0 0.0
    %480 = vmatprep.subr.mxu0 0.0
    %481 = vmatpush1.msra.mxu0 0.0
    %482 = vmatprep.subr.mxu0 0.0
    %483 = vmatpush1.msra.mxu0 0.0
    %484 = vmatprep.subr.mxu0 0.0
    %485 = vmatpush1.msra.mxu0 0.0
    %486 = vmatprep.subr.mxu0 0.0
    %487 = vmatpush1.msra.mxu0 0.0
    %488 = vmatprep.subr.mxu0 0.0
    %489 = vmatpush1.msra.mxu0 0.0
    %490 = vmatprep.subr.mxu0 0.0
    %491 = vmatpush1.msra.mxu0 0.0
    %492 = vmatprep.subr.mxu0 0.0
    %493 = vmatpush1.msra.mxu0 0.0
    %494 = vmatprep.subr.mxu0 0.0
    %495 = vmatpush1.msra.mxu0 0.0
    %496 = vmatprep.subr.mxu0 0.0
    %497 = vmatpush1.msra.mxu0 0.0
    %498 = vmatprep.subr.mxu0 0.0
    %499 = vmatpush1.msra.mxu0 0.0
    %500 = vmatprep.subr.mxu0 0.0
    %501 = vmatpush1.msra.mxu0 0.0
    %502 = vmatprep.subr.mxu0 0.0
    %503 = vmatpush1.msra.mxu0 0.0
    %504 = vmatprep.subr.mxu0 0.0
    %505 = vmatpush1.msra.mxu0 0.0
    %506 = vmatprep.subr.mxu0 0.0
    %507 = vmatpush1.msra.mxu0 0.0
    %508 = vmatprep.subr.mxu0 0.0
    %509 = vmatpush1.msra.mxu0 0.0
    %510 = vmatprep.subr.mxu0 0.0
    %511 = vmatpush1.msra.mxu0 0.0
    %512 = vmatprep.subr.mxu0 0.0
    %513 = vmatpush1.msra.mxu0 0.0
    %514 = vmatprep.subr.mxu0 0.0
    %515 = vmatpush1.msra.mxu0 0.0
    %516 = vmatprep.subr.mxu0 0.0
    %517 = vmatpush1.msra.mxu0 0.0
    %518 = vmatprep.subr.mxu0 0.0
    %519 = vmatpush1.msra.mxu0 0.0
    %520 = vmatprep.subr.mxu0 0.0
    %521 = vmatpush1.msra.mxu0 0.0
    %522 = vmatprep.mubr.f32.mxu0 0.0
    %523 = vmatmul.mubr.f32.gmra.mrb[0].mxu0 %v135
    %v524 = vpop.f32.mrb[0].mxu0
    %v525 = vadd.f32 %v456, %v524
    %v526 = vpop.f32.mrb[0].mxu0
    %527 = vdwg.mxu0
    %v528 = vmax.f32 %v525, 0.0
    %s529 = scalar_lea.vmem %s4, 16
    %v530 = vld [vmem:[%s529] sm:$0xff]
    %v532 = vsel %vm293, %v530, 0
    %v535 = vsel %vm297, %v528, 0
    %537 = vmatprep.subr.mxu0 0.0
    %538 = vmatpush1.msra.mxu0 %v535
    %539 = vmatprep.subr.mxu0 0.0
    %540 = vmatpush1.msra.mxu0 0.0
    %541 = vmatprep.subr.mxu0 0.0
    %542 = vmatpush1.msra.mxu0 0.0
    %543 = vmatprep.subr.mxu0 0.0
    %544 = vmatpush1.msra.mxu0 0.0
    %545 = vmatprep.subr.mxu0 0.0
    %546 = vmatpush1.msra.mxu0 0.0
    %547 = vmatprep.subr.mxu0 0.0
    %548 = vmatpush1.msra.mxu0 0.0
    %549 = vmatprep.subr.mxu0 0.0
    %550 = vmatpush1.msra.mxu0 0.0
    %551 = vmatprep.subr.mxu0 0.0
    %552 = vmatpush1.msra.mxu0 0.0
    %553 = vmatprep.subr.mxu0 0.0
    %554 = vmatpush1.msra.mxu0 0.0
    %555 = vmatprep.subr.mxu0 0.0
    %556 = vmatpush1.msra.mxu0 0.0
    %557 = vmatprep.subr.mxu0 0.0
    %558 = vmatpush1.msra.mxu0 0.0
    %559 = vmatprep.subr.mxu0 0.0
    %560 = vmatpush1.msra.mxu0 0.0
    %561 = vmatprep.subr.mxu0 0.0
    %562 = vmatpush1.msra.mxu0 0.0
    %563 = vmatprep.subr.mxu0 0.0
    %564 = vmatpush1.msra.mxu0 0.0
    %565 = vmatprep.subr.mxu0 0.0
    %566 = vmatpush1.msra.mxu0 0.0
    %567 = vmatprep.subr.mxu0 0.0
    %568 = vmatpush1.msra.mxu0 0.0
    %569 = vmatprep.subr.mxu0 0.0
    %570 = vmatpush1.msra.mxu0 0.0
    %571 = vmatprep.subr.mxu0 0.0
    %572 = vmatpush1.msra.mxu0 0.0
    %573 = vmatprep.subr.mxu0 0.0
    %574 = vmatpush1.msra.mxu0 0.0
    %575 = vmatprep.subr.mxu0 0.0
    %576 = vmatpush1.msra.mxu0 0.0
    %577 = vmatprep.subr.mxu0 0.0
    %578 = vmatpush1.msra.mxu0 0.0
    %579 = vmatprep.subr.mxu0 0.0
    %580 = vmatpush1.msra.mxu0 0.0
    %581 = vmatprep.subr.mxu0 0.0
    %582 = vmatpush1.msra.mxu0 0.0
    %583 = vmatprep.subr.mxu0 0.0
    %584 = vmatpush1.msra.mxu0 0.0
    %585 = vmatprep.subr.mxu0 0.0
    %586 = vmatpush1.msra.mxu0 0.0
    %587 = vmatprep.subr.mxu0 0.0
    %588 = vmatpush1.msra.mxu0 0.0
    %589 = vmatprep.subr.mxu0 0.0
    %590 = vmatpush1.msra.mxu0 0.0
    %591 = vmatprep.subr.mxu0 0.0
    %592 = vmatpush1.msra.mxu0 0.0
    %593 = vmatprep.subr.mxu0 0.0
    %594 = vmatpush1.msra.mxu0 0.0
    %595 = vmatprep.subr.mxu0 0.0
    %596 = vmatpush1.msra.mxu0 0.0
    %597 = vmatprep.subr.mxu0 0.0
    %598 = vmatpush1.msra.mxu0 0.0
    %599 = vmatprep.subr.mxu0 0.0
    %600 = vmatpush1.msra.mxu0 0.0
    %601 = vmatprep.mubr.f32.mxu0 0.0
    %602 = vmatmul.mubr.f32.gmra.mrb[0].mxu0 %v532
    %v603 = vpop.f32.mrb[0].mxu0
    %v604 = vadd.f32 0.0, %v603
    %v605 = vpop.f32.mrb[0].mxu0
    %606 = vdwg.mxu0
    %v607 = vadd.f32 %v444, %v604
    %s608 = scalar_lea.vmem %s2, 48
    %v609 = vld [vmem:[%s608] sm:$0xff]
    %v610 = vld [vmem:[%s608 + $0x8] sm:$0xff]
    %s611 = scalar_lea.vmem [#allocation3], 3
    %v612 = vld [vmem:[%s611] sm:$0x1]
    %v614 = vlaneseq
    %v615 = vshrl.u32 %v614, 7
    %v616 = vsub.s32 0, %v615
    %v617 = vrot.slane %v612, %v616
    %619 = vmatprep.subr.mxu0 0.0
    %620 = vmatpush1.msra.mxu0 %v609
    %621 = vmatprep.subr.mxu0 0.0
    %622 = vmatpush1.msra.mxu0 %v610
    %623 = vmatprep.subr.mxu0 0.0
    %624 = vmatpush1.msra.mxu0 0.0
    %625 = vmatprep.subr.mxu0 0.0
    %626 = vmatpush1.msra.mxu0 0.0
    %627 = vmatprep.subr.mxu0 0.0
    %628 = vmatpush1.msra.mxu0 0.0
    %629 = vmatprep.subr.mxu0 0.0
    %630 = vmatpush1.msra.mxu0 0.0
    %631 = vmatprep.subr.mxu0 0.0
    %632 = vmatpush1.msra.mxu0 0.0
    %633 = vmatprep.subr.mxu0 0.0
    %634 = vmatpush1.msra.mxu0 0.0
    %635 = vmatprep.subr.mxu0 0.0
    %636 = vmatpush1.msra.mxu0 0.0
    %637 = vmatprep.subr.mxu0 0.0
    %638 = vmatpush1.msra.mxu0 0.0
    %639 = vmatprep.subr.mxu0 0.0
    %640 = vmatpush1.msra.mxu0 0.0
    %641 = vmatprep.subr.mxu0 0.0
    %642 = vmatpush1.msra.mxu0 0.0
    %643 = vmatprep.subr.mxu0 0.0
    %644 = vmatpush1.msra.mxu0 0.0
    %645 = vmatprep.subr.mxu0 0.0
    %646 = vmatpush1.msra.mxu0 0.0
    %647 = vmatprep.subr.mxu0 0.0
    %648 = vmatpush1.msra.mxu0 0.0
    %649 = vmatprep.subr.mxu0 0.0
    %650 = vmatpush1.msra.mxu0 0.0
    %651 = vmatprep.subr.mxu0 0.0
    %652 = vmatpush1.msra.mxu0 0.0
    %653 = vmatprep.subr.mxu0 0.0
    %654 = vmatpush1.msra.mxu0 0.0
    %655 = vmatprep.subr.mxu0 0.0
    %656 = vmatpush1.msra.mxu0 0.0
    %657 = vmatprep.subr.mxu0 0.0
    %658 = vmatpush1.msra.mxu0 0.0
    %659 = vmatprep.subr.mxu0 0.0
    %660 = vmatpush1.msra.mxu0 0.0
    %661 = vmatprep.subr.mxu0 0.0
    %662 = vmatpush1.msra.mxu0 0.0
    %663 = vmatprep.subr.mxu0 0.0
    %664 = vmatpush1.msra.mxu0 0.0
    %665 = vmatprep.subr.mxu0 0.0
    %666 = vmatpush1.msra.mxu0 0.0
    %667 = vmatprep.subr.mxu0 0.0
    %668 = vmatpush1.msra.mxu0 0.0
    %669 = vmatprep.subr.mxu0 0.0
    %670 = vmatpush1.msra.mxu0 0.0
    %671 = vmatprep.subr.mxu0 0.0
    %672 = vmatpush1.msra.mxu0 0.0
    %673 = vmatprep.subr.mxu0 0.0
    %674 = vmatpush1.msra.mxu0 0.0
    %675 = vmatprep.subr.mxu0 0.0
    %676 = vmatpush1.msra.mxu0 0.0
    %677 = vmatprep.subr.mxu0 0.0
    %678 = vmatpush1.msra.mxu0 0.0
    %679 = vmatprep.subr.mxu0 0.0
    %680 = vmatpush1.msra.mxu0 0.0
    %681 = vmatprep.subr.mxu0 0.0
    %682 = vmatpush1.msra.mxu0 0.0
    %683 = vmatprep.mubr.f32.mxu0 0.0
    %684 = vmatmul.mubr.f32.gmra.mrb[0].mxu0 %v135
    %v685 = vpop.f32.mrb[0].mxu0
    %v686 = vadd.f32 %v617, %v685
    %v687 = vpop.f32.mrb[0].mxu0
    %688 = vdwg.mxu0
    %v689 = vmax.f32 %v686, 0.0
    %s690 = scalar_lea.vmem %s4, 24
    %v691 = vld [vmem:[%s690] sm:$0xff]
    %v693 = vsel %vm293, %v691, 0
    %v696 = vsel %vm297, %v689, 0
    %698 = vmatprep.subr.mxu0 0.0
    %699 = vmatpush1.msra.mxu0 %v696
    %700 = vmatprep.subr.mxu0 0.0
    %701 = vmatpush1.msra.mxu0 0.0
    %702 = vmatprep.subr.mxu0 0.0
    %703 = vmatpush1.msra.mxu0 0.0
    %704 = vmatprep.subr.mxu0 0.0
    %705 = vmatpush1.msra.mxu0 0.0
    %706 = vmatprep.subr.mxu0 0.0
    %707 = vmatpush1.msra.mxu0 0.0
    %708 = vmatprep.subr.mxu0 0.0
    %709 = vmatpush1.msra.mxu0 0.0
    %710 = vmatprep.subr.mxu0 0.0
    %711 = vmatpush1.msra.mxu0 0.0
    %712 = vmatprep.subr.mxu0 0.0
    %713 = vmatpush1.msra.mxu0 0.0
    %714 = vmatprep.subr.mxu0 0.0
    %715 = vmatpush1.msra.mxu0 0.0
    %716 = vmatprep.subr.mxu0 0.0
    %717 = vmatpush1.msra.mxu0 0.0
    %718 = vmatprep.subr.mxu0 0.0
    %719 = vmatpush1.msra.mxu0 0.0
    %720 = vmatprep.subr.mxu0 0.0
    %721 = vmatpush1.msra.mxu0 0.0
    %722 = vmatprep.subr.mxu0 0.0
    %723 = vmatpush1.msra.mxu0 0.0
    %724 = vmatprep.subr.mxu0 0.0
    %725 = vmatpush1.msra.mxu0 0.0
    %726 = vmatprep.subr.mxu0 0.0
    %727 = vmatpush1.msra.mxu0 0.0
    %728 = vmatprep.subr.mxu0 0.0
    %729 = vmatpush1.msra.mxu0 0.0
    %730 = vmatprep.subr.mxu0 0.0
    %731 = vmatpush1.msra.mxu0 0.0
    %732 = vmatprep.subr.mxu0 0.0
    %733 = vmatpush1.msra.mxu0 0.0
    %734 = vmatprep.subr.mxu0 0.0
    %735 = vmatpush1.msra.mxu0 0.0
    %736 = vmatprep.subr.mxu0 0.0
    %737 = vmatpush1.msra.mxu0 0.0
    %738 = vmatprep.subr.mxu0 0.0
    %739 = vmatpush1.msra.mxu0 0.0
    %740 = vmatprep.subr.mxu0 0.0
    %741 = vmatpush1.msra.mxu0 0.0
    %742 = vmatprep.subr.mxu0 0.0
    %743 = vmatpush1.msra.mxu0 0.0
    %744 = vmatprep.subr.mxu0 0.0
    %745 = vmatpush1.msra.mxu0 0.0
    %746 = vmatprep.subr.mxu0 0.0
    %747 = vmatpush1.msra.mxu0 0.0
    %748 = vmatprep.subr.mxu0 0.0
    %749 = vmatpush1.msra.mxu0 0.0
    %750 = vmatprep.subr.mxu0 0.0
    %751 = vmatpush1.msra.mxu0 0.0
    %752 = vmatprep.subr.mxu0 0.0
    %753 = vmatpush1.msra.mxu0 0.0
    %754 = vmatprep.subr.mxu0 0.0
    %755 = vmatpush1.msra.mxu0 0.0
    %756 = vmatprep.subr.mxu0 0.0
    %757 = vmatpush1.msra.mxu0 0.0
    %758 = vmatprep.subr.mxu0 0.0
    %759 = vmatpush1.msra.mxu0 0.0
    %760 = vmatprep.subr.mxu0 0.0
    %761 = vmatpush1.msra.mxu0 0.0
    %762 = vmatprep.mubr.f32.mxu0 0.0
    %763 = vmatmul.mubr.f32.gmra.mrb[0].mxu0 %v693
    %v764 = vpop.f32.mrb[0].mxu0
    %v765 = vadd.f32 0.0, %v764
    %v766 = vpop.f32.mrb[0].mxu0
    %767 = vdwg.mxu0
    %v768 = vadd.f32 %v607, %v765
    %v769 = vld [vmem:[%s5] sm:$0xff]
    %v770 = vld [vmem:[%s5 + $0x8] sm:$0xff]
    %vm771 = vcmask 64512
    %v773 = vsel %vm771, %v769, 0
    %v776 = vsel %vm771, %v770, 0
    %778 = vmatprep.subr.mxu0 0.0
    %779 = vmatpush1.msra.mxu0 %v768
    %780 = vmatprep.subr.mxu0 0.0
    %781 = vmatpush1.msra.mxu0 0.0
    %782 = vmatprep.subr.mxu0 0.0
    %783 = vmatpush1.msra.mxu0 0.0
    %784 = vmatprep.subr.mxu0 0.0
    %785 = vmatpush1.msra.mxu0 0.0
    %786 = vmatprep.subr.mxu0 0.0
    %787 = vmatpush1.msra.mxu0 0.0
    %788 = vmatprep.subr.mxu0 0.0
    %789 = vmatpush1.msra.mxu0 0.0
    %790 = vmatprep.subr.mxu0 0.0
    %791 = vmatpush1.msra.mxu0 0.0
    %792 = vmatprep.subr.mxu0 0.0
    %793 = vmatpush1.msra.mxu0 0.0
    %794 = vmatprep.subr.mxu0 0.0
    %795 = vmatpush1.msra.mxu0 0.0
    %796 = vmatprep.subr.mxu0 0.0
    %797 = vmatpush1.msra.mxu0 0.0
    %798 = vmatprep.subr.mxu0 0.0
    %799 = vmatpush1.msra.mxu0 0.0
    %800 = vmatprep.subr.mxu0 0.0
    %801 = vmatpush1.msra.mxu0 0.0
    %802 = vmatprep.subr.mxu0 0.0
    %803 = vmatpush1.msra.mxu0 0.0
    %804 = vmatprep.subr.mxu0 0.0
    %805 = vmatpush1.msra.mxu0 0.0
    %806 = vmatprep.subr.mxu0 0.0
    %807 = vmatpush1.msra.mxu0 0.0
    %808 = vmatprep.subr.mxu0 0.0
    %809 = vmatpush1.msra.mxu0 0.0
    %810 = vmatprep.subr.mxu0 0.0
    %811 = vmatpush1.msra.mxu0 0.0
    %812 = vmatprep.subr.mxu0 0.0
    %813 = vmatpush1.msra.mxu0 0.0
    %814 = vmatprep.subr.mxu0 0.0
    %815 = vmatpush1.msra.mxu0 0.0
    %816 = vmatprep.subr.mxu0 0.0
    %817 = vmatpush1.msra.mxu0 0.0
    %818 = vmatprep.subr.mxu0 0.0
    %819 = vmatpush1.msra.mxu0 0.0
    %820 = vmatprep.subr.mxu0 0.0
    %821 = vmatpush1.msra.mxu0 0.0
    %822 = vmatprep.subr.mxu0 0.0
    %823 = vmatpush1.msra.mxu0 0.0
    %824 = vmatprep.subr.mxu0 0.0
    %825 = vmatpush1.msra.mxu0 0.0
    %826 = vmatprep.subr.mxu0 0.0
    %827 = vmatpush1.msra.mxu0 0.0
    %828 = vmatprep.subr.mxu0 0.0
    %829 = vmatpush1.msra.mxu0 0.0
    %830 = vmatprep.subr.mxu0 0.0
    %831 = vmatpush1.msra.mxu0 0.0
    %832 = vmatprep.subr.mxu0 0.0
    %833 = vmatpush1.msra.mxu0 0.0
    %834 = vmatprep.subr.mxu0 0.0
    %835 = vmatpush1.msra.mxu0 0.0
    %836 = vmatprep.subr.mxu0 0.0
    %837 = vmatpush1.msra.mxu0 0.0
    %838 = vmatprep.subr.mxu0 0.0
    %839 = vmatpush1.msra.mxu0 0.0
    %840 = vmatprep.subr.mxu0 0.0
    %841 = vmatpush1.msra.mxu0 0.0
    %842 = vmatprep.mubr.f32.mxu0 0.0
    %843 = vmatmul.mubr.f32.gmra.mrb[0].mxu0 %v773
    %v844 = vpop.f32.mrb[0].mxu0
    %v845 = vadd.f32 0.0, %v844
    %v846 = vpop.f32.mrb[0].mxu0
    %847 = vmatprep.mubr.f32.mxu0 0.0
    %848 = vmatmul.mubr.f32.gmra.mrb[0].mxu0 %v776
    %v849 = vpop.f32.mrb[0].mxu0
    %v850 = vadd.f32 0.0, %v849
    %v851 = vpop.f32.mrb[0].mxu0
    %852 = vdwg.mxu0
    %v853 = vld [vmem:[#allocation5] sm:$0xff]
    %v854 = vld [vmem:[#allocation5 + $0x8] sm:$0xff]
    %v855 = vld [vmem:[#allocation5 + $0x10] sm:$0xff]
    %v856 = vld [vmem:[#allocation5 + $0x18] sm:$0xff]
    %vm857 = vcmask 261120
    %v859 = vsel %vm857, %v845, 0
    %v862 = vsel %vm857, %v850, 0
    %864 = vmatprep.subr.mxu0 0.0
    %865 = vmatpush1.msra.mxu0 %v853
    %866 = vmatprep.subr.mxu0 0.0
    %867 = vmatpush1.msra.mxu0 %v854
    %868 = vmatprep.subr.mxu0 0.0
    %869 = vmatpush1.msra.mxu0 %v855
    %870 = vmatprep.subr.mxu0 0.0
    %871 = vmatpush1.msra.mxu0 %v856
    %872 = vmatprep.subr.mxu0 0.0
    %873 = vmatpush1.msra.mxu0 0.0
    %874 = vmatprep.subr.mxu0 0.0
    %875 = vmatpush1.msra.mxu0 0.0
    %876 = vmatprep.subr.mxu0 0.0
    %877 = vmatpush1.msra.mxu0 0.0
    %878 = vmatprep.subr.mxu0 0.0
    %879 = vmatpush1.msra.mxu0 0.0
    %880 = vmatprep.subr.mxu0 0.0
    %881 = vmatpush1.msra.mxu0 0.0
    %882 = vmatprep.subr.mxu0 0.0
    %883 = vmatpush1.msra.mxu0 0.0
    %884 = vmatprep.subr.mxu0 0.0
    %885 = vmatpush1.msra.mxu0 0.0
    %886 = vmatprep.subr.mxu0 0.0
    %887 = vmatpush1.msra.mxu0 0.0
    %888 = vmatprep.subr.mxu0 0.0
    %889 = vmatpush1.msra.mxu0 0.0
    %890 = vmatprep.subr.mxu0 0.0
    %891 = vmatpush1.msra.mxu0 0.0
    %892 = vmatprep.subr.mxu0 0.0
    %893 = vmatpush1.msra.mxu0 0.0
    %894 = vmatprep.subr.mxu0 0.0
    %895 = vmatpush1.msra.mxu0 0.0
    %896 = vmatprep.subr.mxu0 0.0
    %897 = vmatpush1.msra.mxu0 0.0
    %898 = vmatprep.subr.mxu0 0.0
    %899 = vmatpush1.msra.mxu0 0.0
    %900 = vmatprep.subr.mxu0 0.0
    %901 = vmatpush1.msra.mxu0 0.0
    %902 = vmatprep.subr.mxu0 0.0
    %903 = vmatpush1.msra.mxu0 0.0
    %904 = vmatprep.subr.mxu0 0.0
    %905 = vmatpush1.msra.mxu0 0.0
    %906 = vmatprep.subr.mxu0 0.0
    %907 = vmatpush1.msra.mxu0 0.0
    %908 = vmatprep.subr.mxu0 0.0
    %909 = vmatpush1.msra.mxu0 0.0
    %910 = vmatprep.subr.mxu0 0.0
    %911 = vmatpush1.msra.mxu0 0.0
    %912 = vmatprep.subr.mxu0 0.0
    %913 = vmatpush1.msra.mxu0 0.0
    %914 = vmatprep.subr.mxu0 0.0
    %915 = vmatpush1.msra.mxu0 0.0
    %916 = vmatprep.subr.mxu0 0.0
    %917 = vmatpush1.msra.mxu0 0.0
    %918 = vmatprep.subr.mxu0 0.0
    %919 = vmatpush1.msra.mxu0 0.0
    %920 = vmatprep.subr.mxu0 0.0
    %921 = vmatpush1.msra.mxu0 0.0
    %922 = vmatprep.subr.mxu0 0.0
    %923 = vmatpush1.msra.mxu0 0.0
    %924 = vmatprep.subr.mxu0 0.0
    %925 = vmatpush1.msra.mxu0 0.0
    %926 = vmatprep.subr.mxu0 0.0
    %927 = vmatpush1.msra.mxu0 0.0
    %928 = vmatprep.mubr.f32.mxu0 0.0
    %929 = vmatmul.mubr.f32.gmra.mrb[0].mxu0 %v859
    %v930 = vpop.f32.mrb[0].mxu0
    %v931 = vadd.f32 0.0, %v930
    %v932 = vpop.f32.mrb[0].mxu0
    %933 = vmatprep.mubr.f32.mxu0 0.0
    %934 = vmatmul.mubr.f32.gmra.mrb[0].mxu0 %v862
    %v935 = vpop.f32.mrb[0].mxu0
    %v936 = vadd.f32 0.0, %v935
    %v937 = vpop.f32.mrb[0].mxu0
    %938 = vdwg.mxu0
    %v939 = vld [vmem:[#allocation7] sm:$0xff]
    %v940 = vld [vmem:[#allocation7 + $0x8] sm:$0xff]
    %v942 = vsel %vm133, %v939, 0
    %v945 = vsel %vm133, %v940, 0
    %947 = vmatprep.subr.mxu0 0.0
    %948 = vmatpush1.msra.mxu0 %v931
    %949 = vmatprep.subr.mxu0 0.0
    %950 = vmatpush1.msra.mxu0 %v936
    %951 = vmatprep.subr.mxu0 0.0
    %952 = vmatpush1.msra.mxu0 0.0
    %953 = vmatprep.subr.mxu0 0.0
    %954 = vmatpush1.msra.mxu0 0.0
    %955 = vmatprep.subr.mxu0 0.0
    %956 = vmatpush1.msra.mxu0 0.0
    %957 = vmatprep.subr.mxu0 0.0
    %958 = vmatpush1.msra.mxu0 0.0
    %959 = vmatprep.subr.mxu0 0.0
    %960 = vmatpush1.msra.mxu0 0.0
    %961 = vmatprep.subr.mxu0 0.0
    %962 = vmatpush1.msra.mxu0 0.0
    %963 = vmatprep.subr.mxu0 0.0
    %964 = vmatpush1.msra.mxu0 0.0
    %965 = vmatprep.subr.mxu0 0.0
    %966 = vmatpush1.msra.mxu0 0.0
    %967 = vmatprep.subr.mxu0 0.0
    %968 = vmatpush1.msra.mxu0 0.0
    %969 = vmatprep.subr.mxu0 0.0
    %970 = vmatpush1.msra.mxu0 0.0
    %971 = vmatprep.subr.mxu0 0.0
    %972 = vmatpush1.msra.mxu0 0.0
    %973 = vmatprep.subr.mxu0 0.0
    %974 = vmatpush1.msra.mxu0 0.0
    %975 = vmatprep.subr.mxu0 0.0
    %976 = vmatpush1.msra.mxu0 0.0
    %977 = vmatprep.subr.mxu0 0.0
    %978 = vmatpush1.msra.mxu0 0.0
    %979 = vmatprep.subr.mxu0 0.0
    %980 = vmatpush1.msra.mxu0 0.0
    %981 = vmatprep.subr.mxu0 0.0
    %982 = vmatpush1.msra.mxu0 0.0
    %983 = vmatprep.subr.mxu0 0.0
    %984 = vmatpush1.msra.mxu0 0.0
    %985 = vmatprep.subr.mxu0 0.0
    %986 = vmatpush1.msra.mxu0 0.0
    %987 = vmatprep.subr.mxu0 0.0
    %988 = vmatpush1.msra.mxu0 0.0
    %989 = vmatprep.subr.mxu0 0.0
    %990 = vmatpush1.msra.mxu0 0.0
    %991 = vmatprep.subr.mxu0 0.0
    %992 = vmatpush1.msra.mxu0 0.0
    %993 = vmatprep.subr.mxu0 0.0
    %994 = vmatpush1.msra.mxu0 0.0
    %995 = vmatprep.subr.mxu0 0.0
    %996 = vmatpush1.msra.mxu0 0.0
    %997 = vmatprep.subr.mxu0 0.0
    %998 = vmatpush1.msra.mxu0 0.0
    %999 = vmatprep.subr.mxu0 0.0
    %1000 = vmatpush1.msra.mxu0 0.0
    %1001 = vmatprep.subr.mxu0 0.0
    %1002 = vmatpush1.msra.mxu0 0.0
    %1003 = vmatprep.subr.mxu0 0.0
    %1004 = vmatpush1.msra.mxu0 0.0
    %1005 = vmatprep.subr.mxu0 0.0
    %1006 = vmatpush1.msra.mxu0 0.0
    %1007 = vmatprep.subr.mxu0 0.0
    %1008 = vmatpush1.msra.mxu0 0.0
    %1009 = vmatprep.subr.mxu0 0.0
    %1010 = vmatpush1.msra.mxu0 0.0
    %1011 = vmatprep.mubr.f32.mxu0 0.0
    %1012 = vmatmul.mubr.f32.gmra.mrb[0].mxu0 %v942
    %v1013 = vpop.f32.mrb[0].mxu0
    %v1014 = vadd.f32 0.0, %v1013
    %v1015 = vpop.f32.mrb[0].mxu0
    %1016 = vmatprep.mubr.f32.mxu0 0.0
    %1017 = vmatmul.mubr.f32.gmra.mrb[0].mxu0 %v945
    %v1018 = vpop.f32.mrb[0].mxu0
    %v1019 = vadd.f32 0.0, %v1018
    %v1020 = vpop.f32.mrb[0].mxu0
    %1021 = vdwg.mxu0
    %v1022 = vld [vmem:[%s8] sm:$0xff]
    %v1023 = vld [vmem:[%s8 + $0x8] sm:$0xff]
    %v1024 = vld [vmem:[%s8 + $0x10] sm:$0xff]
    %v1025 = vld [vmem:[%s8 + $0x18] sm:$0xff]
    %v1026 = vld [vmem:[%s8 + $0x20] sm:$0xff]
    %v1027 = vld [vmem:[%s8 + $0x28] sm:$0xff]
    %v1028 = vld [vmem:[%s8 + $0x30] sm:$0xff]
    %v1029 = vld [vmem:[%s8 + $0x38] sm:$0xff]
    %s1030 = scalar_lea.vmem [#allocation7], 16
    %v1031 = vld [vmem:[%s1030] sm:$0xff]
    %v1032 = vld [vmem:[%s1030 + $0x8] sm:$0xff]
    %v1034 = vsel %vm133, %v1031, 0
    %v1037 = vsel %vm133, %v1032, 0
    %1039 = vmatprep.subr.mxu0 0.0
    %1040 = vmatpush1.msra.mxu0 %v931
    %1041 = vmatprep.subr.mxu0 0.0
    %1042 = vmatpush1.msra.mxu0 %v936
    %1043 = vmatprep.subr.mxu0 0.0
    %1044 = vmatpush1.msra.mxu0 0.0
    %1045 = vmatprep.subr.mxu0 0.0
    %1046 = vmatpush1.msra.mxu0 0.0
    %1047 = vmatprep.subr.mxu0 0.0
    %1048 = vmatpush1.msra.mxu0 0.0
    %1049 = vmatprep.subr.mxu0 0.0
    %1050 = vmatpush1.msra.mxu0 0.0
    %1051 = vmatprep.subr.mxu0 0.0
    %1052 = vmatpush1.msra.mxu0 0.0
    %1053 = vmatprep.subr.mxu0 0.0
    %1054 = vmatpush1.msra.mxu0 0.0
    %1055 = vmatprep.subr.mxu0 0.0
    %1056 = vmatpush1.msra.mxu0 0.0
    %1057 = vmatprep.subr.mxu0 0.0
    %1058 = vmatpush1.msra.mxu0 0.0
    %1059 = vmatprep.subr.mxu0 0.0
    %1060 = vmatpush1.msra.mxu0 0.0
    %1061 = vmatprep.subr.mxu0 0.0
    %1062 = vmatpush1.msra.mxu0 0.0
    %1063 = vmatprep.subr.mxu0 0.0
    %1064 = vmatpush1.msra.mxu0 0.0
    %1065 = vmatprep.subr.mxu0 0.0
    %1066 = vmatpush1.msra.mxu0 0.0
    %1067 = vmatprep.subr.mxu0 0.0
    %1068 = vmatpush1.msra.mxu0 0.0
    %1069 = vmatprep.subr.mxu0 0.0
    %1070 = vmatpush1.msra.mxu0 0.0
    %1071 = vmatprep.subr.mxu0 0.0
    %1072 = vmatpush1.msra.mxu0 0.0
    %1073 = vmatprep.subr.mxu0 0.0
    %1074 = vmatpush1.msra.mxu0 0.0
    %1075 = vmatprep.subr.mxu0 0.0
    %1076 = vmatpush1.msra.mxu0 0.0
    %1077 = vmatprep.subr.mxu0 0.0
    %1078 = vmatpush1.msra.mxu0 0.0
    %1079 = vmatprep.subr.mxu0 0.0
    %1080 = vmatpush1.msra.mxu0 0.0
    %1081 = vmatprep.subr.mxu0 0.0
    %1082 = vmatpush1.msra.mxu0 0.0
    %1083 = vmatprep.subr.mxu0 0.0
    %1084 = vmatpush1.msra.mxu0 0.0
    %1085 = vmatprep.subr.mxu0 0.0
    %1086 = vmatpush1.msra.mxu0 0.0
    %1087 = vmatprep.subr.mxu0 0.0
    %1088 = vmatpush1.msra.mxu0 0.0
    %1089 = vmatprep.subr.mxu0 0.0
    %1090 = vmatpush1.msra.mxu0 0.0
    %1091 = vmatprep.subr.mxu0 0.0
    %1092 = vmatpush1.msra.mxu0 0.0
    %1093 = vmatprep.subr.mxu0 0.0
    %1094 = vmatpush1.msra.mxu0 0.0
    %1095 = vmatprep.subr.mxu0 0.0
    %1096 = vmatpush1.msra.mxu0 0.0
    %1097 = vmatprep.subr.mxu0 0.0
    %1098 = vmatpush1.msra.mxu0 0.0
    %1099 = vmatprep.subr.mxu0 0.0
    %1100 = vmatpush1.msra.mxu0 0.0
    %1101 = vmatprep.subr.mxu0 0.0
    %1102 = vmatpush1.msra.mxu0 0.0
    %1103 = vmatprep.mubr.f32.mxu0 0.0
    %1104 = vmatmul.mubr.f32.gmra.mrb[0].mxu0 %v1034
    %v1105 = vpop.f32.mrb[0].mxu0
    %v1106 = vadd.f32 0.0, %v1105
    %v1107 = vpop.f32.mrb[0].mxu0
    %1108 = vmatprep.mubr.f32.mxu0 0.0
    %1109 = vmatmul.mubr.f32.gmra.mrb[0].mxu0 %v1037
    %v1110 = vpop.f32.mrb[0].mxu0
    %v1111 = vadd.f32 0.0, %v1110
    %v1112 = vpop.f32.mrb[0].mxu0
    %1113 = vdwg.mxu0
    %s1114 = scalar_lea.vmem %s8, 64
    %v1115 = vld [vmem:[%s1114] sm:$0xff]
    %v1116 = vld [vmem:[%s1114 + $0x8] sm:$0xff]
    %v1117 = vld [vmem:[%s1114 + $0x10] sm:$0xff]
    %v1118 = vld [vmem:[%s1114 + $0x18] sm:$0xff]
    %v1119 = vld [vmem:[%s1114 + $0x20] sm:$0xff]
    %v1120 = vld [vmem:[%s1114 + $0x28] sm:$0xff]
    %v1121 = vld [vmem:[%s1114 + $0x30] sm:$0xff]
    %v1122 = vld [vmem:[%s1114 + $0x38] sm:$0xff]
    %vm1123 = vcmask 523264
    %v1125 = vsel %vm1123, %v1106, 0
    %v1128 = vsel %vm1123, %v1111, 0
    %1130 = vmatprep.subr.mxu0 0.0
    %1131 = vmatpush1.msra.mxu0 %v1115
    %1132 = vmatprep.subr.mxu0 0.0
    %1133 = vmatpush1.msra.mxu0 %v1116
    %1134 = vmatprep.subr.mxu0 0.0
    %1135 = vmatpush1.msra.mxu0 %v1117
    %1136 = vmatprep.subr.mxu0 0.0
    %1137 = vmatpush1.msra.mxu0 %v1118
    %1138 = vmatprep.subr.mxu0 0.0
    %1139 = vmatpush1.msra.mxu0 %v1119
    %1140 = vmatprep.subr.mxu0 0.0
    %1141 = vmatpush1.msra.mxu0 %v1120
    %1142 = vmatprep.subr.mxu0 0.0
    %1143 = vmatpush1.msra.mxu0 %v1121
    %1144 = vmatprep.subr.mxu0 0.0
    %1145 = vmatpush1.msra.mxu0 %v1122
    %1146 = vmatprep.subr.mxu0 0.0
    %1147 = vmatpush1.msra.mxu0 0.0
    %1148 = vmatprep.subr.mxu0 0.0
    %1149 = vmatpush1.msra.mxu0 0.0
    %1150 = vmatprep.subr.mxu0 0.0
    %1151 = vmatpush1.msra.mxu0 0.0
    %1152 = vmatprep.subr.mxu0 0.0
    %1153 = vmatpush1.msra.mxu0 0.0
    %1154 = vmatprep.subr.mxu0 0.0
    %1155 = vmatpush1.msra.mxu0 0.0
    %1156 = vmatprep.subr.mxu0 0.0
    %1157 = vmatpush1.msra.mxu0 0.0
    %1158 = vmatprep.subr.mxu0 0.0
    %1159 = vmatpush1.msra.mxu0 0.0
    %1160 = vmatprep.subr.mxu0 0.0
    %1161 = vmatpush1.msra.mxu0 0.0
    %1162 = vmatprep.subr.mxu0 0.0
    %1163 = vmatpush1.msra.mxu0 0.0
    %1164 = vmatprep.subr.mxu0 0.0
    %1165 = vmatpush1.msra.mxu0 0.0
    %1166 = vmatprep.subr.mxu0 0.0
    %1167 = vmatpush1.msra.mxu0 0.0
    %1168 = vmatprep.subr.mxu0 0.0
    %1169 = vmatpush1.msra.mxu0 0.0
    %1170 = vmatprep.subr.mxu0 0.0
    %1171 = vmatpush1.msra.mxu0 0.0
    %1172 = vmatprep.subr.mxu0 0.0
    %1173 = vmatpush1.msra.mxu0 0.0
    %1174 = vmatprep.subr.mxu0 0.0
    %1175 = vmatpush1.msra.mxu0 0.0
    %1176 = vmatprep.subr.mxu0 0.0
    %1177 = vmatpush1.msra.mxu0 0.0
    %1178 = vmatprep.subr.mxu0 0.0
    %1179 = vmatpush1.msra.mxu0 0.0
    %1180 = vmatprep.subr.mxu0 0.0
    %1181 = vmatpush1.msra.mxu0 0.0
    %1182 = vmatprep.subr.mxu0 0.0
    %1183 = vmatpush1.msra.mxu0 0.0
    %1184 = vmatprep.subr.mxu0 0.0
    %1185 = vmatpush1.msra.mxu0 0.0
    %1186 = vmatprep.subr.mxu0 0.0
    %1187 = vmatpush1.msra.mxu0 0.0
    %1188 = vmatprep.subr.mxu0 0.0
    %1189 = vmatpush1.msra.mxu0 0.0
    %1190 = vmatprep.subr.mxu0 0.0
    %1191 = vmatpush1.msra.mxu0 0.0
    %1192 = vmatprep.subr.mxu0 0.0
    %1193 = vmatpush1.msra.mxu0 0.0
    %1194 = vmatprep.mubr.f32.mxu0 0.0
    %1195 = vmatmul.mubr.f32.gmra.mrb[0].mxu0 %v1125
    %v1196 = vpop.f32.mrb[0].mxu0
    %v1197 = vadd.f32 0.0, %v1196
    %v1198 = vpop.f32.mrb[0].mxu0
    %1199 = vmatprep.mubr.f32.mxu0 0.0
    %1200 = vmatmul.mubr.f32.gmra.mrb[0].mxu0 %v1128
    %v1201 = vpop.f32.mrb[0].mxu0
    %v1202 = vadd.f32 0.0, %v1201
    %v1203 = vpop.f32.mrb[0].mxu0
    %1204 = vdwg.mxu0
    %v1206 = vsel %vm1123, %v1014, 0
    %v1209 = vsel %vm1123, %v1019, 0
    %1211 = vmatprep.subr.mxu0 0.0
    %1212 = vmatpush1.msra.mxu0 %v1022
    %1213 = vmatprep.subr.mxu0 0.0
    %1214 = vmatpush1.msra.mxu0 %v1023
    %1215 = vmatprep.subr.mxu0 0.0
    %1216 = vmatpush1.msra.mxu0 %v1024
    %1217 = vmatprep.subr.mxu0 0.0
    %1218 = vmatpush1.msra.mxu0 %v1025
    %1219 = vmatprep.subr.mxu0 0.0
    %1220 = vmatpush1.msra.mxu0 %v1026
    %1221 = vmatprep.subr.mxu0 0.0
    %1222 = vmatpush1.msra.mxu0 %v1027
    %1223 = vmatprep.subr.mxu0 0.0
    %1224 = vmatpush1.msra.mxu0 %v1028
    %1225 = vmatprep.subr.mxu0 0.0
    %1226 = vmatpush1.msra.mxu0 %v1029
    %1227 = vmatprep.subr.mxu0 0.0
    %1228 = vmatpush1.msra.mxu0 0.0
    %1229 = vmatprep.subr.mxu0 0.0
    %1230 = vmatpush1.msra.mxu0 0.0
    %1231 = vmatprep.subr.mxu0 0.0
    %1232 = vmatpush1.msra.mxu0 0.0
    %1233 = vmatprep.subr.mxu0 0.0
    %1234 = vmatpush1.msra.mxu0 0.0
    %1235 = vmatprep.subr.mxu0 0.0
    %1236 = vmatpush1.msra.mxu0 0.0
    %1237 = vmatprep.subr.mxu0 0.0
    %1238 = vmatpush1.msra.mxu0 0.0
    %1239 = vmatprep.subr.mxu0 0.0
    %1240 = vmatpush1.msra.mxu0 0.0
    %1241 = vmatprep.subr.mxu0 0.0
    %1242 = vmatpush1.msra.mxu0 0.0
    %1243 = vmatprep.subr.mxu0 0.0
    %1244 = vmatpush1.msra.mxu0 0.0
    %1245 = vmatprep.subr.mxu0 0.0
    %1246 = vmatpush1.msra.mxu0 0.0
    %1247 = vmatprep.subr.mxu0 0.0
    %1248 = vmatpush1.msra.mxu0 0.0
    %1249 = vmatprep.subr.mxu0 0.0
    %1250 = vmatpush1.msra.mxu0 0.0
    %1251 = vmatprep.subr.mxu0 0.0
    %1252 = vmatpush1.msra.mxu0 0.0
    %1253 = vmatprep.subr.mxu0 0.0
    %1254 = vmatpush1.msra.mxu0 0.0
    %1255 = vmatprep.subr.mxu0 0.0
    %1256 = vmatpush1.msra.mxu0 0.0
    %1257 = vmatprep.subr.mxu0 0.0
    %1258 = vmatpush1.msra.mxu0 0.0
    %1259 = vmatprep.subr.mxu0 0.0
    %1260 = vmatpush1.msra.mxu0 0.0
    %1261 = vmatprep.subr.mxu0 0.0
    %1262 = vmatpush1.msra.mxu0 0.0
    %1263 = vmatprep.subr.mxu0 0.0
    %1264 = vmatpush1.msra.mxu0 0.0
    %1265 = vmatprep.subr.mxu0 0.0
    %1266 = vmatpush1.msra.mxu0 0.0
    %1267 = vmatprep.subr.mxu0 0.0
    %1268 = vmatpush1.msra.mxu0 0.0
    %1269 = vmatprep.subr.mxu0 0.0
    %1270 = vmatpush1.msra.mxu0 0.0
    %1271 = vmatprep.subr.mxu0 0.0
    %1272 = vmatpush1.msra.mxu0 0.0
    %1273 = vmatprep.subr.mxu0 0.0
    %1274 = vmatpush1.msra.mxu0 0.0
    %1275 = vmatprep.mubr.f32.mxu0 0.0
    %1276 = vmatmul.mubr.f32.gmra.mrb[0].mxu0 %v1206
    %v1277 = vpop.f32.mrb[0].mxu0
    %v1278 = vadd.f32 %v1197, %v1277
    %v1279 = vpop.f32.mrb[0].mxu0
    %1280 = vmatprep.mubr.f32.mxu0 0.0
    %1281 = vmatmul.mubr.f32.gmra.mrb[0].mxu0 %v1209
    %v1282 = vpop.f32.mrb[0].mxu0
    %v1283 = vadd.f32 %v1202, %v1282
    %v1284 = vpop.f32.mrb[0].mxu0
    %1285 = vdwg.mxu0
    %s1286 = scalar_lea.vmem [#allocation7], 32
    %v1287 = vld [vmem:[%s1286] sm:$0xff]
    %v1288 = vld [vmem:[%s1286 + $0x8] sm:$0xff]
    %v1290 = vsel %vm133, %v1287, 0
    %v1293 = vsel %vm133, %v1288, 0
    %1295 = vmatprep.subr.mxu0 0.0
    %1296 = vmatpush1.msra.mxu0 %v931
    %1297 = vmatprep.subr.mxu0 0.0
    %1298 = vmatpush1.msra.mxu0 %v936
    %1299 = vmatprep.subr.mxu0 0.0
    %1300 = vmatpush1.msra.mxu0 0.0
    %1301 = vmatprep.subr.mxu0 0.0
    %1302 = vmatpush1.msra.mxu0 0.0
    %1303 = vmatprep.subr.mxu0 0.0
    %1304 = vmatpush1.msra.mxu0 0.0
    %1305 = vmatprep.subr.mxu0 0.0
    %1306 = vmatpush1.msra.mxu0 0.0
    %1307 = vmatprep.subr.mxu0 0.0
    %1308 = vmatpush1.msra.mxu0 0.0
    %1309 = vmatprep.subr.mxu0 0.0
    %1310 = vmatpush1.msra.mxu0 0.0
    %1311 = vmatprep.subr.mxu0 0.0
    %1312 = vmatpush1.msra.mxu0 0.0
    %1313 = vmatprep.subr.mxu0 0.0
    %1314 = vmatpush1.msra.mxu0 0.0
    %1315 = vmatprep.subr.mxu0 0.0
    %1316 = vmatpush1.msra.mxu0 0.0
    %1317 = vmatprep.subr.mxu0 0.0
    %1318 = vmatpush1.msra.mxu0 0.0
    %1319 = vmatprep.subr.mxu0 0.0
    %1320 = vmatpush1.msra.mxu0 0.0
    %1321 = vmatprep.subr.mxu0 0.0
    %1322 = vmatpush1.msra.mxu0 0.0
    %1323 = vmatprep.subr.mxu0 0.0
    %1324 = vmatpush1.msra.mxu0 0.0
    %1325 = vmatprep.subr.mxu0 0.0
    %1326 = vmatpush1.msra.mxu0 0.0
    %1327 = vmatprep.subr.mxu0 0.0
    %1328 = vmatpush1.msra.mxu0 0.0
    %1329 = vmatprep.subr.mxu0 0.0
    %1330 = vmatpush1.msra.mxu0 0.0
    %1331 = vmatprep.subr.mxu0 0.0
    %1332 = vmatpush1.msra.mxu0 0.0
    %1333 = vmatprep.subr.mxu0 0.0
    %1334 = vmatpush1.msra.mxu0 0.0
    %1335 = vmatprep.subr.mxu0 0.0
    %1336 = vmatpush1.msra.mxu0 0.0
    %1337 = vmatprep.subr.mxu0 0.0
    %1338 = vmatpush1.msra.mxu0 0.0
    %1339 = vmatprep.subr.mxu0 0.0
    %1340 = vmatpush1.msra.mxu0 0.0
    %1341 = vmatprep.subr.mxu0 0.0
    %1342 = vmatpush1.msra.mxu0 0.0
    %1343 = vmatprep.subr.mxu0 0.0
    %1344 = vmatpush1.msra.mxu0 0.0
    %1345 = vmatprep.subr.mxu0 0.0
    %1346 = vmatpush1.msra.mxu0 0.0
    %1347 = vmatprep.subr.mxu0 0.0
    %1348 = vmatpush1.msra.mxu0 0.0
    %1349 = vmatprep.subr.mxu0 0.0
    %1350 = vmatpush1.msra.mxu0 0.0
    %1351 = vmatprep.subr.mxu0 0.0
    %1352 = vmatpush1.msra.mxu0 0.0
    %1353 = vmatprep.subr.mxu0 0.0
    %1354 = vmatpush1.msra.mxu0 0.0
    %1355 = vmatprep.subr.mxu0 0.0
    %1356 = vmatpush1.msra.mxu0 0.0
    %1357 = vmatprep.subr.mxu0 0.0
    %1358 = vmatpush1.msra.mxu0 0.0
    %1359 = vmatprep.mubr.f32.mxu0 0.0
    %1360 = vmatmul.mubr.f32.gmra.mrb[0].mxu0 %v1290
    %v1361 = vpop.f32.mrb[0].mxu0
    %v1362 = vadd.f32 0.0, %v1361
    %v1363 = vpop.f32.mrb[0].mxu0
    %1364 = vmatprep.mubr.f32.mxu0 0.0
    %1365 = vmatmul.mubr.f32.gmra.mrb[0].mxu0 %v1293
    %v1366 = vpop.f32.mrb[0].mxu0
    %v1367 = vadd.f32 0.0, %v1366
    %v1368 = vpop.f32.mrb[0].mxu0
    %1369 = vdwg.mxu0
    %s1370 = scalar_lea.vmem %s8, 128
    %v1371 = vld [vmem:[%s1370] sm:$0xff]
    %v1372 = vld [vmem:[%s1370 + $0x8] sm:$0xff]
    %v1373 = vld [vmem:[%s1370 + $0x10] sm:$0xff]
    %v1374 = vld [vmem:[%s1370 + $0x18] sm:$0xff]
    %v1375 = vld [vmem:[%s1370 + $0x20] sm:$0xff]
    %v1376 = vld [vmem:[%s1370 + $0x28] sm:$0xff]
    %v1377 = vld [vmem:[%s1370 + $0x30] sm:$0xff]
    %v1378 = vld [vmem:[%s1370 + $0x38] sm:$0xff]
    %v1380 = vsel %vm1123, %v1362, 0
    %v1383 = vsel %vm1123, %v1367, 0
    %1385 = vmatprep.subr.mxu0 0.0
    %1386 = vmatpush1.msra.mxu0 %v1371
    %1387 = vmatprep.subr.mxu0 0.0
    %1388 = vmatpush1.msra.mxu0 %v1372
    %1389 = vmatprep.subr.mxu0 0.0
    %1390 = vmatpush1.msra.mxu0 %v1373
    %1391 = vmatprep.subr.mxu0 0.0
    %1392 = vmatpush1.msra.mxu0 %v1374
    %1393 = vmatprep.subr.mxu0 0.0
    %1394 = vmatpush1.msra.mxu0 %v1375
    %1395 = vmatprep.subr.mxu0 0.0
    %1396 = vmatpush1.msra.mxu0 %v1376
    %1397 = vmatprep.subr.mxu0 0.0
    %1398 = vmatpush1.msra.mxu0 %v1377
    %1399 = vmatprep.subr.mxu0 0.0
    %1400 = vmatpush1.msra.mxu0 %v1378
    %1401 = vmatprep.subr.mxu0 0.0
    %1402 = vmatpush1.msra.mxu0 0.0
    %1403 = vmatprep.subr.mxu0 0.0
    %1404 = vmatpush1.msra.mxu0 0.0
    %1405 = vmatprep.subr.mxu0 0.0
    %1406 = vmatpush1.msra.mxu0 0.0
    %1407 = vmatprep.subr.mxu0 0.0
    %1408 = vmatpush1.msra.mxu0 0.0
    %1409 = vmatprep.subr.mxu0 0.0
    %1410 = vmatpush1.msra.mxu0 0.0
    %1411 = vmatprep.subr.mxu0 0.0
    %1412 = vmatpush1.msra.mxu0 0.0
    %1413 = vmatprep.subr.mxu0 0.0
    %1414 = vmatpush1.msra.mxu0 0.0
    %1415 = vmatprep.subr.mxu0 0.0
    %1416 = vmatpush1.msra.mxu0 0.0
    %1417 = vmatprep.subr.mxu0 0.0
    %1418 = vmatpush1.msra.mxu0 0.0
    %1419 = vmatprep.subr.mxu0 0.0
    %1420 = vmatpush1.msra.mxu0 0.0
    %1421 = vmatprep.subr.mxu0 0.0
    %1422 = vmatpush1.msra.mxu0 0.0
    %1423 = vmatprep.subr.mxu0 0.0
    %1424 = vmatpush1.msra.mxu0 0.0
    %1425 = vmatprep.subr.mxu0 0.0
    %1426 = vmatpush1.msra.mxu0 0.0
    %1427 = vmatprep.subr.mxu0 0.0
    %1428 = vmatpush1.msra.mxu0 0.0
    %1429 = vmatprep.subr.mxu0 0.0
    %1430 = vmatpush1.msra.mxu0 0.0
    %1431 = vmatprep.subr.mxu0 0.0
    %1432 = vmatpush1.msra.mxu0 0.0
    %1433 = vmatprep.subr.mxu0 0.0
    %1434 = vmatpush1.msra.mxu0 0.0
    %1435 = vmatprep.subr.mxu0 0.0
    %1436 = vmatpush1.msra.mxu0 0.0
    %1437 = vmatprep.subr.mxu0 0.0
    %1438 = vmatpush1.msra.mxu0 0.0
    %1439 = vmatprep.subr.mxu0 0.0
    %1440 = vmatpush1.msra.mxu0 0.0
    %1441 = vmatprep.subr.mxu0 0.0
    %1442 = vmatpush1.msra.mxu0 0.0
    %1443 = vmatprep.subr.mxu0 0.0
    %1444 = vmatpush1.msra.mxu0 0.0
    %1445 = vmatprep.subr.mxu0 0.0
    %1446 = vmatpush1.msra.mxu0 0.0
    %1447 = vmatprep.subr.mxu0 0.0
    %1448 = vmatpush1.msra.mxu0 0.0
    %1449 = vmatprep.mubr.f32.mxu0 0.0
    %1450 = vmatmul.mubr.f32.gmra.mrb[0].mxu0 %v1380
    %v1451 = vpop.f32.mrb[0].mxu0
    %v1452 = vadd.f32 0.0, %v1451
    %v1453 = vpop.f32.mrb[0].mxu0
    %1454 = vmatprep.mubr.f32.mxu0 0.0
    %1455 = vmatmul.mubr.f32.gmra.mrb[0].mxu0 %v1383
    %v1456 = vpop.f32.mrb[0].mxu0
    %v1457 = vadd.f32 0.0, %v1456
    %v1458 = vpop.f32.mrb[0].mxu0
    %1459 = vdwg.mxu0
    %v1460 = vadd.f32 %v1278, %v1452
    %v1461 = vadd.f32 %v1283, %v1457
    %v1462 = vld [vmem:[%s9] sm:$0x1]
    %v1464 = vlaneseq
    %v1465 = vshrl.u32 %v1464, 7
    %v1466 = vsub.s32 0, %v1465
    %v1467 = vrot.slane %v1462, %v1466
    %v1469 = vadd.f32 %v1460, %v1467
    %v1470 = vadd.f32 %v1461, %v1467
    %v1471 = vmax.f32 %v1469, 0.0
    %v1472 = vmax.f32 %v1470, 0.0
    %v1473 = vld [vmem:[%s10] sm:$0xff]
    %v1474 = vld [vmem:[%s10 + $0x8] sm:$0xff]
    %v1475 = vld [vmem:[%s10 + $0x10] sm:$0xff]
    %v1476 = vld [vmem:[%s10 + $0x18] sm:$0xff]
    %v1478 = vsel %vm133, %v1473, 0
    %v1481 = vsel %vm133, %v1474, 0
    %v1484 = vsel %vm133, %v1475, 0
    %v1487 = vsel %vm133, %v1476, 0
    %1489 = vmatprep.subr.mxu0 0.0
    %1490 = vmatpush1.msra.mxu0 %v1471
    %1491 = vmatprep.subr.mxu0 0.0
    %1492 = vmatpush1.msra.mxu0 %v1472
    %1493 = vmatprep.subr.mxu0 0.0
    %1494 = vmatpush1.msra.mxu0 0.0
    %1495 = vmatprep.subr.mxu0 0.0
    %1496 = vmatpush1.msra.mxu0 0.0
    %1497 = vmatprep.subr.mxu0 0.0
    %1498 = vmatpush1.msra.mxu0 0.0
    %1499 = vmatprep.subr.mxu0 0.0
    %1500 = vmatpush1.msra.mxu0 0.0
    %1501 = vmatprep.subr.mxu0 0.0
    %1502 = vmatpush1.msra.mxu0 0.0
    %1503 = vmatprep.subr.mxu0 0.0
    %1504 = vmatpush1.msra.mxu0 0.0
    %1505 = vmatprep.subr.mxu0 0.0
    %1506 = vmatpush1.msra.mxu0 0.0
    %1507 = vmatprep.subr.mxu0 0.0
    %1508 = vmatpush1.msra.mxu0 0.0
    %1509 = vmatprep.subr.mxu0 0.0
    %1510 = vmatpush1.msra.mxu0 0.0
    %1511 = vmatprep.subr.mxu0 0.0
    %1512 = vmatpush1.msra.mxu0 0.0
    %1513 = vmatprep.subr.mxu0 0.0
    %1514 = vmatpush1.msra.mxu0 0.0
    %1515 = vmatprep.subr.mxu0 0.0
    %1516 = vmatpush1.msra.mxu0 0.0
    %1517 = vmatprep.subr.mxu0 0.0
    %1518 = vmatpush1.msra.mxu0 0.0
    %1519 = vmatprep.subr.mxu0 0.0
    %1520 = vmatpush1.msra.mxu0 0.0
    %1521 = vmatprep.subr.mxu0 0.0
    %1522 = vmatpush1.msra.mxu0 0.0
    %1523 = vmatprep.subr.mxu0 0.0
    %1524 = vmatpush1.msra.mxu0 0.0
    %1525 = vmatprep.subr.mxu0 0.0
    %1526 = vmatpush1.msra.mxu0 0.0
    %1527 = vmatprep.subr.mxu0 0.0
    %1528 = vmatpush1.msra.mxu0 0.0
    %1529 = vmatprep.subr.mxu0 0.0
    %1530 = vmatpush1.msra.mxu0 0.0
    %1531 = vmatprep.subr.mxu0 0.0
    %1532 = vmatpush1.msra.mxu0 0.0
    %1533 = vmatprep.subr.mxu0 0.0
    %1534 = vmatpush1.msra.mxu0 0.0
    %1535 = vmatprep.subr.mxu0 0.0
    %1536 = vmatpush1.msra.mxu0 0.0
    %1537 = vmatprep.subr.mxu0 0.0
    %1538 = vmatpush1.msra.mxu0 0.0
    %1539 = vmatprep.subr.mxu0 0.0
    %1540 = vmatpush1.msra.mxu0 0.0
    %1541 = vmatprep.subr.mxu0 0.0
    %1542 = vmatpush1.msra.mxu0 0.0
    %1543 = vmatprep.subr.mxu0 0.0
    %1544 = vmatpush1.msra.mxu0 0.0
    %1545 = vmatprep.subr.mxu0 0.0
    %1546 = vmatpush1.msra.mxu0 0.0
    %1547 = vmatprep.subr.mxu0 0.0
    %1548 = vmatpush1.msra.mxu0 0.0
    %1549 = vmatprep.subr.mxu0 0.0
    %1550 = vmatpush1.msra.mxu0 0.0
    %1551 = vmatprep.subr.mxu0 0.0
    %1552 = vmatpush1.msra.mxu0 0.0
    %1553 = vmatprep.mubr.f32.mxu0 0.0
    %1554 = vmatmul.mubr.f32.gmra.mrb[0].mxu0 %v1478
    %v1555 = vpop.f32.mrb[0].mxu0
    %v1556 = vadd.f32 0.0, %v1555
    %v1557 = vpop.f32.mrb[0].mxu0
    %1558 = vmatprep.mubr.f32.mxu0 0.0
    %1559 = vmatmul.mubr.f32.gmra.mrb[0].mxu0 %v1481
    %v1560 = vpop.f32.mrb[0].mxu0
    %v1561 = vadd.f32 0.0, %v1560
    %v1562 = vpop.f32.mrb[0].mxu0
    %1563 = vmatprep.mubr.f32.mxu0 0.0
    %1564 = vmatmul.mubr.f32.gmra.mrb[0].mxu0 %v1484
    %v1565 = vpop.f32.mrb[0].mxu0
    %v1566 = vadd.f32 0.0, %v1565
    %v1567 = vpop.f32.mrb[0].mxu0
    %1568 = vmatprep.mubr.f32.mxu0 0.0
    %1569 = vmatmul.mubr.f32.gmra.mrb[0].mxu0 %v1487
    %v1570 = vpop.f32.mrb[0].mxu0
    %v1571 = vadd.f32 0.0, %v1570
    %v1572 = vpop.f32.mrb[0].mxu0
    %1573 = vdwg.mxu0
    %v1574 = vld [vmem:[%s11] sm:$0xff]
    %v1575 = vld [vmem:[%s11 + $0x8] sm:$0xff]
    %v1576 = vld [vmem:[%s11 + $0x10] sm:$0xff]
    %v1577 = vld [vmem:[%s11 + $0x18] sm:$0xff]
    %v1578 = vld [vmem:[%s11 + $0x20] sm:$0xff]
    %v1579 = vld [vmem:[%s11 + $0x28] sm:$0xff]
    %v1580 = vld [vmem:[%s11 + $0x30] sm:$0xff]
    %v1581 = vld [vmem:[%s11 + $0x38] sm:$0xff]
    %v1583 = vsel %vm1123, %v1556, 0
    %v1586 = vsel %vm1123, %v1561, 0
    %v1589 = vsel %vm1123, %v1566, 0
    %v1592 = vsel %vm1123, %v1571, 0
    %1594 = vmatprep.subr.mxu0 0.0
    %1595 = vmatpush1.msra.mxu0 %v1574
    %1596 = vmatprep.subr.mxu0 0.0
    %1597 = vmatpush1.msra.mxu0 %v1575
    %1598 = vmatprep.subr.mxu0 0.0
    %1599 = vmatpush1.msra.mxu0 %v1576
    %1600 = vmatprep.subr.mxu0 0.0
    %1601 = vmatpush1.msra.mxu0 %v1577
    %1602 = vmatprep.subr.mxu0 0.0
    %1603 = vmatpush1.msra.mxu0 %v1578
    %1604 = vmatprep.subr.mxu0 0.0
    %1605 = vmatpush1.msra.mxu0 %v1579
    %1606 = vmatprep.subr.mxu0 0.0
    %1607 = vmatpush1.msra.mxu0 %v1580
    %1608 = vmatprep.subr.mxu0 0.0
    %1609 = vmatpush1.msra.mxu0 %v1581
    %1610 = vmatprep.subr.mxu0 0.0
    %1611 = vmatpush1.msra.mxu0 0.0
    %1612 = vmatprep.subr.mxu0 0.0
    %1613 = vmatpush1.msra.mxu0 0.0
    %1614 = vmatprep.subr.mxu0 0.0
    %1615 = vmatpush1.msra.mxu0 0.0
    %1616 = vmatprep.subr.mxu0 0.0
    %1617 = vmatpush1.msra.mxu0 0.0
    %1618 = vmatprep.subr.mxu0 0.0
    %1619 = vmatpush1.msra.mxu0 0.0
    %1620 = vmatprep.subr.mxu0 0.0
    %1621 = vmatpush1.msra.mxu0 0.0
    %1622 = vmatprep.subr.mxu0 0.0
    %1623 = vmatpush1.msra.mxu0 0.0
    %1624 = vmatprep.subr.mxu0 0.0
    %1625 = vmatpush1.msra.mxu0 0.0
    %1626 = vmatprep.subr.mxu0 0.0
    %1627 = vmatpush1.msra.mxu0 0.0
    %1628 = vmatprep.subr.mxu0 0.0
    %1629 = vmatpush1.msra.mxu0 0.0
    %1630 = vmatprep.subr.mxu0 0.0
    %1631 = vmatpush1.msra.mxu0 0.0
    %1632 = vmatprep.subr.mxu0 0.0
    %1633 = vmatpush1.msra.mxu0 0.0
    %1634 = vmatprep.subr.mxu0 0.0
    %1635 = vmatpush1.msra.mxu0 0.0
    %1636 = vmatprep.subr.mxu0 0.0
    %1637 = vmatpush1.msra.mxu0 0.0
    %1638 = vmatprep.subr.mxu0 0.0
    %1639 = vmatpush1.msra.mxu0 0.0
    %1640 = vmatprep.subr.mxu0 0.0
    %1641 = vmatpush1.msra.mxu0 0.0
    %1642 = vmatprep.subr.mxu0 0.0
    %1643 = vmatpush1.msra.mxu0 0.0
    %1644 = vmatprep.subr.mxu0 0.0
    %1645 = vmatpush1.msra.mxu0 0.0
    %1646 = vmatprep.subr.mxu0 0.0
    %1647 = vmatpush1.msra.mxu0 0.0
    %1648 = vmatprep.subr.mxu0 0.0
    %1649 = vmatpush1.msra.mxu0 0.0
    %1650 = vmatprep.subr.mxu0 0.0
    %1651 = vmatpush1.msra.mxu0 0.0
    %1652 = vmatprep.subr.mxu0 0.0
    %1653 = vmatpush1.msra.mxu0 0.0
    %1654 = vmatprep.subr.mxu0 0.0
    %1655 = vmatpush1.msra.mxu0 0.0
    %1656 = vmatprep.subr.mxu0 0.0
    %1657 = vmatpush1.msra.mxu0 0.0
    %1658 = vmatprep.mubr.f32.mxu0 0.0
    %1659 = vmatmul.mubr.f32.gmra.mrb[0].mxu0 %v1583
    %v1660 = vpop.f32.mrb[0].mxu0
    %v1661 = vadd.f32 0.0, %v1660
    %v1662 = vpop.f32.mrb[0].mxu0
    %1663 = vmatprep.mubr.f32.mxu0 0.0
    %1664 = vmatmul.mubr.f32.gmra.mrb[0].mxu0 %v1586
    %v1665 = vpop.f32.mrb[0].mxu0
    %v1666 = vadd.f32 0.0, %v1665
    %v1667 = vpop.f32.mrb[0].mxu0
    %1668 = vmatprep.mubr.f32.mxu0 0.0
    %1669 = vmatmul.mubr.f32.gmra.mrb[0].mxu0 %v1589
    %v1670 = vpop.f32.mrb[0].mxu0
    %v1671 = vadd.f32 0.0, %v1670
    %v1672 = vpop.f32.mrb[0].mxu0
    %1673 = vmatprep.mubr.f32.mxu0 0.0
    %1674 = vmatmul.mubr.f32.gmra.mrb[0].mxu0 %v1592
    %v1675 = vpop.f32.mrb[0].mxu0
    %v1676 = vadd.f32 0.0, %v1675
    %v1677 = vpop.f32.mrb[0].mxu0
    %1678 = vdwg.mxu0
    %v1679 = vld [vmem:[%s12] sm:$0xff]
    %v1680 = vld [vmem:[%s12 + $0x8] sm:$0xff]
    %v1681 = vld [vmem:[%s12 + $0x10] sm:$0xff]
    %v1682 = vld [vmem:[%s12 + $0x18] sm:$0xff]
    %v1684 = vsel %vm857, %v1679, 0
    %v1687 = vsel %vm857, %v1680, 0
    %v1690 = vsel %vm857, %v1681, 0
    %v1693 = vsel %vm857, %v1682, 0
    %1695 = vmatprep.subr.mxu0 0.0
    %1696 = vmatpush1.msra.mxu0 %v1661
    %1697 = vmatprep.subr.mxu0 0.0
    %1698 = vmatpush1.msra.mxu0 %v1666
    %1699 = vmatprep.subr.mxu0 0.0
    %1700 = vmatpush1.msra.mxu0 %v1671
    %1701 = vmatprep.subr.mxu0 0.0
    %1702 = vmatpush1.msra.mxu0 %v1676
    %1703 = vmatprep.subr.mxu0 0.0
    %1704 = vmatpush1.msra.mxu0 0.0
    %1705 = vmatprep.subr.mxu0 0.0
    %1706 = vmatpush1.msra.mxu0 0.0
    %1707 = vmatprep.subr.mxu0 0.0
    %1708 = vmatpush1.msra.mxu0 0.0
    %1709 = vmatprep.subr.mxu0 0.0
    %1710 = vmatpush1.msra.mxu0 0.0
    %1711 = vmatprep.subr.mxu0 0.0
    %1712 = vmatpush1.msra.mxu0 0.0
    %1713 = vmatprep.subr.mxu0 0.0
    %1714 = vmatpush1.msra.mxu0 0.0
    %1715 = vmatprep.subr.mxu0 0.0
    %1716 = vmatpush1.msra.mxu0 0.0
    %1717 = vmatprep.subr.mxu0 0.0
    %1718 = vmatpush1.msra.mxu0 0.0
    %1719 = vmatprep.subr.mxu0 0.0
    %1720 = vmatpush1.msra.mxu0 0.0
    %1721 = vmatprep.subr.mxu0 0.0
    %1722 = vmatpush1.msra.mxu0 0.0
    %1723 = vmatprep.subr.mxu0 0.0
    %1724 = vmatpush1.msra.mxu0 0.0
    %1725 = vmatprep.subr.mxu0 0.0
    %1726 = vmatpush1.msra.mxu0 0.0
    %1727 = vmatprep.subr.mxu0 0.0
    %1728 = vmatpush1.msra.mxu0 0.0
    %1729 = vmatprep.subr.mxu0 0.0
    %1730 = vmatpush1.msra.mxu0 0.0
    %1731 = vmatprep.subr.mxu0 0.0
    %1732 = vmatpush1.msra.mxu0 0.0
    %1733 = vmatprep.subr.mxu0 0.0
    %1734 = vmatpush1.msra.mxu0 0.0
    %1735 = vmatprep.subr.mxu0 0.0
    %1736 = vmatpush1.msra.mxu0 0.0
    %1737 = vmatprep.subr.mxu0 0.0
    %1738 = vmatpush1.msra.mxu0 0.0
    %1739 = vmatprep.subr.mxu0 0.0
    %1740 = vmatpush1.msra.mxu0 0.0
    %1741 = vmatprep.subr.mxu0 0.0
    %1742 = vmatpush1.msra.mxu0 0.0
    %1743 = vmatprep.subr.mxu0 0.0
    %1744 = vmatpush1.msra.mxu0 0.0
    %1745 = vmatprep.subr.mxu0 0.0
    %1746 = vmatpush1.msra.mxu0 0.0
    %1747 = vmatprep.subr.mxu0 0.0
    %1748 = vmatpush1.msra.mxu0 0.0
    %1749 = vmatprep.subr.mxu0 0.0
    %1750 = vmatpush1.msra.mxu0 0.0
    %1751 = vmatprep.subr.mxu0 0.0
    %1752 = vmatpush1.msra.mxu0 0.0
    %1753 = vmatprep.subr.mxu0 0.0
    %1754 = vmatpush1.msra.mxu0 0.0
    %1755 = vmatprep.subr.mxu0 0.0
    %1756 = vmatpush1.msra.mxu0 0.0
    %1757 = vmatprep.subr.mxu0 0.0
    %1758 = vmatpush1.msra.mxu0 0.0
    %1759 = vmatprep.mubr.f32.mxu0 0.0
    %1760 = vmatmul.mubr.f32.gmra.mrb[0].mxu0 %v1684
    %v1761 = vpop.f32.mrb[0].mxu0
    %v1762 = vadd.f32 0.0, %v1761
    %v1763 = vpop.f32.mrb[0].mxu0
    %1764 = vmatprep.mubr.f32.mxu0 0.0
    %1765 = vmatmul.mubr.f32.gmra.mrb[0].mxu0 %v1687
    %v1766 = vpop.f32.mrb[0].mxu0
    %v1767 = vadd.f32 0.0, %v1766
    %v1768 = vpop.f32.mrb[0].mxu0
    %1769 = vmatprep.mubr.f32.mxu0 0.0
    %1770 = vmatmul.mubr.f32.gmra.mrb[0].mxu0 %v1690
    %v1771 = vpop.f32.mrb[0].mxu0
    %v1772 = vadd.f32 0.0, %v1771
    %v1773 = vpop.f32.mrb[0].mxu0
    %1774 = vmatprep.mubr.f32.mxu0 0.0
    %1775 = vmatmul.mubr.f32.gmra.mrb[0].mxu0 %v1693
    %v1776 = vpop.f32.mrb[0].mxu0
    %v1777 = vadd.f32 0.0, %v1776
    %v1778 = vpop.f32.mrb[0].mxu0
    %1779 = vdwg.mxu0
    %v1780 = vld [vmem:[%s13] sm:$0xff]
    %v1781 = vld [vmem:[%s13 + $0x8] sm:$0xff]
    %v1782 = vld [vmem:[%s13 + $0x10] sm:$0xff]
    %v1783 = vld [vmem:[%s13 + $0x18] sm:$0xff]
    %v1784 = vld [vmem:[%s13 + $0x20] sm:$0xff]
    %v1785 = vld [vmem:[%s13 + $0x28] sm:$0xff]
    %v1786 = vld [vmem:[%s13 + $0x30] sm:$0xff]
    %v1787 = vld [vmem:[%s13 + $0x38] sm:$0xff]
    %v1788 = vld [vmem:[%s13 + $0x40] sm:$0xff]
    %v1789 = vld [vmem:[%s13 + $0x48] sm:$0xff]
    %v1790 = vld [vmem:[%s13 + $0x50] sm:$0xff]
    %v1791 = vld [vmem:[%s13 + $0x58] sm:$0xff]
    %v1792 = vld [vmem:[%s13 + $0x60] sm:$0xff]
    %v1793 = vld [vmem:[%s13 + $0x68] sm:$0xff]
    %v1794 = vld [vmem:[%s13 + $0x70] sm:$0xff]
    %v1795 = vld [vmem:[%s13 + $0x78] sm:$0xff]
    %s1796 = scalar_lea.vmem %s12, 32
    %v1797 = vld [vmem:[%s1796] sm:$0xff]
    %v1798 = vld [vmem:[%s1796 + $0x8] sm:$0xff]
    %v1799 = vld [vmem:[%s1796 + $0x10] sm:$0xff]
    %v1800 = vld [vmem:[%s1796 + $0x18] sm:$0xff]
    %v1802 = vsel %vm857, %v1797, 0
    %v1805 = vsel %vm857, %v1798, 0
    %v1808 = vsel %vm857, %v1799, 0
    %v1811 = vsel %vm857, %v1800, 0
    %1813 = vmatprep.subr.mxu0 0.0
    %1814 = vmatpush1.msra.mxu0 %v1661
    %1815 = vmatprep.subr.mxu0 0.0
    %1816 = vmatpush1.msra.mxu0 %v1666
    %1817 = vmatprep.subr.mxu0 0.0
    %1818 = vmatpush1.msra.mxu0 %v1671
    %1819 = vmatprep.subr.mxu0 0.0
    %1820 = vmatpush1.msra.mxu0 %v1676
    %1821 = vmatprep.subr.mxu0 0.0
    %1822 = vmatpush1.msra.mxu0 0.0
    %1823 = vmatprep.subr.mxu0 0.0
    %1824 = vmatpush1.msra.mxu0 0.0
    %1825 = vmatprep.subr.mxu0 0.0
    %1826 = vmatpush1.msra.mxu0 0.0
    %1827 = vmatprep.subr.mxu0 0.0
    %1828 = vmatpush1.msra.mxu0 0.0
    %1829 = vmatprep.subr.mxu0 0.0
    %1830 = vmatpush1.msra.mxu0 0.0
    %1831 = vmatprep.subr.mxu0 0.0
    %1832 = vmatpush1.msra.mxu0 0.0
    %1833 = vmatprep.subr.mxu0 0.0
    %1834 = vmatpush1.msra.mxu0 0.0
    %1835 = vmatprep.subr.mxu0 0.0
    %1836 = vmatpush1.msra.mxu0 0.0
    %1837 = vmatprep.subr.mxu0 0.0
    %1838 = vmatpush1.msra.mxu0 0.0
    %1839 = vmatprep.subr.mxu0 0.0
    %1840 = vmatpush1.msra.mxu0 0.0
    %1841 = vmatprep.subr.mxu0 0.0
    %1842 = vmatpush1.msra.mxu0 0.0
    %1843 = vmatprep.subr.mxu0 0.0
    %1844 = vmatpush1.msra.mxu0 0.0
    %1845 = vmatprep.subr.mxu0 0.0
    %1846 = vmatpush1.msra.mxu0 0.0
    %1847 = vmatprep.subr.mxu0 0.0
    %1848 = vmatpush1.msra.mxu0 0.0
    %1849 = vmatprep.subr.mxu0 0.0
    %1850 = vmatpush1.msra.mxu0 0.0
    %1851 = vmatprep.subr.mxu0 0.0
    %1852 = vmatpush1.msra.mxu0 0.0
    %1853 = vmatprep.subr.mxu0 0.0
    %1854 = vmatpush1.msra.mxu0 0.0
    %1855 = vmatprep.subr.mxu0 0.0
    %1856 = vmatpush1.msra.mxu0 0.0
    %1857 = vmatprep.subr.mxu0 0.0
    %1858 = vmatpush1.msra.mxu0 0.0
    %1859 = vmatprep.subr.mxu0 0.0
    %1860 = vmatpush1.msra.mxu0 0.0
    %1861 = vmatprep.subr.mxu0 0.0
    %1862 = vmatpush1.msra.mxu0 0.0
    %1863 = vmatprep.subr.mxu0 0.0
    %1864 = vmatpush1.msra.mxu0 0.0
    %1865 = vmatprep.subr.mxu0 0.0
    %1866 = vmatpush1.msra.mxu0 0.0
    %1867 = vmatprep.subr.mxu0 0.0
    %1868 = vmatpush1.msra.mxu0 0.0
    %1869 = vmatprep.subr.mxu0 0.0
    %1870 = vmatpush1.msra.mxu0 0.0
    %1871 = vmatprep.subr.mxu0 0.0
    %1872 = vmatpush1.msra.mxu0 0.0
    %1873 = vmatprep.subr.mxu0 0.0
    %1874 = vmatpush1.msra.mxu0 0.0
    %1875 = vmatprep.subr.mxu0 0.0
    %1876 = vmatpush1.msra.mxu0 0.0
    %1877 = vmatprep.mubr.f32.mxu0 0.0
    %1878 = vmatmul.mubr.f32.gmra.mrb[0].mxu0 %v1802
    %v1879 = vpop.f32.mrb[0].mxu0
    %v1880 = vadd.f32 0.0, %v1879
    %v1881 = vpop.f32.mrb[0].mxu0
    %1882 = vmatprep.mubr.f32.mxu0 0.0
    %1883 = vmatmul.mubr.f32.gmra.mrb[0].mxu0 %v1805
    %v1884 = vpop.f32.mrb[0].mxu0
    %v1885 = vadd.f32 0.0, %v1884
    %v1886 = vpop.f32.mrb[0].mxu0
    %1887 = vmatprep.mubr.f32.mxu0 0.0
    %1888 = vmatmul.mubr.f32.gmra.mrb[0].mxu0 %v1808
    %v1889 = vpop.f32.mrb[0].mxu0
    %v1890 = vadd.f32 0.0, %v1889
    %v1891 = vpop.f32.mrb[0].mxu0
    %1892 = vmatprep.mubr.f32.mxu0 0.0
    %1893 = vmatmul.mubr.f32.gmra.mrb[0].mxu0 %v1811
    %v1894 = vpop.f32.mrb[0].mxu0
    %v1895 = vadd.f32 0.0, %v1894
    %v1896 = vpop.f32.mrb[0].mxu0
    %1897 = vdwg.mxu0
    %s1898 = scalar_lea.vmem %s13, 128
    %v1899 = vld [vmem:[%s1898] sm:$0xff]
    %v1900 = vld [vmem:[%s1898 + $0x8] sm:$0xff]
    %v1901 = vld [vmem:[%s1898 + $0x10] sm:$0xff]
    %v1902 = vld [vmem:[%s1898 + $0x18] sm:$0xff]
    %v1903 = vld [vmem:[%s1898 + $0x20] sm:$0xff]
    %v1904 = vld [vmem:[%s1898 + $0x28] sm:$0xff]
    %v1905 = vld [vmem:[%s1898 + $0x30] sm:$0xff]
    %v1906 = vld [vmem:[%s1898 + $0x38] sm:$0xff]
    %v1907 = vld [vmem:[%s1898 + $0x40] sm:$0xff]
    %v1908 = vld [vmem:[%s1898 + $0x48] sm:$0xff]
    %v1909 = vld [vmem:[%s1898 + $0x50] sm:$0xff]
    %v1910 = vld [vmem:[%s1898 + $0x58] sm:$0xff]
    %v1911 = vld [vmem:[%s1898 + $0x60] sm:$0xff]
    %v1912 = vld [vmem:[%s1898 + $0x68] sm:$0xff]
    %v1913 = vld [vmem:[%s1898 + $0x70] sm:$0xff]
    %v1914 = vld [vmem:[%s1898 + $0x78] sm:$0xff]
    %1915 = vmatprep.subr.mxu0 0.0
    %1916 = vmatpush1.msra.mxu0 %v1899
    %1917 = vmatprep.subr.mxu0 0.0
    %1918 = vmatpush1.msra.mxu0 %v1900
    %1919 = vmatprep.subr.mxu0 0.0
    %1920 = vmatpush1.msra.mxu0 %v1901
    %1921 = vmatprep.subr.mxu0 0.0
    %1922 = vmatpush1.msra.mxu0 %v1902
    %1923 = vmatprep.subr.mxu0 0.0
    %1924 = vmatpush1.msra.mxu0 %v1903
    %1925 = vmatprep.subr.mxu0 0.0
    %1926 = vmatpush1.msra.mxu0 %v1904
    %1927 = vmatprep.subr.mxu0 0.0
    %1928 = vmatpush1.msra.mxu0 %v1905
    %1929 = vmatprep.subr.mxu0 0.0
    %1930 = vmatpush1.msra.mxu0 %v1906
    %1931 = vmatprep.subr.mxu0 0.0
    %1932 = vmatpush1.msra.mxu0 %v1907
    %1933 = vmatprep.subr.mxu0 0.0
    %1934 = vmatpush1.msra.mxu0 %v1908
    %1935 = vmatprep.subr.mxu0 0.0
    %1936 = vmatpush1.msra.mxu0 %v1909
    %1937 = vmatprep.subr.mxu0 0.0
    %1938 = vmatpush1.msra.mxu0 %v1910
    %1939 = vmatprep.subr.mxu0 0.0
    %1940 = vmatpush1.msra.mxu0 %v1911
    %1941 = vmatprep.subr.mxu0 0.0
    %1942 = vmatpush1.msra.mxu0 %v1912
    %1943 = vmatprep.subr.mxu0 0.0
    %1944 = vmatpush1.msra.mxu0 %v1913
    %1945 = vmatprep.subr.mxu0 0.0
    %1946 = vmatpush1.msra.mxu0 %v1914
    %1947 = vmatprep.subr.mxu0 0.0
    %1948 = vmatpush1.msra.mxu0 0.0
    %1949 = vmatprep.subr.mxu0 0.0
    %1950 = vmatpush1.msra.mxu0 0.0
    %1951 = vmatprep.subr.mxu0 0.0
    %1952 = vmatpush1.msra.mxu0 0.0
    %1953 = vmatprep.subr.mxu0 0.0
    %1954 = vmatpush1.msra.mxu0 0.0
    %1955 = vmatprep.subr.mxu0 0.0
    %1956 = vmatpush1.msra.mxu0 0.0
    %1957 = vmatprep.subr.mxu0 0.0
    %1958 = vmatpush1.msra.mxu0 0.0
    %1959 = vmatprep.subr.mxu0 0.0
    %1960 = vmatpush1.msra.mxu0 0.0
    %1961 = vmatprep.subr.mxu0 0.0
    %1962 = vmatpush1.msra.mxu0 0.0
    %1963 = vmatprep.subr.mxu0 0.0
    %1964 = vmatpush1.msra.mxu0 0.0
    %1965 = vmatprep.subr.mxu0 0.0
    %1966 = vmatpush1.msra.mxu0 0.0
    %1967 = vmatprep.subr.mxu0 0.0
    %1968 = vmatpush1.msra.mxu0 0.0
    %1969 = vmatprep.subr.mxu0 0.0
    %1970 = vmatpush1.msra.mxu0 0.0
    %1971 = vmatprep.subr.mxu0 0.0
    %1972 = vmatpush1.msra.mxu0 0.0
    %1973 = vmatprep.subr.mxu0 0.0
    %1974 = vmatpush1.msra.mxu0 0.0
    %1975 = vmatprep.subr.mxu0 0.0
    %1976 = vmatpush1.msra.mxu0 0.0
    %1977 = vmatprep.subr.mxu0 0.0
    %1978 = vmatpush1.msra.mxu0 0.0
    %1979 = vmatprep.mubr.f32.mxu0 0.0
    %1980 = vmatmul.mubr.f32.gmra.mrb[0].mxu0 %v1880
    %v1981 = vpop.f32.mrb[0].mxu0
    %v1982 = vadd.f32 0.0, %v1981
    %v1983 = vpop.f32.mrb[0].mxu0
    %1984 = vmatprep.mubr.f32.mxu0 0.0
    %1985 = vmatmul.mubr.f32.gmra.mrb[0].mxu0 %v1885
    %v1986 = vpop.f32.mrb[0].mxu0
    %v1987 = vadd.f32 0.0, %v1986
    %v1988 = vpop.f32.mrb[0].mxu0
    %1989 = vmatprep.mubr.f32.mxu0 0.0
    %1990 = vmatmul.mubr.f32.gmra.mrb[0].mxu0 %v1890
    %v1991 = vpop.f32.mrb[0].mxu0
    %v1992 = vadd.f32 0.0, %v1991
    %v1993 = vpop.f32.mrb[0].mxu0
    %1994 = vmatprep.mubr.f32.mxu0 0.0
    %1995 = vmatmul.mubr.f32.gmra.mrb[0].mxu0 %v1895
    %v1996 = vpop.f32.mrb[0].mxu0
    %v1997 = vadd.f32 0.0, %v1996
    %v1998 = vpop.f32.mrb[0].mxu0
    %1999 = vdwg.mxu0
    %2000 = vmatprep.subr.mxu0 0.0
    %2001 = vmatpush1.msra.mxu0 %v1780
    %2002 = vmatprep.subr.mxu0 0.0
    %2003 = vmatpush1.msra.mxu0 %v1781
    %2004 = vmatprep.subr.mxu0 0.0
    %2005 = vmatpush1.msra.mxu0 %v1782
    %2006 = vmatprep.subr.mxu0 0.0
    %2007 = vmatpush1.msra.mxu0 %v1783
    %2008 = vmatprep.subr.mxu0 0.0
    %2009 = vmatpush1.msra.mxu0 %v1784
    %2010 = vmatprep.subr.mxu0 0.0
    %2011 = vmatpush1.msra.mxu0 %v1785
    %2012 = vmatprep.subr.mxu0 0.0
    %2013 = vmatpush1.msra.mxu0 %v1786
    %2014 = vmatprep.subr.mxu0 0.0
    %2015 = vmatpush1.msra.mxu0 %v1787
    %2016 = vmatprep.subr.mxu0 0.0
    %2017 = vmatpush1.msra.mxu0 %v1788
    %2018 = vmatprep.subr.mxu0 0.0
    %2019 = vmatpush1.msra.mxu0 %v1789
    %2020 = vmatprep.subr.mxu0 0.0
    %2021 = vmatpush1.msra.mxu0 %v1790
    %2022 = vmatprep.subr.mxu0 0.0
    %2023 = vmatpush1.msra.mxu0 %v1791
    %2024 = vmatprep.subr.mxu0 0.0
    %2025 = vmatpush1.msra.mxu0 %v1792
    %2026 = vmatprep.subr.mxu0 0.0
    %2027 = vmatpush1.msra.mxu0 %v1793
    %2028 = vmatprep.subr.mxu0 0.0
    %2029 = vmatpush1.msra.mxu0 %v1794
    %2030 = vmatprep.subr.mxu0 0.0
    %2031 = vmatpush1.msra.mxu0 %v1795
    %2032 = vmatprep.subr.mxu0 0.0
    %2033 = vmatpush1.msra.mxu0 0.0
    %2034 = vmatprep.subr.mxu0 0.0
    %2035 = vmatpush1.msra.mxu0 0.0
    %2036 = vmatprep.subr.mxu0 0.0
    %2037 = vmatpush1.msra.mxu0 0.0
    %2038 = vmatprep.subr.mxu0 0.0
    %2039 = vmatpush1.msra.mxu0 0.0
    %2040 = vmatprep.subr.mxu0 0.0
    %2041 = vmatpush1.msra.mxu0 0.0
    %2042 = vmatprep.subr.mxu0 0.0
    %2043 = vmatpush1.msra.mxu0 0.0
    %2044 = vmatprep.subr.mxu0 0.0
    %2045 = vmatpush1.msra.mxu0 0.0
    %2046 = vmatprep.subr.mxu0 0.0
    %2047 = vmatpush1.msra.mxu0 0.0
    %2048 = vmatprep.subr.mxu0 0.0
    %2049 = vmatpush1.msra.mxu0 0.0
    %2050 = vmatprep.subr.mxu0 0.0
    %2051 = vmatpush1.msra.mxu0 0.0
    %2052 = vmatprep.subr.mxu0 0.0
    %2053 = vmatpush1.msra.mxu0 0.0
    %2054 = vmatprep.subr.mxu0 0.0
    %2055 = vmatpush1.msra.mxu0 0.0
    %2056 = vmatprep.subr.mxu0 0.0
    %2057 = vmatpush1.msra.mxu0 0.0
    %2058 = vmatprep.subr.mxu0 0.0
    %2059 = vmatpush1.msra.mxu0 0.0
    %2060 = vmatprep.subr.mxu0 0.0
    %2061 = vmatpush1.msra.mxu0 0.0
    %2062 = vmatprep.subr.mxu0 0.0
    %2063 = vmatpush1.msra.mxu0 0.0
    %2064 = vmatprep.mubr.f32.mxu0 0.0
    %2065 = vmatmul.mubr.f32.gmra.mrb[0].mxu0 %v1762
    %v2066 = vpop.f32.mrb[0].mxu0
    %v2067 = vadd.f32 %v1982, %v2066
    %v2068 = vpop.f32.mrb[0].mxu0
    %2069 = vmatprep.mubr.f32.mxu0 0.0
    %2070 = vmatmul.mubr.f32.gmra.mrb[0].mxu0 %v1767
    %v2071 = vpop.f32.mrb[0].mxu0
    %v2072 = vadd.f32 %v1987, %v2071
    %v2073 = vpop.f32.mrb[0].mxu0
    %2074 = vmatprep.mubr.f32.mxu0 0.0
    %2075 = vmatmul.mubr.f32.gmra.mrb[0].mxu0 %v1772
    %v2076 = vpop.f32.mrb[0].mxu0
    %v2077 = vadd.f32 %v1992, %v2076
    %v2078 = vpop.f32.mrb[0].mxu0
    %2079 = vmatprep.mubr.f32.mxu0 0.0
    %2080 = vmatmul.mubr.f32.gmra.mrb[0].mxu0 %v1777
    %v2081 = vpop.f32.mrb[0].mxu0
    %v2082 = vadd.f32 %v1997, %v2081
    %v2083 = vpop.f32.mrb[0].mxu0
    %2084 = vdwg.mxu0
    %s2085 = scalar_lea.vmem %s12, 64
    %v2086 = vld [vmem:[%s2085] sm:$0xff]
    %v2087 = vld [vmem:[%s2085 + $0x8] sm:$0xff]
    %v2088 = vld [vmem:[%s2085 + $0x10] sm:$0xff]
    %v2089 = vld [vmem:[%s2085 + $0x18] sm:$0xff]
    %v2091 = vsel %vm857, %v2086, 0
    %v2094 = vsel %vm857, %v2087, 0
    %v2097 = vsel %vm857, %v2088, 0
    %v2100 = vsel %vm857, %v2089, 0
    %2102 = vmatprep.subr.mxu0 0.0
    %2103 = vmatpush1.msra.mxu0 %v1661
    %2104 = vmatprep.subr.mxu0 0.0
    %2105 = vmatpush1.msra.mxu0 %v1666
    %2106 = vmatprep.subr.mxu0 0.0
    %2107 = vmatpush1.msra.mxu0 %v1671
    %2108 = vmatprep.subr.mxu0 0.0
    %2109 = vmatpush1.msra.mxu0 %v1676
    %2110 = vmatprep.subr.mxu0 0.0
    %2111 = vmatpush1.msra.mxu0 0.0
    %2112 = vmatprep.subr.mxu0 0.0
    %2113 = vmatpush1.msra.mxu0 0.0
    %2114 = vmatprep.subr.mxu0 0.0
    %2115 = vmatpush1.msra.mxu0 0.0
    %2116 = vmatprep.subr.mxu0 0.0
    %2117 = vmatpush1.msra.mxu0 0.0
    %2118 = vmatprep.subr.mxu0 0.0
    %2119 = vmatpush1.msra.mxu0 0.0
    %2120 = vmatprep.subr.mxu0 0.0
    %2121 = vmatpush1.msra.mxu0 0.0
    %2122 = vmatprep.subr.mxu0 0.0
    %2123 = vmatpush1.msra.mxu0 0.0
    %2124 = vmatprep.subr.mxu0 0.0
    %2125 = vmatpush1.msra.mxu0 0.0
    %2126 = vmatprep.subr.mxu0 0.0
    %2127 = vmatpush1.msra.mxu0 0.0
    %2128 = vmatprep.subr.mxu0 0.0
    %2129 = vmatpush1.msra.mxu0 0.0
    %2130 = vmatprep.subr.mxu0 0.0
    %2131 = vmatpush1.msra.mxu0 0.0
    %2132 = vmatprep.subr.mxu0 0.0
    %2133 = vmatpush1.msra.mxu0 0.0
    %2134 = vmatprep.subr.mxu0 0.0
    %2135 = vmatpush1.msra.mxu0 0.0
    %2136 = vmatprep.subr.mxu0 0.0
    %2137 = vmatpush1.msra.mxu0 0.0
    %2138 = vmatprep.subr.mxu0 0.0
    %2139 = vmatpush1.msra.mxu0 0.0
    %2140 = vmatprep.subr.mxu0 0.0
    %2141 = vmatpush1.msra.mxu0 0.0
    %2142 = vmatprep.subr.mxu0 0.0
    %2143 = vmatpush1.msra.mxu0 0.0
    %2144 = vmatprep.subr.mxu0 0.0
    %2145 = vmatpush1.msra.mxu0 0.0
    %2146 = vmatprep.subr.mxu0 0.0
    %2147 = vmatpush1.msra.mxu0 0.0
    %2148 = vmatprep.subr.mxu0 0.0
    %2149 = vmatpush1.msra.mxu0 0.0
    %2150 = vmatprep.subr.mxu0 0.0
    %2151 = vmatpush1.msra.mxu0 0.0
    %2152 = vmatprep.subr.mxu0 0.0
    %2153 = vmatpush1.msra.mxu0 0.0
    %2154 = vmatprep.subr.mxu0 0.0
    %2155 = vmatpush1.msra.mxu0 0.0
    %2156 = vmatprep.subr.mxu0 0.0
    %2157 = vmatpush1.msra.mxu0 0.0
    %2158 = vmatprep.subr.mxu0 0.0
    %2159 = vmatpush1.msra.mxu0 0.0
    %2160 = vmatprep.subr.mxu0 0.0
    %2161 = vmatpush1.msra.mxu0 0.0
    %2162 = vmatprep.subr.mxu0 0.0
    %2163 = vmatpush1.msra.mxu0 0.0
    %2164 = vmatprep.subr.mxu0 0.0
    %2165 = vmatpush1.msra.mxu0 0.0
    %2166 = vmatprep.mubr.f32.mxu0 0.0
    %2167 = vmatmul.mubr.f32.gmra.mrb[0].mxu0 %v2091
    %v2168 = vpop.f32.mrb[0].mxu0
    %v2169 = vadd.f32 0.0, %v2168
    %v2170 = vpop.f32.mrb[0].mxu0
    %2171 = vmatprep.mubr.f32.mxu0 0.0
    %2172 = vmatmul.mubr.f32.gmra.mrb[0].mxu0 %v2094
    %v2173 = vpop.f32.mrb[0].mxu0
    %v2174 = vadd.f32 0.0, %v2173
    %v2175 = vpop.f32.mrb[0].mxu0
    %2176 = vmatprep.mubr.f32.mxu0 0.0
    %2177 = vmatmul.mubr.f32.gmra.mrb[0].mxu0 %v2097
    %v2178 = vpop.f32.mrb[0].mxu0
    %v2179 = vadd.f32 0.0, %v2178
    %v2180 = vpop.f32.mrb[0].mxu0
    %2181 = vmatprep.mubr.f32.mxu0 0.0
    %2182 = vmatmul.mubr.f32.gmra.mrb[0].mxu0 %v2100
    %v2183 = vpop.f32.mrb[0].mxu0
    %v2184 = vadd.f32 0.0, %v2183
    %v2185 = vpop.f32.mrb[0].mxu0
    %2186 = vdwg.mxu0
    %s2187 = scalar_lea.vmem %s13, 256
    %v2188 = vld [vmem:[%s2187] sm:$0xff]
    %v2189 = vld [vmem:[%s2187 + $0x8] sm:$0xff]
    %v2190 = vld [vmem:[%s2187 + $0x10] sm:$0xff]
    %v2191 = vld [vmem:[%s2187 + $0x18] sm:$0xff]
    %v2192 = vld [vmem:[%s2187 + $0x20] sm:$0xff]
    %v2193 = vld [vmem:[%s2187 + $0x28] sm:$0xff]
    %v2194 = vld [vmem:[%s2187 + $0x30] sm:$0xff]
    %v2195 = vld [vmem:[%s2187 + $0x38] sm:$0xff]
    %v2196 = vld [vmem:[%s2187 + $0x40] sm:$0xff]
    %v2197 = vld [vmem:[%s2187 + $0x48] sm:$0xff]
    %v2198 = vld [vmem:[%s2187 + $0x50] sm:$0xff]
    %v2199 = vld [vmem:[%s2187 + $0x58] sm:$0xff]
    %v2200 = vld [vmem:[%s2187 + $0x60] sm:$0xff]
    %v2201 = vld [vmem:[%s2187 + $0x68] sm:$0xff]
    %v2202 = vld [vmem:[%s2187 + $0x70] sm:$0xff]
    %v2203 = vld [vmem:[%s2187 + $0x78] sm:$0xff]
    %2204 = vmatprep.subr.mxu0 0.0
    %2205 = vmatpush1.msra.mxu0 %v2188
    %2206 = vmatprep.subr.mxu0 0.0
    %2207 = vmatpush1.msra.mxu0 %v2189
    %2208 = vmatprep.subr.mxu0 0.0
    %2209 = vmatpush1.msra.mxu0 %v2190
    %2210 = vmatprep.subr.mxu0 0.0
    %2211 = vmatpush1.msra.mxu0 %v2191
    %2212 = vmatprep.subr.mxu0 0.0
    %2213 = vmatpush1.msra.mxu0 %v2192
    %2214 = vmatprep.subr.mxu0 0.0
    %2215 = vmatpush1.msra.mxu0 %v2193
    %2216 = vmatprep.subr.mxu0 0.0
    %2217 = vmatpush1.msra.mxu0 %v2194
    %2218 = vmatprep.subr.mxu0 0.0
    %2219 = vmatpush1.msra.mxu0 %v2195
    %2220 = vmatprep.subr.mxu0 0.0
    %2221 = vmatpush1.msra.mxu0 %v2196
    %2222 = vmatprep.subr.mxu0 0.0
    %2223 = vmatpush1.msra.mxu0 %v2197
    %2224 = vmatprep.subr.mxu0 0.0
    %2225 = vmatpush1.msra.mxu0 %v2198
    %2226 = vmatprep.subr.mxu0 0.0
    %2227 = vmatpush1.msra.mxu0 %v2199
    %2228 = vmatprep.subr.mxu0 0.0
    %2229 = vmatpush1.msra.mxu0 %v2200
    %2230 = vmatprep.subr.mxu0 0.0
    %2231 = vmatpush1.msra.mxu0 %v2201
    %2232 = vmatprep.subr.mxu0 0.0
    %2233 = vmatpush1.msra.mxu0 %v2202
    %2234 = vmatprep.subr.mxu0 0.0
    %2235 = vmatpush1.msra.mxu0 %v2203
    %2236 = vmatprep.subr.mxu0 0.0
    %2237 = vmatpush1.msra.mxu0 0.0
    %2238 = vmatprep.subr.mxu0 0.0
    %2239 = vmatpush1.msra.mxu0 0.0
    %2240 = vmatprep.subr.mxu0 0.0
    %2241 = vmatpush1.msra.mxu0 0.0
    %2242 = vmatprep.subr.mxu0 0.0
    %2243 = vmatpush1.msra.mxu0 0.0
    %2244 = vmatprep.subr.mxu0 0.0
    %2245 = vmatpush1.msra.mxu0 0.0
    %2246 = vmatprep.subr.mxu0 0.0
    %2247 = vmatpush1.msra.mxu0 0.0
    %2248 = vmatprep.subr.mxu0 0.0
    %2249 = vmatpush1.msra.mxu0 0.0
    %2250 = vmatprep.subr.mxu0 0.0
    %2251 = vmatpush1.msra.mxu0 0.0
    %2252 = vmatprep.subr.mxu0 0.0
    %2253 = vmatpush1.msra.mxu0 0.0
    %2254 = vmatprep.subr.mxu0 0.0
    %2255 = vmatpush1.msra.mxu0 0.0
    %2256 = vmatprep.subr.mxu0 0.0
    %2257 = vmatpush1.msra.mxu0 0.0
    %2258 = vmatprep.subr.mxu0 0.0
    %2259 = vmatpush1.msra.mxu0 0.0
    %2260 = vmatprep.subr.mxu0 0.0
    %2261 = vmatpush1.msra.mxu0 0.0
    %2262 = vmatprep.subr.mxu0 0.0
    %2263 = vmatpush1.msra.mxu0 0.0
    %2264 = vmatprep.subr.mxu0 0.0
    %2265 = vmatpush1.msra.mxu0 0.0
    %2266 = vmatprep.subr.mxu0 0.0
    %2267 = vmatpush1.msra.mxu0 0.0
    %2268 = vmatprep.mubr.f32.mxu0 0.0
    %2269 = vmatmul.mubr.f32.gmra.mrb[0].mxu0 %v2169
    %v2270 = vpop.f32.mrb[0].mxu0
    %v2271 = vadd.f32 0.0, %v2270
    %v2272 = vpop.f32.mrb[0].mxu0
    %2273 = vmatprep.mubr.f32.mxu0 0.0
    %2274 = vmatmul.mubr.f32.gmra.mrb[0].mxu0 %v2174
    %v2275 = vpop.f32.mrb[0].mxu0
    %v2276 = vadd.f32 0.0, %v2275
    %v2277 = vpop.f32.mrb[0].mxu0
    %2278 = vmatprep.mubr.f32.mxu0 0.0
    %2279 = vmatmul.mubr.f32.gmra.mrb[0].mxu0 %v2179
    %v2280 = vpop.f32.mrb[0].mxu0
    %v2281 = vadd.f32 0.0, %v2280
    %v2282 = vpop.f32.mrb[0].mxu0
    %2283 = vmatprep.mubr.f32.mxu0 0.0
    %2284 = vmatmul.mubr.f32.gmra.mrb[0].mxu0 %v2184
    %v2285 = vpop.f32.mrb[0].mxu0
    %v2286 = vadd.f32 0.0, %v2285
    %v2287 = vpop.f32.mrb[0].mxu0
    %2288 = vdwg.mxu0
    %v2289 = vadd.f32 %v2067, %v2271
    %v2290 = vadd.f32 %v2072, %v2276
    %v2291 = vadd.f32 %v2077, %v2281
    %v2292 = vadd.f32 %v2082, %v2286
    %v2293 = vld [vmem:[%s14] sm:$0x1]
    %v2295 = vlaneseq
    %v2296 = vshrl.u32 %v2295, 7
    %v2297 = vsub.s32 0, %v2296
    %v2298 = vrot.slane %v2293, %v2297
    %v2300 = vadd.f32 %v2289, %v2298
    %v2301 = vadd.f32 %v2290, %v2298
    %v2302 = vadd.f32 %v2291, %v2298
    %v2303 = vadd.f32 %v2292, %v2298
    %v2304 = vtanh.pop %v2300
    %v2305 = vtanh.pop %v2301
    %v2306 = vtanh.pop %v2302
    %v2307 = vtanh.pop %v2303
    %v2308 = vld [vmem:[%s1] sm:$0xff]
    %v2309 = vld [vmem:[%s1 + $0x8] sm:$0xff]
    %v2310 = vld [vmem:[%s1 + $0x10] sm:$0xff]
    %v2311 = vld [vmem:[%s1 + $0x18] sm:$0xff]
    %v2312 = vld [vmem:[%s15] sm:$0xff]
    %v2313 = vld [vmem:[%s15 + $0x8] sm:$0xff]
    %v2314 = vld [vmem:[%s15 + $0x10] sm:$0xff]
    %v2315 = vld [vmem:[%s15 + $0x18] sm:$0xff]
    %v2316 = vld [vmem:[%s16] sm:$0xff]
    %v2317 = vld [vmem:[%s16 + $0x8] sm:$0xff]
    %v2318 = vld [vmem:[%s16 + $0x10] sm:$0xff]
    %v2319 = vld [vmem:[%s16 + $0x18] sm:$0xff]
    %v2321 = vsel %vm857, %v2316, 0
    %v2324 = vsel %vm857, %v2317, 0
    %v2327 = vsel %vm857, %v2318, 0
    %v2330 = vsel %vm857, %v2319, 0
    %2332 = vmatprep.subr.mxu0 0.0
    %2333 = vmatpush1.msra.mxu0 %v2304
    %2334 = vmatprep.subr.mxu0 0.0
    %2335 = vmatpush1.msra.mxu0 %v2305
    %2336 = vmatprep.subr.mxu0 0.0
    %2337 = vmatpush1.msra.mxu0 %v2306
    %2338 = vmatprep.subr.mxu0 0.0
    %2339 = vmatpush1.msra.mxu0 %v2307
    %2340 = vmatprep.subr.mxu0 0.0
    %2341 = vmatpush1.msra.mxu0 0.0
    %2342 = vmatprep.subr.mxu0 0.0
    %2343 = vmatpush1.msra.mxu0 0.0
    %2344 = vmatprep.subr.mxu0 0.0
    %2345 = vmatpush1.msra.mxu0 0.0
    %2346 = vmatprep.subr.mxu0 0.0
    %2347 = vmatpush1.msra.mxu0 0.0
    %2348 = vmatprep.subr.mxu0 0.0
    %2349 = vmatpush1.msra.mxu0 0.0
    %2350 = vmatprep.subr.mxu0 0.0
    %2351 = vmatpush1.msra.mxu0 0.0
    %2352 = vmatprep.subr.mxu0 0.0
    %2353 = vmatpush1.msra.mxu0 0.0
    %2354 = vmatprep.subr.mxu0 0.0
    %2355 = vmatpush1.msra.mxu0 0.0
    %2356 = vmatprep.subr.mxu0 0.0
    %2357 = vmatpush1.msra.mxu0 0.0
    %2358 = vmatprep.subr.mxu0 0.0
    %2359 = vmatpush1.msra.mxu0 0.0
    %2360 = vmatprep.subr.mxu0 0.0
    %2361 = vmatpush1.msra.mxu0 0.0
    %2362 = vmatprep.subr.mxu0 0.0
    %2363 = vmatpush1.msra.mxu0 0.0
    %2364 = vmatprep.subr.mxu0 0.0
    %2365 = vmatpush1.msra.mxu0 0.0
    %2366 = vmatprep.subr.mxu0 0.0
    %2367 = vmatpush1.msra.mxu0 0.0
    %2368 = vmatprep.subr.mxu0 0.0
    %2369 = vmatpush1.msra.mxu0 0.0
    %2370 = vmatprep.subr.mxu0 0.0
    %2371 = vmatpush1.msra.mxu0 0.0
    %2372 = vmatprep.subr.mxu0 0.0
    %2373 = vmatpush1.msra.mxu0 0.0
    %2374 = vmatprep.subr.mxu0 0.0
    %2375 = vmatpush1.msra.mxu0 0.0
    %2376 = vmatprep.subr.mxu0 0.0
    %2377 = vmatpush1.msra.mxu0 0.0
    %2378 = vmatprep.subr.mxu0 0.0
    %2379 = vmatpush1.msra.mxu0 0.0
    %2380 = vmatprep.subr.mxu0 0.0
    %2381 = vmatpush1.msra.mxu0 0.0
    %2382 = vmatprep.subr.mxu0 0.0
    %2383 = vmatpush1.msra.mxu0 0.0
    %2384 = vmatprep.subr.mxu0 0.0
    %2385 = vmatpush1.msra.mxu0 0.0
    %2386 = vmatprep.subr.mxu0 0.0
    %2387 = vmatpush1.msra.mxu0 0.0
    %2388 = vmatprep.subr.mxu0 0.0
    %2389 = vmatpush1.msra.mxu0 0.0
    %2390 = vmatprep.subr.mxu0 0.0
    %2391 = vmatpush1.msra.mxu0 0.0
    %2392 = vmatprep.subr.mxu0 0.0
    %2393 = vmatpush1.msra.mxu0 0.0
    %2394 = vmatprep.subr.mxu0 0.0
    %2395 = vmatpush1.msra.mxu0 0.0
    %2396 = vmatprep.mubr.f32.mxu0 0.0
    %2397 = vmatmul.mubr.f32.gmra.mrb[0].mxu0 %v2321
    %v2398 = vpop.f32.mrb[0].mxu0
    %v2399 = vadd.f32 0.0, %v2398
    %v2400 = vpop.f32.mrb[0].mxu0
    %2401 = vmatprep.mubr.f32.mxu0 0.0
    %2402 = vmatmul.mubr.f32.gmra.mrb[0].mxu0 %v2324
    %v2403 = vpop.f32.mrb[0].mxu0
    %v2404 = vadd.f32 0.0, %v2403
    %v2405 = vpop.f32.mrb[0].mxu0
    %2406 = vmatprep.mubr.f32.mxu0 0.0
    %2407 = vmatmul.mubr.f32.gmra.mrb[0].mxu0 %v2327
    %v2408 = vpop.f32.mrb[0].mxu0
    %v2409 = vadd.f32 0.0, %v2408
    %v2410 = vpop.f32.mrb[0].mxu0
    %2411 = vmatprep.mubr.f32.mxu0 0.0
    %2412 = vmatmul.mubr.f32.gmra.mrb[0].mxu0 %v2330
    %v2413 = vpop.f32.mrb[0].mxu0
    %v2414 = vadd.f32 0.0, %v2413
    %v2415 = vpop.f32.mrb[0].mxu0
    %2416 = vdwg.mxu0
    %v2418 = vsel %vm857, %v2312, 0
    %v2421 = vsel %vm857, %v2313, 0
    %v2424 = vsel %vm857, %v2314, 0
    %v2427 = vsel %vm857, %v2315, 0
    %2429 = vmatprep.subr.mxu0 0.0
    %2430 = vmatpush1.msra.mxu0 %v2308
    %2431 = vmatprep.subr.mxu0 0.0
    %2432 = vmatpush1.msra.mxu0 %v2309
    %2433 = vmatprep.subr.mxu0 0.0
    %2434 = vmatpush1.msra.mxu0 %v2310
    %2435 = vmatprep.subr.mxu0 0.0
    %2436 = vmatpush1.msra.mxu0 %v2311
    %2437 = vmatprep.subr.mxu0 0.0
    %2438 = vmatpush1.msra.mxu0 0.0
    %2439 = vmatprep.subr.mxu0 0.0
    %2440 = vmatpush1.msra.mxu0 0.0
    %2441 = vmatprep.subr.mxu0 0.0
    %2442 = vmatpush1.msra.mxu0 0.0
    %2443 = vmatprep.subr.mxu0 0.0
    %2444 = vmatpush1.msra.mxu0 0.0
    %2445 = vmatprep.subr.mxu0 0.0
    %2446 = vmatpush1.msra.mxu0 0.0
    %2447 = vmatprep.subr.mxu0 0.0
    %2448 = vmatpush1.msra.mxu0 0.0
    %2449 = vmatprep.subr.mxu0 0.0
    %2450 = vmatpush1.msra.mxu0 0.0
    %2451 = vmatprep.subr.mxu0 0.0
    %2452 = vmatpush1.msra.mxu0 0.0
    %2453 = vmatprep.subr.mxu0 0.0
    %2454 = vmatpush1.msra.mxu0 0.0
    %2455 = vmatprep.subr.mxu0 0.0
    %2456 = vmatpush1.msra.mxu0 0.0
    %2457 = vmatprep.subr.mxu0 0.0
    %2458 = vmatpush1.msra.mxu0 0.0
    %2459 = vmatprep.subr.mxu0 0.0
    %2460 = vmatpush1.msra.mxu0 0.0
    %2461 = vmatprep.subr.mxu0 0.0
    %2462 = vmatpush1.msra.mxu0 0.0
    %2463 = vmatprep.subr.mxu0 0.0
    %2464 = vmatpush1.msra.mxu0 0.0
    %2465 = vmatprep.subr.mxu0 0.0
    %2466 = vmatpush1.msra.mxu0 0.0
    %2467 = vmatprep.subr.mxu0 0.0
    %2468 = vmatpush1.msra.mxu0 0.0
    %2469 = vmatprep.subr.mxu0 0.0
    %2470 = vmatpush1.msra.mxu0 0.0
    %2471 = vmatprep.subr.mxu0 0.0
    %2472 = vmatpush1.msra.mxu0 0.0
    %2473 = vmatprep.subr.mxu0 0.0
    %2474 = vmatpush1.msra.mxu0 0.0
    %2475 = vmatprep.subr.mxu0 0.0
    %2476 = vmatpush1.msra.mxu0 0.0
    %2477 = vmatprep.subr.mxu0 0.0
    %2478 = vmatpush1.msra.mxu0 0.0
    %2479 = vmatprep.subr.mxu0 0.0
    %2480 = vmatpush1.msra.mxu0 0.0
    %2481 = vmatprep.subr.mxu0 0.0
    %2482 = vmatpush1.msra.mxu0 0.0
    %2483 = vmatprep.subr.mxu0 0.0
    %2484 = vmatpush1.msra.mxu0 0.0
    %2485 = vmatprep.subr.mxu0 0.0
    %2486 = vmatpush1.msra.mxu0 0.0
    %2487 = vmatprep.subr.mxu0 0.0
    %2488 = vmatpush1.msra.mxu0 0.0
    %2489 = vmatprep.subr.mxu0 0.0
    %2490 = vmatpush1.msra.mxu0 0.0
    %2491 = vmatprep.subr.mxu0 0.0
    %2492 = vmatpush1.msra.mxu0 0.0
    %2493 = vmatprep.mubr.f32.mxu0 0.0
    %2494 = vmatmul.mubr.f32.gmra.mrb[0].mxu0 %v2418
    %v2495 = vpop.f32.mrb[0].mxu0
    %v2496 = vadd.f32 %v2399, %v2495
    %v2497 = vpop.f32.mrb[0].mxu0
    %2498 = vmatprep.mubr.f32.mxu0 0.0
    %2499 = vmatmul.mubr.f32.gmra.mrb[0].mxu0 %v2421
    %v2500 = vpop.f32.mrb[0].mxu0
    %v2501 = vadd.f32 %v2404, %v2500
    %v2502 = vpop.f32.mrb[0].mxu0
    %2503 = vmatprep.mubr.f32.mxu0 0.0
    %2504 = vmatmul.mubr.f32.gmra.mrb[0].mxu0 %v2424
    %v2505 = vpop.f32.mrb[0].mxu0
    %v2506 = vadd.f32 %v2409, %v2505
    %v2507 = vpop.f32.mrb[0].mxu0
    %2508 = vmatprep.mubr.f32.mxu0 0.0
    %2509 = vmatmul.mubr.f32.gmra.mrb[0].mxu0 %v2427
    %v2510 = vpop.f32.mrb[0].mxu0
    %v2511 = vadd.f32 %v2414, %v2510
    %v2512 = vpop.f32.mrb[0].mxu0
    %2513 = vdwg.mxu0
    %v2514 = vld [vmem:[%s17] sm:$0xff]
    %v2515 = vld [vmem:[%s17 + $0x8] sm:$0xff]
    %v2516 = vld [vmem:[%s17 + $0x10] sm:$0xff]
    %v2517 = vld [vmem:[%s17 + $0x18] sm:$0xff]
    %v2518 = vld [vmem:[%s17 + $0x20] sm:$0xff]
    %v2519 = vld [vmem:[%s17 + $0x28] sm:$0xff]
    %v2520 = vld [vmem:[%s17 + $0x30] sm:$0xff]
    %v2521 = vld [vmem:[%s17 + $0x38] sm:$0xff]
    %s2522 = scalar_lea.vmem %s15, 32
    %v2523 = vld [vmem:[%s2522] sm:$0xff]
    %v2524 = vld [vmem:[%s2522 + $0x8] sm:$0xff]
    %v2525 = vld [vmem:[%s2522 + $0x10] sm:$0xff]
    %v2526 = vld [vmem:[%s2522 + $0x18] sm:$0xff]
    %s2527 = scalar_lea.vmem %s16, 32
    %v2528 = vld [vmem:[%s2527] sm:$0xff]
    %v2529 = vld [vmem:[%s2527 + $0x8] sm:$0xff]
    %v2530 = vld [vmem:[%s2527 + $0x10] sm:$0xff]
    %v2531 = vld [vmem:[%s2527 + $0x18] sm:$0xff]
    %v2533 = vsel %vm857, %v2528, 0
    %v2536 = vsel %vm857, %v2529, 0
    %v2539 = vsel %vm857, %v2530, 0
    %v2542 = vsel %vm857, %v2531, 0
    %2544 = vmatprep.subr.mxu0 0.0
    %2545 = vmatpush1.msra.mxu0 %v2304
    %2546 = vmatprep.subr.mxu0 0.0
    %2547 = vmatpush1.msra.mxu0 %v2305
    %2548 = vmatprep.subr.mxu0 0.0
    %2549 = vmatpush1.msra.mxu0 %v2306
    %2550 = vmatprep.subr.mxu0 0.0
    %2551 = vmatpush1.msra.mxu0 %v2307
    %2552 = vmatprep.subr.mxu0 0.0
    %2553 = vmatpush1.msra.mxu0 0.0
    %2554 = vmatprep.subr.mxu0 0.0
    %2555 = vmatpush1.msra.mxu0 0.0
    %2556 = vmatprep.subr.mxu0 0.0
    %2557 = vmatpush1.msra.mxu0 0.0
    %2558 = vmatprep.subr.mxu0 0.0
    %2559 = vmatpush1.msra.mxu0 0.0
    %2560 = vmatprep.subr.mxu0 0.0
    %2561 = vmatpush1.msra.mxu0 0.0
    %2562 = vmatprep.subr.mxu0 0.0
    %2563 = vmatpush1.msra.mxu0 0.0
    %2564 = vmatprep.subr.mxu0 0.0
    %2565 = vmatpush1.msra.mxu0 0.0
    %2566 = vmatprep.subr.mxu0 0.0
    %2567 = vmatpush1.msra.mxu0 0.0
    %2568 = vmatprep.subr.mxu0 0.0
    %2569 = vmatpush1.msra.mxu0 0.0
    %2570 = vmatprep.subr.mxu0 0.0
    %2571 = vmatpush1.msra.mxu0 0.0
    %2572 = vmatprep.subr.mxu0 0.0
    %2573 = vmatpush1.msra.mxu0 0.0
    %2574 = vmatprep.subr.mxu0 0.0
    %2575 = vmatpush1.msra.mxu0 0.0
    %2576 = vmatprep.subr.mxu0 0.0
    %2577 = vmatpush1.msra.mxu0 0.0
    %2578 = vmatprep.subr.mxu0 0.0
    %2579 = vmatpush1.msra.mxu0 0.0
    %2580 = vmatprep.subr.mxu0 0.0
    %2581 = vmatpush1.msra.mxu0 0.0
    %2582 = vmatprep.subr.mxu0 0.0
    %2583 = vmatpush1.msra.mxu0 0.0
    %2584 = vmatprep.subr.mxu0 0.0
    %2585 = vmatpush1.msra.mxu0 0.0
    %2586 = vmatprep.subr.mxu0 0.0
    %2587 = vmatpush1.msra.mxu0 0.0
    %2588 = vmatprep.subr.mxu0 0.0
    %2589 = vmatpush1.msra.mxu0 0.0
    %2590 = vmatprep.subr.mxu0 0.0
    %2591 = vmatpush1.msra.mxu0 0.0
    %2592 = vmatprep.subr.mxu0 0.0
    %2593 = vmatpush1.msra.mxu0 0.0
    %2594 = vmatprep.subr.mxu0 0.0
    %2595 = vmatpush1.msra.mxu0 0.0
    %2596 = vmatprep.subr.mxu0 0.0
    %2597 = vmatpush1.msra.mxu0 0.0
    %2598 = vmatprep.subr.mxu0 0.0
    %2599 = vmatpush1.msra.mxu0 0.0
    %2600 = vmatprep.subr.mxu0 0.0
    %2601 = vmatpush1.msra.mxu0 0.0
    %2602 = vmatprep.subr.mxu0 0.0
    %2603 = vmatpush1.msra.mxu0 0.0
    %2604 = vmatprep.subr.mxu0 0.0
    %2605 = vmatpush1.msra.mxu0 0.0
    %2606 = vmatprep.subr.mxu0 0.0
    %2607 = vmatpush1.msra.mxu0 0.0
    %2608 = vmatprep.mubr.f32.mxu0 0.0
    %2609 = vmatmul.mubr.f32.gmra.mrb[0].mxu0 %v2533
    %v2610 = vpop.f32.mrb[0].mxu0
    %v2611 = vadd.f32 0.0, %v2610
    %v2612 = vpop.f32.mrb[0].mxu0
    %2613 = vmatprep.mubr.f32.mxu0 0.0
    %2614 = vmatmul.mubr.f32.gmra.mrb[0].mxu0 %v2536
    %v2615 = vpop.f32.mrb[0].mxu0
    %v2616 = vadd.f32 0.0, %v2615
    %v2617 = vpop.f32.mrb[0].mxu0
    %2618 = vmatprep.mubr.f32.mxu0 0.0
    %2619 = vmatmul.mubr.f32.gmra.mrb[0].mxu0 %v2539
    %v2620 = vpop.f32.mrb[0].mxu0
    %v2621 = vadd.f32 0.0, %v2620
    %v2622 = vpop.f32.mrb[0].mxu0
    %2623 = vmatprep.mubr.f32.mxu0 0.0
    %2624 = vmatmul.mubr.f32.gmra.mrb[0].mxu0 %v2542
    %v2625 = vpop.f32.mrb[0].mxu0
    %v2626 = vadd.f32 0.0, %v2625
    %v2627 = vpop.f32.mrb[0].mxu0
    %2628 = vdwg.mxu0
    %v2630 = vsel %vm857, %v2523, 0
    %v2633 = vsel %vm857, %v2524, 0
    %v2636 = vsel %vm857, %v2525, 0
    %v2639 = vsel %vm857, %v2526, 0
    %2641 = vmatprep.subr.mxu0 0.0
    %2642 = vmatpush1.msra.mxu0 %v2308
    %2643 = vmatprep.subr.mxu0 0.0
    %2644 = vmatpush1.msra.mxu0 %v2309
    %2645 = vmatprep.subr.mxu0 0.0
    %2646 = vmatpush1.msra.mxu0 %v2310
    %2647 = vmatprep.subr.mxu0 0.0
    %2648 = vmatpush1.msra.mxu0 %v2311
    %2649 = vmatprep.subr.mxu0 0.0
    %2650 = vmatpush1.msra.mxu0 0.0
    %2651 = vmatprep.subr.mxu0 0.0
    %2652 = vmatpush1.msra.mxu0 0.0
    %2653 = vmatprep.subr.mxu0 0.0
    %2654 = vmatpush1.msra.mxu0 0.0
    %2655 = vmatprep.subr.mxu0 0.0
    %2656 = vmatpush1.msra.mxu0 0.0
    %2657 = vmatprep.subr.mxu0 0.0
    %2658 = vmatpush1.msra.mxu0 0.0
    %2659 = vmatprep.subr.mxu0 0.0
    %2660 = vmatpush1.msra.mxu0 0.0
    %2661 = vmatprep.subr.mxu0 0.0
    %2662 = vmatpush1.msra.mxu0 0.0
    %2663 = vmatprep.subr.mxu0 0.0
    %2664 = vmatpush1.msra.mxu0 0.0
    %2665 = vmatprep.subr.mxu0 0.0
    %2666 = vmatpush1.msra.mxu0 0.0
    %2667 = vmatprep.subr.mxu0 0.0
    %2668 = vmatpush1.msra.mxu0 0.0
    %2669 = vmatprep.subr.mxu0 0.0
    %2670 = vmatpush1.msra.mxu0 0.0
    %2671 = vmatprep.subr.mxu0 0.0
    %2672 = vmatpush1.msra.mxu0 0.0
    %2673 = vmatprep.subr.mxu0 0.0
    %2674 = vmatpush1.msra.mxu0 0.0
    %2675 = vmatprep.subr.mxu0 0.0
    %2676 = vmatpush1.msra.mxu0 0.0
    %2677 = vmatprep.subr.mxu0 0.0
    %2678 = vmatpush1.msra.mxu0 0.0
    %2679 = vmatprep.subr.mxu0 0.0
    %2680 = vmatpush1.msra.mxu0 0.0
    %2681 = vmatprep.subr.mxu0 0.0
    %2682 = vmatpush1.msra.mxu0 0.0
    %2683 = vmatprep.subr.mxu0 0.0
    %2684 = vmatpush1.msra.mxu0 0.0
    %2685 = vmatprep.subr.mxu0 0.0
    %2686 = vmatpush1.msra.mxu0 0.0
    %2687 = vmatprep.subr.mxu0 0.0
    %2688 = vmatpush1.msra.mxu0 0.0
    %2689 = vmatprep.subr.mxu0 0.0
    %2690 = vmatpush1.msra.mxu0 0.0
    %2691 = vmatprep.subr.mxu0 0.0
    %2692 = vmatpush1.msra.mxu0 0.0
    %2693 = vmatprep.subr.mxu0 0.0
    %2694 = vmatpush1.msra.mxu0 0.0
    %2695 = vmatprep.subr.mxu0 0.0
    %2696 = vmatpush1.msra.mxu0 0.0
    %2697 = vmatprep.subr.mxu0 0.0
    %2698 = vmatpush1.msra.mxu0 0.0
    %2699 = vmatprep.subr.mxu0 0.0
    %2700 = vmatpush1.msra.mxu0 0.0
    %2701 = vmatprep.subr.mxu0 0.0
    %2702 = vmatpush1.msra.mxu0 0.0
    %2703 = vmatprep.subr.mxu0 0.0
    %2704 = vmatpush1.msra.mxu0 0.0
    %2705 = vmatprep.mubr.f32.mxu0 0.0
    %2706 = vmatmul.mubr.f32.gmra.mrb[0].mxu0 %v2630
    %v2707 = vpop.f32.mrb[0].mxu0
    %v2708 = vadd.f32 %v2611, %v2707
    %v2709 = vpop.f32.mrb[0].mxu0
    %2710 = vmatprep.mubr.f32.mxu0 0.0
    %2711 = vmatmul.mubr.f32.gmra.mrb[0].mxu0 %v2633
    %v2712 = vpop.f32.mrb[0].mxu0
    %v2713 = vadd.f32 %v2616, %v2712
    %v2714 = vpop.f32.mrb[0].mxu0
    %2715 = vmatprep.mubr.f32.mxu0 0.0
    %2716 = vmatmul.mubr.f32.gmra.mrb[0].mxu0 %v2636
    %v2717 = vpop.f32.mrb[0].mxu0
    %v2718 = vadd.f32 %v2621, %v2717
    %v2719 = vpop.f32.mrb[0].mxu0
    %2720 = vmatprep.mubr.f32.mxu0 0.0
    %2721 = vmatmul.mubr.f32.gmra.mrb[0].mxu0 %v2639
    %v2722 = vpop.f32.mrb[0].mxu0
    %v2723 = vadd.f32 %v2626, %v2722
    %v2724 = vpop.f32.mrb[0].mxu0
    %2725 = vdwg.mxu0
    %s2726 = scalar_lea.vmem %s17, 64
    %v2727 = vld [vmem:[%s2726] sm:$0xff]
    %v2728 = vld [vmem:[%s2726 + $0x8] sm:$0xff]
    %v2729 = vld [vmem:[%s2726 + $0x10] sm:$0xff]
    %v2730 = vld [vmem:[%s2726 + $0x18] sm:$0xff]
    %v2731 = vld [vmem:[%s2726 + $0x20] sm:$0xff]
    %v2732 = vld [vmem:[%s2726 + $0x28] sm:$0xff]
    %v2733 = vld [vmem:[%s2726 + $0x30] sm:$0xff]
    %v2734 = vld [vmem:[%s2726 + $0x38] sm:$0xff]
    %v2736 = vsel %vm1123, %v2708, 0
    %v2739 = vsel %vm1123, %v2713, 0
    %v2742 = vsel %vm1123, %v2718, 0
    %v2745 = vsel %vm1123, %v2723, 0
    %2747 = vmatprep.subr.mxu0 0.0
    %2748 = vmatpush1.msra.mxu0 %v2727
    %2749 = vmatprep.subr.mxu0 0.0
    %2750 = vmatpush1.msra.mxu0 %v2728
    %2751 = vmatprep.subr.mxu0 0.0
    %2752 = vmatpush1.msra.mxu0 %v2729
    %2753 = vmatprep.subr.mxu0 0.0
    %2754 = vmatpush1.msra.mxu0 %v2730
    %2755 = vmatprep.subr.mxu0 0.0
    %2756 = vmatpush1.msra.mxu0 %v2731
    %2757 = vmatprep.subr.mxu0 0.0
    %2758 = vmatpush1.msra.mxu0 %v2732
    %2759 = vmatprep.subr.mxu0 0.0
    %2760 = vmatpush1.msra.mxu0 %v2733
    %2761 = vmatprep.subr.mxu0 0.0
    %2762 = vmatpush1.msra.mxu0 %v2734
    %2763 = vmatprep.subr.mxu0 0.0
    %2764 = vmatpush1.msra.mxu0 0.0
    %2765 = vmatprep.subr.mxu0 0.0
    %2766 = vmatpush1.msra.mxu0 0.0
    %2767 = vmatprep.subr.mxu0 0.0
    %2768 = vmatpush1.msra.mxu0 0.0
    %2769 = vmatprep.subr.mxu0 0.0
    %2770 = vmatpush1.msra.mxu0 0.0
    %2771 = vmatprep.subr.mxu0 0.0
    %2772 = vmatpush1.msra.mxu0 0.0
    %2773 = vmatprep.subr.mxu0 0.0
    %2774 = vmatpush1.msra.mxu0 0.0
    %2775 = vmatprep.subr.mxu0 0.0
    %2776 = vmatpush1.msra.mxu0 0.0
    %2777 = vmatprep.subr.mxu0 0.0
    %2778 = vmatpush1.msra.mxu0 0.0
    %2779 = vmatprep.subr.mxu0 0.0
    %2780 = vmatpush1.msra.mxu0 0.0
    %2781 = vmatprep.subr.mxu0 0.0
    %2782 = vmatpush1.msra.mxu0 0.0
    %2783 = vmatprep.subr.mxu0 0.0
    %2784 = vmatpush1.msra.mxu0 0.0
    %2785 = vmatprep.subr.mxu0 0.0
    %2786 = vmatpush1.msra.mxu0 0.0
    %2787 = vmatprep.subr.mxu0 0.0
    %2788 = vmatpush1.msra.mxu0 0.0
    %2789 = vmatprep.subr.mxu0 0.0
    %2790 = vmatpush1.msra.mxu0 0.0
    %2791 = vmatprep.subr.mxu0 0.0
    %2792 = vmatpush1.msra.mxu0 0.0
    %2793 = vmatprep.subr.mxu0 0.0
    %2794 = vmatpush1.msra.mxu0 0.0
    %2795 = vmatprep.subr.mxu0 0.0
    %2796 = vmatpush1.msra.mxu0 0.0
    %2797 = vmatprep.subr.mxu0 0.0
    %2798 = vmatpush1.msra.mxu0 0.0
    %2799 = vmatprep.subr.mxu0 0.0
    %2800 = vmatpush1.msra.mxu0 0.0
    %2801 = vmatprep.subr.mxu0 0.0
    %2802 = vmatpush1.msra.mxu0 0.0
    %2803 = vmatprep.subr.mxu0 0.0
    %2804 = vmatpush1.msra.mxu0 0.0
    %2805 = vmatprep.subr.mxu0 0.0
    %2806 = vmatpush1.msra.mxu0 0.0
    %2807 = vmatprep.subr.mxu0 0.0
    %2808 = vmatpush1.msra.mxu0 0.0
    %2809 = vmatprep.subr.mxu0 0.0
    %2810 = vmatpush1.msra.mxu0 0.0
    %2811 = vmatprep.mubr.f32.mxu0 0.0
    %2812 = vmatmul.mubr.f32.gmra.mrb[0].mxu0 %v2736
    %v2813 = vpop.f32.mrb[0].mxu0
    %v2814 = vadd.f32 0.0, %v2813
    %v2815 = vpop.f32.mrb[0].mxu0
    %2816 = vmatprep.mubr.f32.mxu0 0.0
    %2817 = vmatmul.mubr.f32.gmra.mrb[0].mxu0 %v2739
    %v2818 = vpop.f32.mrb[0].mxu0
    %v2819 = vadd.f32 0.0, %v2818
    %v2820 = vpop.f32.mrb[0].mxu0
    %2821 = vmatprep.mubr.f32.mxu0 0.0
    %2822 = vmatmul.mubr.f32.gmra.mrb[0].mxu0 %v2742
    %v2823 = vpop.f32.mrb[0].mxu0
    %v2824 = vadd.f32 0.0, %v2823
    %v2825 = vpop.f32.mrb[0].mxu0
    %2826 = vmatprep.mubr.f32.mxu0 0.0
    %2827 = vmatmul.mubr.f32.gmra.mrb[0].mxu0 %v2745
    %v2828 = vpop.f32.mrb[0].mxu0
    %v2829 = vadd.f32 0.0, %v2828
    %v2830 = vpop.f32.mrb[0].mxu0
    %2831 = vdwg.mxu0
    %v2833 = vsel %vm1123, %v2496, 0
    %v2836 = vsel %vm1123, %v2501, 0
    %v2839 = vsel %vm1123, %v2506, 0
    %v2842 = vsel %vm1123, %v2511, 0
    %2844 = vmatprep.subr.mxu0 0.0
    %2845 = vmatpush1.msra.mxu0 %v2514
    %2846 = vmatprep.subr.mxu0 0.0
    %2847 = vmatpush1.msra.mxu0 %v2515
    %2848 = vmatprep.subr.mxu0 0.0
    %2849 = vmatpush1.msra.mxu0 %v2516
    %2850 = vmatprep.subr.mxu0 0.0
    %2851 = vmatpush1.msra.mxu0 %v2517
    %2852 = vmatprep.subr.mxu0 0.0
    %2853 = vmatpush1.msra.mxu0 %v2518
    %2854 = vmatprep.subr.mxu0 0.0
    %2855 = vmatpush1.msra.mxu0 %v2519
    %2856 = vmatprep.subr.mxu0 0.0
    %2857 = vmatpush1.msra.mxu0 %v2520
    %2858 = vmatprep.subr.mxu0 0.0
    %2859 = vmatpush1.msra.mxu0 %v2521
    %2860 = vmatprep.subr.mxu0 0.0
    %2861 = vmatpush1.msra.mxu0 0.0
    %2862 = vmatprep.subr.mxu0 0.0
    %2863 = vmatpush1.msra.mxu0 0.0
    %2864 = vmatprep.subr.mxu0 0.0
    %2865 = vmatpush1.msra.mxu0 0.0
    %2866 = vmatprep.subr.mxu0 0.0
    %2867 = vmatpush1.msra.mxu0 0.0
    %2868 = vmatprep.subr.mxu0 0.0
    %2869 = vmatpush1.msra.mxu0 0.0
    %2870 = vmatprep.subr.mxu0 0.0
    %2871 = vmatpush1.msra.mxu0 0.0
    %2872 = vmatprep.subr.mxu0 0.0
    %2873 = vmatpush1.msra.mxu0 0.0
    %2874 = vmatprep.subr.mxu0 0.0
    %2875 = vmatpush1.msra.mxu0 0.0
    %2876 = vmatprep.subr.mxu0 0.0
    %2877 = vmatpush1.msra.mxu0 0.0
    %2878 = vmatprep.subr.mxu0 0.0
    %2879 = vmatpush1.msra.mxu0 0.0
    %2880 = vmatprep.subr.mxu0 0.0
    %2881 = vmatpush1.msra.mxu0 0.0
    %2882 = vmatprep.subr.mxu0 0.0
    %2883 = vmatpush1.msra.mxu0 0.0
    %2884 = vmatprep.subr.mxu0 0.0
    %2885 = vmatpush1.msra.mxu0 0.0
    %2886 = vmatprep.subr.mxu0 0.0
    %2887 = vmatpush1.msra.mxu0 0.0
    %2888 = vmatprep.subr.mxu0 0.0
    %2889 = vmatpush1.msra.mxu0 0.0
    %2890 = vmatprep.subr.mxu0 0.0
    %2891 = vmatpush1.msra.mxu0 0.0
    %2892 = vmatprep.subr.mxu0 0.0
    %2893 = vmatpush1.msra.mxu0 0.0
    %2894 = vmatprep.subr.mxu0 0.0
    %2895 = vmatpush1.msra.mxu0 0.0
    %2896 = vmatprep.subr.mxu0 0.0
    %2897 = vmatpush1.msra.mxu0 0.0
    %2898 = vmatprep.subr.mxu0 0.0
    %2899 = vmatpush1.msra.mxu0 0.0
    %2900 = vmatprep.subr.mxu0 0.0
    %2901 = vmatpush1.msra.mxu0 0.0
    %2902 = vmatprep.subr.mxu0 0.0
    %2903 = vmatpush1.msra.mxu0 0.0
    %2904 = vmatprep.subr.mxu0 0.0
    %2905 = vmatpush1.msra.mxu0 0.0
    %2906 = vmatprep.subr.mxu0 0.0
    %2907 = vmatpush1.msra.mxu0 0.0
    %2908 = vmatprep.mubr.f32.mxu0 0.0
    %2909 = vmatmul.mubr.f32.gmra.mrb[0].mxu0 %v2833
    %v2910 = vpop.f32.mrb[0].mxu0
    %v2911 = vadd.f32 %v2814, %v2910
    %v2912 = vpop.f32.mrb[0].mxu0
    %2913 = vmatprep.mubr.f32.mxu0 0.0
    %2914 = vmatmul.mubr.f32.gmra.mrb[0].mxu0 %v2836
    %v2915 = vpop.f32.mrb[0].mxu0
    %v2916 = vadd.f32 %v2819, %v2915
    %v2917 = vpop.f32.mrb[0].mxu0
    %2918 = vmatprep.mubr.f32.mxu0 0.0
    %2919 = vmatmul.mubr.f32.gmra.mrb[0].mxu0 %v2839
    %v2920 = vpop.f32.mrb[0].mxu0
    %v2921 = vadd.f32 %v2824, %v2920
    %v2922 = vpop.f32.mrb[0].mxu0
    %2923 = vmatprep.mubr.f32.mxu0 0.0
    %2924 = vmatmul.mubr.f32.gmra.mrb[0].mxu0 %v2842
    %v2925 = vpop.f32.mrb[0].mxu0
    %v2926 = vadd.f32 %v2829, %v2925
    %v2927 = vpop.f32.mrb[0].mxu0
    %2928 = vdwg.mxu0
    %s2929 = scalar_lea.vmem %s15, 64
    %v2930 = vld [vmem:[%s2929] sm:$0xff]
    %v2931 = vld [vmem:[%s2929 + $0x8] sm:$0xff]
    %v2932 = vld [vmem:[%s2929 + $0x10] sm:$0xff]
    %v2933 = vld [vmem:[%s2929 + $0x18] sm:$0xff]
    %s2934 = scalar_lea.vmem %s16, 64
    %v2935 = vld [vmem:[%s2934] sm:$0xff]
    %v2936 = vld [vmem:[%s2934 + $0x8] sm:$0xff]
    %v2937 = vld [vmem:[%s2934 + $0x10] sm:$0xff]
    %v2938 = vld [vmem:[%s2934 + $0x18] sm:$0xff]
    %v2940 = vsel %vm857, %v2935, 0
    %v2943 = vsel %vm857, %v2936, 0
    %v2946 = vsel %vm857, %v2937, 0
    %v2949 = vsel %vm857, %v2938, 0
    %2951 = vmatprep.subr.mxu0 0.0
    %2952 = vmatpush1.msra.mxu0 %v2304
    %2953 = vmatprep.subr.mxu0 0.0
    %2954 = vmatpush1.msra.mxu0 %v2305
    %2955 = vmatprep.subr.mxu0 0.0
    %2956 = vmatpush1.msra.mxu0 %v2306
    %2957 = vmatprep.subr.mxu0 0.0
    %2958 = vmatpush1.msra.mxu0 %v2307
    %2959 = vmatprep.subr.mxu0 0.0
    %2960 = vmatpush1.msra.mxu0 0.0
    %2961 = vmatprep.subr.mxu0 0.0
    %2962 = vmatpush1.msra.mxu0 0.0
    %2963 = vmatprep.subr.mxu0 0.0
    %2964 = vmatpush1.msra.mxu0 0.0
    %2965 = vmatprep.subr.mxu0 0.0
    %2966 = vmatpush1.msra.mxu0 0.0
    %2967 = vmatprep.subr.mxu0 0.0
    %2968 = vmatpush1.msra.mxu0 0.0
    %2969 = vmatprep.subr.mxu0 0.0
    %2970 = vmatpush1.msra.mxu0 0.0
    %2971 = vmatprep.subr.mxu0 0.0
    %2972 = vmatpush1.msra.mxu0 0.0
    %2973 = vmatprep.subr.mxu0 0.0
    %2974 = vmatpush1.msra.mxu0 0.0
    %2975 = vmatprep.subr.mxu0 0.0
    %2976 = vmatpush1.msra.mxu0 0.0
    %2977 = vmatprep.subr.mxu0 0.0
    %2978 = vmatpush1.msra.mxu0 0.0
    %2979 = vmatprep.subr.mxu0 0.0
    %2980 = vmatpush1.msra.mxu0 0.0
    %2981 = vmatprep.subr.mxu0 0.0
    %2982 = vmatpush1.msra.mxu0 0.0
    %2983 = vmatprep.subr.mxu0 0.0
    %2984 = vmatpush1.msra.mxu0 0.0
    %2985 = vmatprep.subr.mxu0 0.0
    %2986 = vmatpush1.msra.mxu0 0.0
    %2987 = vmatprep.subr.mxu0 0.0
    %2988 = vmatpush1.msra.mxu0 0.0
    %2989 = vmatprep.subr.mxu0 0.0
    %2990 = vmatpush1.msra.mxu0 0.0
    %2991 = vmatprep.subr.mxu0 0.0
    %2992 = vmatpush1.msra.mxu0 0.0
    %2993 = vmatprep.subr.mxu0 0.0
    %2994 = vmatpush1.msra.mxu0 0.0
    %2995 = vmatprep.subr.mxu0 0.0
    %2996 = vmatpush1.msra.mxu0 0.0
    %2997 = vmatprep.subr.mxu0 0.0
    %2998 = vmatpush1.msra.mxu0 0.0
    %2999 = vmatprep.subr.mxu0 0.0
    %3000 = vmatpush1.msra.mxu0 0.0
    %3001 = vmatprep.subr.mxu0 0.0
    %3002 = vmatpush1.msra.mxu0 0.0
    %3003 = vmatprep.subr.mxu0 0.0
    %3004 = vmatpush1.msra.mxu0 0.0
    %3005 = vmatprep.subr.mxu0 0.0
    %3006 = vmatpush1.msra.mxu0 0.0
    %3007 = vmatprep.subr.mxu0 0.0
    %3008 = vmatpush1.msra.mxu0 0.0
    %3009 = vmatprep.subr.mxu0 0.0
    %3010 = vmatpush1.msra.mxu0 0.0
    %3011 = vmatprep.subr.mxu0 0.0
    %3012 = vmatpush1.msra.mxu0 0.0
    %3013 = vmatprep.subr.mxu0 0.0
    %3014 = vmatpush1.msra.mxu0 0.0
    %3015 = vmatprep.mubr.f32.mxu0 0.0
    %3016 = vmatmul.mubr.f32.gmra.mrb[0].mxu0 %v2940
    %v3017 = vpop.f32.mrb[0].mxu0
    %v3018 = vadd.f32 0.0, %v3017
    %v3019 = vpop.f32.mrb[0].mxu0
    %3020 = vmatprep.mubr.f32.mxu0 0.0
    %3021 = vmatmul.mubr.f32.gmra.mrb[0].mxu0 %v2943
    %v3022 = vpop.f32.mrb[0].mxu0
    %v3023 = vadd.f32 0.0, %v3022
    %v3024 = vpop.f32.mrb[0].mxu0
    %3025 = vmatprep.mubr.f32.mxu0 0.0
    %3026 = vmatmul.mubr.f32.gmra.mrb[0].mxu0 %v2946
    %v3027 = vpop.f32.mrb[0].mxu0
    %v3028 = vadd.f32 0.0, %v3027
    %v3029 = vpop.f32.mrb[0].mxu0
    %3030 = vmatprep.mubr.f32.mxu0 0.0
    %3031 = vmatmul.mubr.f32.gmra.mrb[0].mxu0 %v2949
    %v3032 = vpop.f32.mrb[0].mxu0
    %v3033 = vadd.f32 0.0, %v3032
    %v3034 = vpop.f32.mrb[0].mxu0
    %3035 = vdwg.mxu0
    %v3037 = vsel %vm857, %v2930, 0
    %v3040 = vsel %vm857, %v2931, 0
    %v3043 = vsel %vm857, %v2932, 0
    %v3046 = vsel %vm857, %v2933, 0
    %3048 = vmatprep.subr.mxu0 0.0
    %3049 = vmatpush1.msra.mxu0 %v2308
    %3050 = vmatprep.subr.mxu0 0.0
    %3051 = vmatpush1.msra.mxu0 %v2309
    %3052 = vmatprep.subr.mxu0 0.0
    %3053 = vmatpush1.msra.mxu0 %v2310
    %3054 = vmatprep.subr.mxu0 0.0
    %3055 = vmatpush1.msra.mxu0 %v2311
    %3056 = vmatprep.subr.mxu0 0.0
    %3057 = vmatpush1.msra.mxu0 0.0
    %3058 = vmatprep.subr.mxu0 0.0
    %3059 = vmatpush1.msra.mxu0 0.0
    %3060 = vmatprep.subr.mxu0 0.0
    %3061 = vmatpush1.msra.mxu0 0.0
    %3062 = vmatprep.subr.mxu0 0.0
    %3063 = vmatpush1.msra.mxu0 0.0
    %3064 = vmatprep.subr.mxu0 0.0
    %3065 = vmatpush1.msra.mxu0 0.0
    %3066 = vmatprep.subr.mxu0 0.0
    %3067 = vmatpush1.msra.mxu0 0.0
    %3068 = vmatprep.subr.mxu0 0.0
    %3069 = vmatpush1.msra.mxu0 0.0
    %3070 = vmatprep.subr.mxu0 0.0
    %3071 = vmatpush1.msra.mxu0 0.0
    %3072 = vmatprep.subr.mxu0 0.0
    %3073 = vmatpush1.msra.mxu0 0.0
    %3074 = vmatprep.subr.mxu0 0.0
    %3075 = vmatpush1.msra.mxu0 0.0
    %3076 = vmatprep.subr.mxu0 0.0
    %3077 = vmatpush1.msra.mxu0 0.0
    %3078 = vmatprep.subr.mxu0 0.0
    %3079 = vmatpush1.msra.mxu0 0.0
    %3080 = vmatprep.subr.mxu0 0.0
    %3081 = vmatpush1.msra.mxu0 0.0
    %3082 = vmatprep.subr.mxu0 0.0
    %3083 = vmatpush1.msra.mxu0 0.0
    %3084 = vmatprep.subr.mxu0 0.0
    %3085 = vmatpush1.msra.mxu0 0.0
    %3086 = vmatprep.subr.mxu0 0.0
    %3087 = vmatpush1.msra.mxu0 0.0
    %3088 = vmatprep.subr.mxu0 0.0
    %3089 = vmatpush1.msra.mxu0 0.0
    %3090 = vmatprep.subr.mxu0 0.0
    %3091 = vmatpush1.msra.mxu0 0.0
    %3092 = vmatprep.subr.mxu0 0.0
    %3093 = vmatpush1.msra.mxu0 0.0
    %3094 = vmatprep.subr.mxu0 0.0
    %3095 = vmatpush1.msra.mxu0 0.0
    %3096 = vmatprep.subr.mxu0 0.0
    %3097 = vmatpush1.msra.mxu0 0.0
    %3098 = vmatprep.subr.mxu0 0.0
    %3099 = vmatpush1.msra.mxu0 0.0
    %3100 = vmatprep.subr.mxu0 0.0
    %3101 = vmatpush1.msra.mxu0 0.0
    %3102 = vmatprep.subr.mxu0 0.0
    %3103 = vmatpush1.msra.mxu0 0.0
    %3104 = vmatprep.subr.mxu0 0.0
    %3105 = vmatpush1.msra.mxu0 0.0
    %3106 = vmatprep.subr.mxu0 0.0
    %3107 = vmatpush1.msra.mxu0 0.0
    %3108 = vmatprep.subr.mxu0 0.0
    %3109 = vmatpush1.msra.mxu0 0.0
    %3110 = vmatprep.subr.mxu0 0.0
    %3111 = vmatpush1.msra.mxu0 0.0
    %3112 = vmatprep.mubr.f32.mxu0 0.0
    %3113 = vmatmul.mubr.f32.gmra.mrb[0].mxu0 %v3037
    %v3114 = vpop.f32.mrb[0].mxu0
    %v3115 = vadd.f32 %v3018, %v3114
    %v3116 = vpop.f32.mrb[0].mxu0
    %3117 = vmatprep.mubr.f32.mxu0 0.0
    %3118 = vmatmul.mubr.f32.gmra.mrb[0].mxu0 %v3040
    %v3119 = vpop.f32.mrb[0].mxu0
    %v3120 = vadd.f32 %v3023, %v3119
    %v3121 = vpop.f32.mrb[0].mxu0
    %3122 = vmatprep.mubr.f32.mxu0 0.0
    %3123 = vmatmul.mubr.f32.gmra.mrb[0].mxu0 %v3043
    %v3124 = vpop.f32.mrb[0].mxu0
    %v3125 = vadd.f32 %v3028, %v3124
    %v3126 = vpop.f32.mrb[0].mxu0
    %3127 = vmatprep.mubr.f32.mxu0 0.0
    %3128 = vmatmul.mubr.f32.gmra.mrb[0].mxu0 %v3046
    %v3129 = vpop.f32.mrb[0].mxu0
    %v3130 = vadd.f32 %v3033, %v3129
    %v3131 = vpop.f32.mrb[0].mxu0
    %3132 = vdwg.mxu0
    %s3133 = scalar_lea.vmem %s17, 128
    %v3134 = vld [vmem:[%s3133] sm:$0xff]
    %v3135 = vld [vmem:[%s3133 + $0x8] sm:$0xff]
    %v3136 = vld [vmem:[%s3133 + $0x10] sm:$0xff]
    %v3137 = vld [vmem:[%s3133 + $0x18] sm:$0xff]
    %v3138 = vld [vmem:[%s3133 + $0x20] sm:$0xff]
    %v3139 = vld [vmem:[%s3133 + $0x28] sm:$0xff]
    %v3140 = vld [vmem:[%s3133 + $0x30] sm:$0xff]
    %v3141 = vld [vmem:[%s3133 + $0x38] sm:$0xff]
    %v3143 = vsel %vm1123, %v3115, 0
    %v3146 = vsel %vm1123, %v3120, 0
    %v3149 = vsel %vm1123, %v3125, 0
    %v3152 = vsel %vm1123, %v3130, 0
    %3154 = vmatprep.subr.mxu0 0.0
    %3155 = vmatpush1.msra.mxu0 %v3134
    %3156 = vmatprep.subr.mxu0 0.0
    %3157 = vmatpush1.msra.mxu0 %v3135
    %3158 = vmatprep.subr.mxu0 0.0
    %3159 = vmatpush1.msra.mxu0 %v3136
    %3160 = vmatprep.subr.mxu0 0.0
    %3161 = vmatpush1.msra.mxu0 %v3137
    %3162 = vmatprep.subr.mxu0 0.0
    %3163 = vmatpush1.msra.mxu0 %v3138
    %3164 = vmatprep.subr.mxu0 0.0
    %3165 = vmatpush1.msra.mxu0 %v3139
    %3166 = vmatprep.subr.mxu0 0.0
    %3167 = vmatpush1.msra.mxu0 %v3140
    %3168 = vmatprep.subr.mxu0 0.0
    %3169 = vmatpush1.msra.mxu0 %v3141
    %3170 = vmatprep.subr.mxu0 0.0
    %3171 = vmatpush1.msra.mxu0 0.0
    %3172 = vmatprep.subr.mxu0 0.0
    %3173 = vmatpush1.msra.mxu0 0.0
    %3174 = vmatprep.subr.mxu0 0.0
    %3175 = vmatpush1.msra.mxu0 0.0
    %3176 = vmatprep.subr.mxu0 0.0
    %3177 = vmatpush1.msra.mxu0 0.0
    %3178 = vmatprep.subr.mxu0 0.0
    %3179 = vmatpush1.msra.mxu0 0.0
    %3180 = vmatprep.subr.mxu0 0.0
    %3181 = vmatpush1.msra.mxu0 0.0
    %3182 = vmatprep.subr.mxu0 0.0
    %3183 = vmatpush1.msra.mxu0 0.0
    %3184 = vmatprep.subr.mxu0 0.0
    %3185 = vmatpush1.msra.mxu0 0.0
    %3186 = vmatprep.subr.mxu0 0.0
    %3187 = vmatpush1.msra.mxu0 0.0
    %3188 = vmatprep.subr.mxu0 0.0
    %3189 = vmatpush1.msra.mxu0 0.0
    %3190 = vmatprep.subr.mxu0 0.0
    %3191 = vmatpush1.msra.mxu0 0.0
    %3192 = vmatprep.subr.mxu0 0.0
    %3193 = vmatpush1.msra.mxu0 0.0
    %3194 = vmatprep.subr.mxu0 0.0
    %3195 = vmatpush1.msra.mxu0 0.0
    %3196 = vmatprep.subr.mxu0 0.0
    %3197 = vmatpush1.msra.mxu0 0.0
    %3198 = vmatprep.subr.mxu0 0.0
    %3199 = vmatpush1.msra.mxu0 0.0
    %3200 = vmatprep.subr.mxu0 0.0
    %3201 = vmatpush1.msra.mxu0 0.0
    %3202 = vmatprep.subr.mxu0 0.0
    %3203 = vmatpush1.msra.mxu0 0.0
    %3204 = vmatprep.subr.mxu0 0.0
    %3205 = vmatpush1.msra.mxu0 0.0
    %3206 = vmatprep.subr.mxu0 0.0
    %3207 = vmatpush1.msra.mxu0 0.0
    %3208 = vmatprep.subr.mxu0 0.0
    %3209 = vmatpush1.msra.mxu0 0.0
    %3210 = vmatprep.subr.mxu0 0.0
    %3211 = vmatpush1.msra.mxu0 0.0
    %3212 = vmatprep.subr.mxu0 0.0
    %3213 = vmatpush1.msra.mxu0 0.0
    %3214 = vmatprep.subr.mxu0 0.0
    %3215 = vmatpush1.msra.mxu0 0.0
    %3216 = vmatprep.subr.mxu0 0.0
    %3217 = vmatpush1.msra.mxu0 0.0
    %3218 = vmatprep.mubr.f32.mxu0 0.0
    %3219 = vmatmul.mubr.f32.gmra.mrb[0].mxu0 %v3143
    %v3220 = vpop.f32.mrb[0].mxu0
    %v3221 = vadd.f32 0.0, %v3220
    %v3222 = vpop.f32.mrb[0].mxu0
    %3223 = vmatprep.mubr.f32.mxu0 0.0
    %3224 = vmatmul.mubr.f32.gmra.mrb[0].mxu0 %v3146
    %v3225 = vpop.f32.mrb[0].mxu0
    %v3226 = vadd.f32 0.0, %v3225
    %v3227 = vpop.f32.mrb[0].mxu0
    %3228 = vmatprep.mubr.f32.mxu0 0.0
    %3229 = vmatmul.mubr.f32.gmra.mrb[0].mxu0 %v3149
    %v3230 = vpop.f32.mrb[0].mxu0
    %v3231 = vadd.f32 0.0, %v3230
    %v3232 = vpop.f32.mrb[0].mxu0
    %3233 = vmatprep.mubr.f32.mxu0 0.0
    %3234 = vmatmul.mubr.f32.gmra.mrb[0].mxu0 %v3152
    %v3235 = vpop.f32.mrb[0].mxu0
    %v3236 = vadd.f32 0.0, %v3235
    %v3237 = vpop.f32.mrb[0].mxu0
    %3238 = vdwg.mxu0
    %v3239 = vadd.f32 %v2911, %v3221
    %v3240 = vadd.f32 %v2916, %v3226
    %v3241 = vadd.f32 %v2921, %v3231
    %v3242 = vadd.f32 %v2926, %v3236
    %s3243 = scalar_lea.vmem %s15, 96
    %v3244 = vld [vmem:[%s3243] sm:$0xff]
    %v3245 = vld [vmem:[%s3243 + $0x8] sm:$0xff]
    %v3246 = vld [vmem:[%s3243 + $0x10] sm:$0xff]
    %v3247 = vld [vmem:[%s3243 + $0x18] sm:$0xff]
    %s3248 = scalar_lea.vmem %s16, 96
    %v3249 = vld [vmem:[%s3248] sm:$0xff]
    %v3250 = vld [vmem:[%s3248 + $0x8] sm:$0xff]
    %v3251 = vld [vmem:[%s3248 + $0x10] sm:$0xff]
    %v3252 = vld [vmem:[%s3248 + $0x18] sm:$0xff]
    %v3254 = vsel %vm857, %v3249, 0
    %v3257 = vsel %vm857, %v3250, 0
    %v3260 = vsel %vm857, %v3251, 0
    %v3263 = vsel %vm857, %v3252, 0
    %3265 = vmatprep.subr.mxu0 0.0
    %3266 = vmatpush1.msra.mxu0 %v2304
    %3267 = vmatprep.subr.mxu0 0.0
    %3268 = vmatpush1.msra.mxu0 %v2305
    %3269 = vmatprep.subr.mxu0 0.0
    %3270 = vmatpush1.msra.mxu0 %v2306
    %3271 = vmatprep.subr.mxu0 0.0
    %3272 = vmatpush1.msra.mxu0 %v2307
    %3273 = vmatprep.subr.mxu0 0.0
    %3274 = vmatpush1.msra.mxu0 0.0
    %3275 = vmatprep.subr.mxu0 0.0
    %3276 = vmatpush1.msra.mxu0 0.0
    %3277 = vmatprep.subr.mxu0 0.0
    %3278 = vmatpush1.msra.mxu0 0.0
    %3279 = vmatprep.subr.mxu0 0.0
    %3280 = vmatpush1.msra.mxu0 0.0
    %3281 = vmatprep.subr.mxu0 0.0
    %3282 = vmatpush1.msra.mxu0 0.0
    %3283 = vmatprep.subr.mxu0 0.0
    %3284 = vmatpush1.msra.mxu0 0.0
    %3285 = vmatprep.subr.mxu0 0.0
    %3286 = vmatpush1.msra.mxu0 0.0
    %3287 = vmatprep.subr.mxu0 0.0
    %3288 = vmatpush1.msra.mxu0 0.0
    %3289 = vmatprep.subr.mxu0 0.0
    %3290 = vmatpush1.msra.mxu0 0.0
    %3291 = vmatprep.subr.mxu0 0.0
    %3292 = vmatpush1.msra.mxu0 0.0
    %3293 = vmatprep.subr.mxu0 0.0
    %3294 = vmatpush1.msra.mxu0 0.0
    %3295 = vmatprep.subr.mxu0 0.0
    %3296 = vmatpush1.msra.mxu0 0.0
    %3297 = vmatprep.subr.mxu0 0.0
    %3298 = vmatpush1.msra.mxu0 0.0
    %3299 = vmatprep.subr.mxu0 0.0
    %3300 = vmatpush1.msra.mxu0 0.0
    %3301 = vmatprep.subr.mxu0 0.0
    %3302 = vmatpush1.msra.mxu0 0.0
    %3303 = vmatprep.subr.mxu0 0.0
    %3304 = vmatpush1.msra.mxu0 0.0
    %3305 = vmatprep.subr.mxu0 0.0
    %3306 = vmatpush1.msra.mxu0 0.0
    %3307 = vmatprep.subr.mxu0 0.0
    %3308 = vmatpush1.msra.mxu0 0.0
    %3309 = vmatprep.subr.mxu0 0.0
    %3310 = vmatpush1.msra.mxu0 0.0
    %3311 = vmatprep.subr.mxu0 0.0
    %3312 = vmatpush1.msra.mxu0 0.0
    %3313 = vmatprep.subr.mxu0 0.0
    %3314 = vmatpush1.msra.mxu0 0.0
    %3315 = vmatprep.subr.mxu0 0.0
    %3316 = vmatpush1.msra.mxu0 0.0
    %3317 = vmatprep.subr.mxu0 0.0
    %3318 = vmatpush1.msra.mxu0 0.0
    %3319 = vmatprep.subr.mxu0 0.0
    %3320 = vmatpush1.msra.mxu0 0.0
    %3321 = vmatprep.subr.mxu0 0.0
    %3322 = vmatpush1.msra.mxu0 0.0
    %3323 = vmatprep.subr.mxu0 0.0
    %3324 = vmatpush1.msra.mxu0 0.0
    %3325 = vmatprep.subr.mxu0 0.0
    %3326 = vmatpush1.msra.mxu0 0.0
    %3327 = vmatprep.subr.mxu0 0.0
    %3328 = vmatpush1.msra.mxu0 0.0
    %3329 = vmatprep.mubr.f32.mxu0 0.0
    %3330 = vmatmul.mubr.f32.gmra.mrb[0].mxu0 %v3254
    %v3331 = vpop.f32.mrb[0].mxu0
    %v3332 = vadd.f32 0.0, %v3331
    %v3333 = vpop.f32.mrb[0].mxu0
    %3334 = vmatprep.mubr.f32.mxu0 0.0
    %3335 = vmatmul.mubr.f32.gmra.mrb[0].mxu0 %v3257
    %v3336 = vpop.f32.mrb[0].mxu0
    %v3337 = vadd.f32 0.0, %v3336
    %v3338 = vpop.f32.mrb[0].mxu0
    %3339 = vmatprep.mubr.f32.mxu0 0.0
    %3340 = vmatmul.mubr.f32.gmra.mrb[0].mxu0 %v3260
    %v3341 = vpop.f32.mrb[0].mxu0
    %v3342 = vadd.f32 0.0, %v3341
    %v3343 = vpop.f32.mrb[0].mxu0
    %3344 = vmatprep.mubr.f32.mxu0 0.0
    %3345 = vmatmul.mubr.f32.gmra.mrb[0].mxu0 %v3263
    %v3346 = vpop.f32.mrb[0].mxu0
    %v3347 = vadd.f32 0.0, %v3346
    %v3348 = vpop.f32.mrb[0].mxu0
    %3349 = vdwg.mxu0
    %v3351 = vsel %vm857, %v3244, 0
    %v3354 = vsel %vm857, %v3245, 0
    %v3357 = vsel %vm857, %v3246, 0
    %v3360 = vsel %vm857, %v3247, 0
    %3362 = vmatprep.subr.mxu0 0.0
    %3363 = vmatpush1.msra.mxu0 %v2308
    %3364 = vmatprep.subr.mxu0 0.0
    %3365 = vmatpush1.msra.mxu0 %v2309
    %3366 = vmatprep.subr.mxu0 0.0
    %3367 = vmatpush1.msra.mxu0 %v2310
    %3368 = vmatprep.subr.mxu0 0.0
    %3369 = vmatpush1.msra.mxu0 %v2311
    %3370 = vmatprep.subr.mxu0 0.0
    %3371 = vmatpush1.msra.mxu0 0.0
    %3372 = vmatprep.subr.mxu0 0.0
    %3373 = vmatpush1.msra.mxu0 0.0
    %3374 = vmatprep.subr.mxu0 0.0
    %3375 = vmatpush1.msra.mxu0 0.0
    %3376 = vmatprep.subr.mxu0 0.0
    %3377 = vmatpush1.msra.mxu0 0.0
    %3378 = vmatprep.subr.mxu0 0.0
    %3379 = vmatpush1.msra.mxu0 0.0
    %3380 = vmatprep.subr.mxu0 0.0
    %3381 = vmatpush1.msra.mxu0 0.0
    %3382 = vmatprep.subr.mxu0 0.0
    %3383 = vmatpush1.msra.mxu0 0.0
    %3384 = vmatprep.subr.mxu0 0.0
    %3385 = vmatpush1.msra.mxu0 0.0
    %3386 = vmatprep.subr.mxu0 0.0
    %3387 = vmatpush1.msra.mxu0 0.0
    %3388 = vmatprep.subr.mxu0 0.0
    %3389 = vmatpush1.msra.mxu0 0.0
    %3390 = vmatprep.subr.mxu0 0.0
    %3391 = vmatpush1.msra.mxu0 0.0
    %3392 = vmatprep.subr.mxu0 0.0
    %3393 = vmatpush1.msra.mxu0 0.0
    %3394 = vmatprep.subr.mxu0 0.0
    %3395 = vmatpush1.msra.mxu0 0.0
    %3396 = vmatprep.subr.mxu0 0.0
    %3397 = vmatpush1.msra.mxu0 0.0
    %3398 = vmatprep.subr.mxu0 0.0
    %3399 = vmatpush1.msra.mxu0 0.0
    %3400 = vmatprep.subr.mxu0 0.0
    %3401 = vmatpush1.msra.mxu0 0.0
    %3402 = vmatprep.subr.mxu0 0.0
    %3403 = vmatpush1.msra.mxu0 0.0
    %3404 = vmatprep.subr.mxu0 0.0
    %3405 = vmatpush1.msra.mxu0 0.0
    %3406 = vmatprep.subr.mxu0 0.0
    %3407 = vmatpush1.msra.mxu0 0.0
    %3408 = vmatprep.subr.mxu0 0.0
    %3409 = vmatpush1.msra.mxu0 0.0
    %3410 = vmatprep.subr.mxu0 0.0
    %3411 = vmatpush1.msra.mxu0 0.0
    %3412 = vmatprep.subr.mxu0 0.0
    %3413 = vmatpush1.msra.mxu0 0.0
    %3414 = vmatprep.subr.mxu0 0.0
    %3415 = vmatpush1.msra.mxu0 0.0
    %3416 = vmatprep.subr.mxu0 0.0
    %3417 = vmatpush1.msra.mxu0 0.0
    %3418 = vmatprep.subr.mxu0 0.0
    %3419 = vmatpush1.msra.mxu0 0.0
    %3420 = vmatprep.subr.mxu0 0.0
    %3421 = vmatpush1.msra.mxu0 0.0
    %3422 = vmatprep.subr.mxu0 0.0
    %3423 = vmatpush1.msra.mxu0 0.0
    %3424 = vmatprep.subr.mxu0 0.0
    %3425 = vmatpush1.msra.mxu0 0.0
    %3426 = vmatprep.mubr.f32.mxu0 0.0
    %3427 = vmatmul.mubr.f32.gmra.mrb[0].mxu0 %v3351
    %v3428 = vpop.f32.mrb[0].mxu0
    %v3429 = vadd.f32 %v3332, %v3428
    %v3430 = vpop.f32.mrb[0].mxu0
    %3431 = vmatprep.mubr.f32.mxu0 0.0
    %3432 = vmatmul.mubr.f32.gmra.mrb[0].mxu0 %v3354
    %v3433 = vpop.f32.mrb[0].mxu0
    %v3434 = vadd.f32 %v3337, %v3433
    %v3435 = vpop.f32.mrb[0].mxu0
    %3436 = vmatprep.mubr.f32.mxu0 0.0
    %3437 = vmatmul.mubr.f32.gmra.mrb[0].mxu0 %v3357
    %v3438 = vpop.f32.mrb[0].mxu0
    %v3439 = vadd.f32 %v3342, %v3438
    %v3440 = vpop.f32.mrb[0].mxu0
    %3441 = vmatprep.mubr.f32.mxu0 0.0
    %3442 = vmatmul.mubr.f32.gmra.mrb[0].mxu0 %v3360
    %v3443 = vpop.f32.mrb[0].mxu0
    %v3444 = vadd.f32 %v3347, %v3443
    %v3445 = vpop.f32.mrb[0].mxu0
    %3446 = vdwg.mxu0
    %s3447 = scalar_lea.vmem %s17, 192
    %v3448 = vld [vmem:[%s3447] sm:$0xff]
    %v3449 = vld [vmem:[%s3447 + $0x8] sm:$0xff]
    %v3450 = vld [vmem:[%s3447 + $0x10] sm:$0xff]
    %v3451 = vld [vmem:[%s3447 + $0x18] sm:$0xff]
    %v3452 = vld [vmem:[%s3447 + $0x20] sm:$0xff]
    %v3453 = vld [vmem:[%s3447 + $0x28] sm:$0xff]
    %v3454 = vld [vmem:[%s3447 + $0x30] sm:$0xff]
    %v3455 = vld [vmem:[%s3447 + $0x38] sm:$0xff]
    %v3457 = vsel %vm1123, %v3429, 0
    %v3460 = vsel %vm1123, %v3434, 0
    %v3463 = vsel %vm1123, %v3439, 0
    %v3466 = vsel %vm1123, %v3444, 0
    %3468 = vmatprep.subr.mxu0 0.0
    %3469 = vmatpush1.msra.mxu0 %v3448
    %3470 = vmatprep.subr.mxu0 0.0
    %3471 = vmatpush1.msra.mxu0 %v3449
    %3472 = vmatprep.subr.mxu0 0.0
    %3473 = vmatpush1.msra.mxu0 %v3450
    %3474 = vmatprep.subr.mxu0 0.0
    %3475 = vmatpush1.msra.mxu0 %v3451
    %3476 = vmatprep.subr.mxu0 0.0
    %3477 = vmatpush1.msra.mxu0 %v3452
    %3478 = vmatprep.subr.mxu0 0.0
    %3479 = vmatpush1.msra.mxu0 %v3453
    %3480 = vmatprep.subr.mxu0 0.0
    %3481 = vmatpush1.msra.mxu0 %v3454
    %3482 = vmatprep.subr.mxu0 0.0
    %3483 = vmatpush1.msra.mxu0 %v3455
    %3484 = vmatprep.subr.mxu0 0.0
    %3485 = vmatpush1.msra.mxu0 0.0
    %3486 = vmatprep.subr.mxu0 0.0
    %3487 = vmatpush1.msra.mxu0 0.0
    %3488 = vmatprep.subr.mxu0 0.0
    %3489 = vmatpush1.msra.mxu0 0.0
    %3490 = vmatprep.subr.mxu0 0.0
    %3491 = vmatpush1.msra.mxu0 0.0
    %3492 = vmatprep.subr.mxu0 0.0
    %3493 = vmatpush1.msra.mxu0 0.0
    %3494 = vmatprep.subr.mxu0 0.0
    %3495 = vmatpush1.msra.mxu0 0.0
    %3496 = vmatprep.subr.mxu0 0.0
    %3497 = vmatpush1.msra.mxu0 0.0
    %3498 = vmatprep.subr.mxu0 0.0
    %3499 = vmatpush1.msra.mxu0 0.0
    %3500 = vmatprep.subr.mxu0 0.0
    %3501 = vmatpush1.msra.mxu0 0.0
    %3502 = vmatprep.subr.mxu0 0.0
    %3503 = vmatpush1.msra.mxu0 0.0
    %3504 = vmatprep.subr.mxu0 0.0
    %3505 = vmatpush1.msra.mxu0 0.0
    %3506 = vmatprep.subr.mxu0 0.0
    %3507 = vmatpush1.msra.mxu0 0.0
    %3508 = vmatprep.subr.mxu0 0.0
    %3509 = vmatpush1.msra.mxu0 0.0
    %3510 = vmatprep.subr.mxu0 0.0
    %3511 = vmatpush1.msra.mxu0 0.0
    %3512 = vmatprep.subr.mxu0 0.0
    %3513 = vmatpush1.msra.mxu0 0.0
    %3514 = vmatprep.subr.mxu0 0.0
    %3515 = vmatpush1.msra.mxu0 0.0
    %3516 = vmatprep.subr.mxu0 0.0
    %3517 = vmatpush1.msra.mxu0 0.0
    %3518 = vmatprep.subr.mxu0 0.0
    %3519 = vmatpush1.msra.mxu0 0.0
    %3520 = vmatprep.subr.mxu0 0.0
    %3521 = vmatpush1.msra.mxu0 0.0
    %3522 = vmatprep.subr.mxu0 0.0
    %3523 = vmatpush1.msra.mxu0 0.0
    %3524 = vmatprep.subr.mxu0 0.0
    %3525 = vmatpush1.msra.mxu0 0.0
    %3526 = vmatprep.subr.mxu0 0.0
    %3527 = vmatpush1.msra.mxu0 0.0
    %3528 = vmatprep.subr.mxu0 0.0
    %3529 = vmatpush1.msra.mxu0 0.0
    %3530 = vmatprep.subr.mxu0 0.0
    %3531 = vmatpush1.msra.mxu0 0.0
    %3532 = vmatprep.mubr.f32.mxu0 0.0
    %3533 = vmatmul.mubr.f32.gmra.mrb[0].mxu0 %v3457
    %v3534 = vpop.f32.mrb[0].mxu0
    %v3535 = vadd.f32 0.0, %v3534
    %v3536 = vpop.f32.mrb[0].mxu0
    %3537 = vmatprep.mubr.f32.mxu0 0.0
    %3538 = vmatmul.mubr.f32.gmra.mrb[0].mxu0 %v3460
    %v3539 = vpop.f32.mrb[0].mxu0
    %v3540 = vadd.f32 0.0, %v3539
    %v3541 = vpop.f32.mrb[0].mxu0
    %3542 = vmatprep.mubr.f32.mxu0 0.0
    %3543 = vmatmul.mubr.f32.gmra.mrb[0].mxu0 %v3463
    %v3544 = vpop.f32.mrb[0].mxu0
    %v3545 = vadd.f32 0.0, %v3544
    %v3546 = vpop.f32.mrb[0].mxu0
    %3547 = vmatprep.mubr.f32.mxu0 0.0
    %3548 = vmatmul.mubr.f32.gmra.mrb[0].mxu0 %v3466
    %v3549 = vpop.f32.mrb[0].mxu0
    %v3550 = vadd.f32 0.0, %v3549
    %v3551 = vpop.f32.mrb[0].mxu0
    %3552 = vdwg.mxu0
    %v3553 = vadd.f32 %v3239, %v3535
    %v3554 = vadd.f32 %v3240, %v3540
    %v3555 = vadd.f32 %v3241, %v3545
    %v3556 = vadd.f32 %v3242, %v3550
    %v3557 = vld [vmem:[%s18] sm:$0x1]
    %v3559 = vlaneseq
    %v3560 = vshrl.u32 %v3559, 7
    %v3561 = vsub.s32 0, %v3560
    %v3562 = vrot.slane %v3557, %v3561
    %v3564 = vadd.f32 %v3553, %v3562
    %v3565 = vadd.f32 %v3554, %v3562
    %v3566 = vadd.f32 %v3555, %v3562
    %v3567 = vadd.f32 %v3556, %v3562
    %vm3568 = vcmp.ge.f32.partialorder %v3564, 0.0
    %vm3569 = vcmp.ge.f32.partialorder %v3565, 0.0
    %vm3570 = vcmp.ge.f32.partialorder %v3566, 0.0
    %vm3571 = vcmp.ge.f32.partialorder %v3567, 0.0
    %v3572 = vmul.f32 %v3564, 0.2
    %v3573 = vmul.f32 %v3565, 0.2
    %v3574 = vmul.f32 %v3566, 0.2
    %v3575 = vmul.f32 %v3567, 0.2
    %v3576 = vsel %vm3568, %v3564, %v3572
    %v3577 = vsel %vm3569, %v3565, %v3573
    %v3578 = vsel %vm3570, %v3566, %v3574
    %v3579 = vsel %vm3571, %v3567, %v3575
    %v3580 = vld [vmem:[%s19] sm:$0xff]
    %v3581 = vld [vmem:[%s19 + $0x8] sm:$0xff]
    %v3583 = vsel %vm857, %v3580, 0
    %v3586 = vsel %vm857, %v3581, 0
    %3588 = vmatprep.subr.mxu0 0.0
    %3589 = vmatpush1.msra.mxu0 %v3576
    %3590 = vmatprep.subr.mxu0 0.0
    %3591 = vmatpush1.msra.mxu0 %v3577
    %3592 = vmatprep.subr.mxu0 0.0
    %3593 = vmatpush1.msra.mxu0 %v3578
    %3594 = vmatprep.subr.mxu0 0.0
    %3595 = vmatpush1.msra.mxu0 %v3579
    %3596 = vmatprep.subr.mxu0 0.0
    %3597 = vmatpush1.msra.mxu0 0.0
    %3598 = vmatprep.subr.mxu0 0.0
    %3599 = vmatpush1.msra.mxu0 0.0
    %3600 = vmatprep.subr.mxu0 0.0
    %3601 = vmatpush1.msra.mxu0 0.0
    %3602 = vmatprep.subr.mxu0 0.0
    %3603 = vmatpush1.msra.mxu0 0.0
    %3604 = vmatprep.subr.mxu0 0.0
    %3605 = vmatpush1.msra.mxu0 0.0
    %3606 = vmatprep.subr.mxu0 0.0
    %3607 = vmatpush1.msra.mxu0 0.0
    %3608 = vmatprep.subr.mxu0 0.0
    %3609 = vmatpush1.msra.mxu0 0.0
    %3610 = vmatprep.subr.mxu0 0.0
    %3611 = vmatpush1.msra.mxu0 0.0
    %3612 = vmatprep.subr.mxu0 0.0
    %3613 = vmatpush1.msra.mxu0 0.0
    %3614 = vmatprep.subr.mxu0 0.0
    %3615 = vmatpush1.msra.mxu0 0.0
    %3616 = vmatprep.subr.mxu0 0.0
    %3617 = vmatpush1.msra.mxu0 0.0
    %3618 = vmatprep.subr.mxu0 0.0
    %3619 = vmatpush1.msra.mxu0 0.0
    %3620 = vmatprep.subr.mxu0 0.0
    %3621 = vmatpush1.msra.mxu0 0.0
    %3622 = vmatprep.subr.mxu0 0.0
    %3623 = vmatpush1.msra.mxu0 0.0
    %3624 = vmatprep.subr.mxu0 0.0
    %3625 = vmatpush1.msra.mxu0 0.0
    %3626 = vmatprep.subr.mxu0 0.0
    %3627 = vmatpush1.msra.mxu0 0.0
    %3628 = vmatprep.subr.mxu0 0.0
    %3629 = vmatpush1.msra.mxu0 0.0
    %3630 = vmatprep.subr.mxu0 0.0
    %3631 = vmatpush1.msra.mxu0 0.0
    %3632 = vmatprep.subr.mxu0 0.0
    %3633 = vmatpush1.msra.mxu0 0.0
    %3634 = vmatprep.subr.mxu0 0.0
    %3635 = vmatpush1.msra.mxu0 0.0
    %3636 = vmatprep.subr.mxu0 0.0
    %3637 = vmatpush1.msra.mxu0 0.0
    %3638 = vmatprep.subr.mxu0 0.0
    %3639 = vmatpush1.msra.mxu0 0.0
    %3640 = vmatprep.subr.mxu0 0.0
    %3641 = vmatpush1.msra.mxu0 0.0
    %3642 = vmatprep.subr.mxu0 0.0
    %3643 = vmatpush1.msra.mxu0 0.0
    %3644 = vmatprep.subr.mxu0 0.0
    %3645 = vmatpush1.msra.mxu0 0.0
    %3646 = vmatprep.subr.mxu0 0.0
    %3647 = vmatpush1.msra.mxu0 0.0
    %3648 = vmatprep.subr.mxu0 0.0
    %3649 = vmatpush1.msra.mxu0 0.0
    %3650 = vmatprep.subr.mxu0 0.0
    %3651 = vmatpush1.msra.mxu0 0.0
    %3652 = vmatprep.mubr.f32.mxu0 0.0
    %3653 = vmatmul.mubr.f32.gmra.mrb[0].mxu0 %v3583
    %v3654 = vpop.f32.mrb[0].mxu0
    %v3655 = vadd.f32 0.0, %v3654
    %v3656 = vpop.f32.mrb[0].mxu0
    %3657 = vmatprep.mubr.f32.mxu0 0.0
    %3658 = vmatmul.mubr.f32.gmra.mrb[0].mxu0 %v3586
    %v3659 = vpop.f32.mrb[0].mxu0
    %v3660 = vadd.f32 0.0, %v3659
    %v3661 = vpop.f32.mrb[0].mxu0
    %3662 = vdwg.mxu0
    %v3663 = vld [vmem:[%s20] sm:$0xff]
    %v3664 = vld [vmem:[%s20 + $0x8] sm:$0xff]
    %v3665 = vld [vmem:[%s20 + $0x10] sm:$0xff]
    %v3666 = vld [vmem:[%s20 + $0x18] sm:$0xff]
    %v3667 = vld [vmem:[%s20 + $0x20] sm:$0xff]
    %v3668 = vld [vmem:[%s20 + $0x28] sm:$0xff]
    %v3669 = vld [vmem:[%s20 + $0x30] sm:$0xff]
    %v3670 = vld [vmem:[%s20 + $0x38] sm:$0xff]
    %s3671 = scalar_lea.vmem %s19, 16
    %v3672 = vld [vmem:[%s3671] sm:$0xff]
    %v3673 = vld [vmem:[%s3671 + $0x8] sm:$0xff]
    %v3675 = vsel %vm857, %v3672, 0
    %v3678 = vsel %vm857, %v3673, 0
    %3680 = vmatprep.subr.mxu0 0.0
    %3681 = vmatpush1.msra.mxu0 %v3576
    %3682 = vmatprep.subr.mxu0 0.0
    %3683 = vmatpush1.msra.mxu0 %v3577
    %3684 = vmatprep.subr.mxu0 0.0
    %3685 = vmatpush1.msra.mxu0 %v3578
    %3686 = vmatprep.subr.mxu0 0.0
    %3687 = vmatpush1.msra.mxu0 %v3579
    %3688 = vmatprep.subr.mxu0 0.0
    %3689 = vmatpush1.msra.mxu0 0.0
    %3690 = vmatprep.subr.mxu0 0.0
    %3691 = vmatpush1.msra.mxu0 0.0
    %3692 = vmatprep.subr.mxu0 0.0
    %3693 = vmatpush1.msra.mxu0 0.0
    %3694 = vmatprep.subr.mxu0 0.0
    %3695 = vmatpush1.msra.mxu0 0.0
    %3696 = vmatprep.subr.mxu0 0.0
    %3697 = vmatpush1.msra.mxu0 0.0
    %3698 = vmatprep.subr.mxu0 0.0
    %3699 = vmatpush1.msra.mxu0 0.0
    %3700 = vmatprep.subr.mxu0 0.0
    %3701 = vmatpush1.msra.mxu0 0.0
    %3702 = vmatprep.subr.mxu0 0.0
    %3703 = vmatpush1.msra.mxu0 0.0
    %3704 = vmatprep.subr.mxu0 0.0
    %3705 = vmatpush1.msra.mxu0 0.0
    %3706 = vmatprep.subr.mxu0 0.0
    %3707 = vmatpush1.msra.mxu0 0.0
    %3708 = vmatprep.subr.mxu0 0.0
    %3709 = vmatpush1.msra.mxu0 0.0
    %3710 = vmatprep.subr.mxu0 0.0
    %3711 = vmatpush1.msra.mxu0 0.0
    %3712 = vmatprep.subr.mxu0 0.0
    %3713 = vmatpush1.msra.mxu0 0.0
    %3714 = vmatprep.subr.mxu0 0.0
    %3715 = vmatpush1.msra.mxu0 0.0
    %3716 = vmatprep.subr.mxu0 0.0
    %3717 = vmatpush1.msra.mxu0 0.0
    %3718 = vmatprep.subr.mxu0 0.0
    %3719 = vmatpush1.msra.mxu0 0.0
    %3720 = vmatprep.subr.mxu0 0.0
    %3721 = vmatpush1.msra.mxu0 0.0
    %3722 = vmatprep.subr.mxu0 0.0
    %3723 = vmatpush1.msra.mxu0 0.0
    %3724 = vmatprep.subr.mxu0 0.0
    %3725 = vmatpush1.msra.mxu0 0.0
    %3726 = vmatprep.subr.mxu0 0.0
    %3727 = vmatpush1.msra.mxu0 0.0
    %3728 = vmatprep.subr.mxu0 0.0
    %3729 = vmatpush1.msra.mxu0 0.0
    %3730 = vmatprep.subr.mxu0 0.0
    %3731 = vmatpush1.msra.mxu0 0.0
    %3732 = vmatprep.subr.mxu0 0.0
    %3733 = vmatpush1.msra.mxu0 0.0
    %3734 = vmatprep.subr.mxu0 0.0
    %3735 = vmatpush1.msra.mxu0 0.0
    %3736 = vmatprep.subr.mxu0 0.0
    %3737 = vmatpush1.msra.mxu0 0.0
    %3738 = vmatprep.subr.mxu0 0.0
    %3739 = vmatpush1.msra.mxu0 0.0
    %3740 = vmatprep.subr.mxu0 0.0
    %3741 = vmatpush1.msra.mxu0 0.0
    %3742 = vmatprep.subr.mxu0 0.0
    %3743 = vmatpush1.msra.mxu0 0.0
    %3744 = vmatprep.mubr.f32.mxu0 0.0
    %3745 = vmatmul.mubr.f32.gmra.mrb[0].mxu0 %v3675
    %v3746 = vpop.f32.mrb[0].mxu0
    %v3747 = vadd.f32 0.0, %v3746
    %v3748 = vpop.f32.mrb[0].mxu0
    %3749 = vmatprep.mubr.f32.mxu0 0.0
    %3750 = vmatmul.mubr.f32.gmra.mrb[0].mxu0 %v3678
    %v3751 = vpop.f32.mrb[0].mxu0
    %v3752 = vadd.f32 0.0, %v3751
    %v3753 = vpop.f32.mrb[0].mxu0
    %3754 = vdwg.mxu0
    %s3755 = scalar_lea.vmem %s20, 64
    %v3756 = vld [vmem:[%s3755] sm:$0xff]
    %v3757 = vld [vmem:[%s3755 + $0x8] sm:$0xff]
    %v3758 = vld [vmem:[%s3755 + $0x10] sm:$0xff]
    %v3759 = vld [vmem:[%s3755 + $0x18] sm:$0xff]
    %v3760 = vld [vmem:[%s3755 + $0x20] sm:$0xff]
    %v3761 = vld [vmem:[%s3755 + $0x28] sm:$0xff]
    %v3762 = vld [vmem:[%s3755 + $0x30] sm:$0xff]
    %v3763 = vld [vmem:[%s3755 + $0x38] sm:$0xff]
    %v3765 = vsel %vm1123, %v3747, 0
    %v3768 = vsel %vm1123, %v3752, 0
    %3770 = vmatprep.subr.mxu0 0.0
    %3771 = vmatpush1.msra.mxu0 %v3756
    %3772 = vmatprep.subr.mxu0 0.0
    %3773 = vmatpush1.msra.mxu0 %v3757
    %3774 = vmatprep.subr.mxu0 0.0
    %3775 = vmatpush1.msra.mxu0 %v3758
    %3776 = vmatprep.subr.mxu0 0.0
    %3777 = vmatpush1.msra.mxu0 %v3759
    %3778 = vmatprep.subr.mxu0 0.0
    %3779 = vmatpush1.msra.mxu0 %v3760
    %3780 = vmatprep.subr.mxu0 0.0
    %3781 = vmatpush1.msra.mxu0 %v3761
    %3782 = vmatprep.subr.mxu0 0.0
    %3783 = vmatpush1.msra.mxu0 %v3762
    %3784 = vmatprep.subr.mxu0 0.0
    %3785 = vmatpush1.msra.mxu0 %v3763
    %3786 = vmatprep.subr.mxu0 0.0
    %3787 = vmatpush1.msra.mxu0 0.0
    %3788 = vmatprep.subr.mxu0 0.0
    %3789 = vmatpush1.msra.mxu0 0.0
    %3790 = vmatprep.subr.mxu0 0.0
    %3791 = vmatpush1.msra.mxu0 0.0
    %3792 = vmatprep.subr.mxu0 0.0
    %3793 = vmatpush1.msra.mxu0 0.0
    %3794 = vmatprep.subr.mxu0 0.0
    %3795 = vmatpush1.msra.mxu0 0.0
    %3796 = vmatprep.subr.mxu0 0.0
    %3797 = vmatpush1.msra.mxu0 0.0
    %3798 = vmatprep.subr.mxu0 0.0
    %3799 = vmatpush1.msra.mxu0 0.0
    %3800 = vmatprep.subr.mxu0 0.0
    %3801 = vmatpush1.msra.mxu0 0.0
    %3802 = vmatprep.subr.mxu0 0.0
    %3803 = vmatpush1.msra.mxu0 0.0
    %3804 = vmatprep.subr.mxu0 0.0
    %3805 = vmatpush1.msra.mxu0 0.0
    %3806 = vmatprep.subr.mxu0 0.0
    %3807 = vmatpush1.msra.mxu0 0.0
    %3808 = vmatprep.subr.mxu0 0.0
    %3809 = vmatpush1.msra.mxu0 0.0
    %3810 = vmatprep.subr.mxu0 0.0
    %3811 = vmatpush1.msra.mxu0 0.0
    %3812 = vmatprep.subr.mxu0 0.0
    %3813 = vmatpush1.msra.mxu0 0.0
    %3814 = vmatprep.subr.mxu0 0.0
    %3815 = vmatpush1.msra.mxu0 0.0
    %3816 = vmatprep.subr.mxu0 0.0
    %3817 = vmatpush1.msra.mxu0 0.0
    %3818 = vmatprep.subr.mxu0 0.0
    %3819 = vmatpush1.msra.mxu0 0.0
    %3820 = vmatprep.subr.mxu0 0.0
    %3821 = vmatpush1.msra.mxu0 0.0
    %3822 = vmatprep.subr.mxu0 0.0
    %3823 = vmatpush1.msra.mxu0 0.0
    %3824 = vmatprep.subr.mxu0 0.0
    %3825 = vmatpush1.msra.mxu0 0.0
    %3826 = vmatprep.subr.mxu0 0.0
    %3827 = vmatpush1.msra.mxu0 0.0
    %3828 = vmatprep.subr.mxu0 0.0
    %3829 = vmatpush1.msra.mxu0 0.0
    %3830 = vmatprep.subr.mxu0 0.0
    %3831 = vmatpush1.msra.mxu0 0.0
    %3832 = vmatprep.subr.mxu0 0.0
    %3833 = vmatpush1.msra.mxu0 0.0
    %3834 = vmatprep.mubr.f32.mxu0 0.0
    %3835 = vmatmul.mubr.f32.gmra.mrb[0].mxu0 %v3765
    %v3836 = vpop.f32.mrb[0].mxu0
    %v3837 = vadd.f32 0.0, %v3836
    %v3838 = vpop.f32.mrb[0].mxu0
    %3839 = vmatprep.mubr.f32.mxu0 0.0
    %3840 = vmatmul.mubr.f32.gmra.mrb[0].mxu0 %v3768
    %v3841 = vpop.f32.mrb[0].mxu0
    %v3842 = vadd.f32 0.0, %v3841
    %v3843 = vpop.f32.mrb[0].mxu0
    %3844 = vdwg.mxu0
    %v3846 = vsel %vm1123, %v3655, 0
    %v3849 = vsel %vm1123, %v3660, 0
    %3851 = vmatprep.subr.mxu0 0.0
    %3852 = vmatpush1.msra.mxu0 %v3663
    %3853 = vmatprep.subr.mxu0 0.0
    %3854 = vmatpush1.msra.mxu0 %v3664
    %3855 = vmatprep.subr.mxu0 0.0
    %3856 = vmatpush1.msra.mxu0 %v3665
    %3857 = vmatprep.subr.mxu0 0.0
    %3858 = vmatpush1.msra.mxu0 %v3666
    %3859 = vmatprep.subr.mxu0 0.0
    %3860 = vmatpush1.msra.mxu0 %v3667
    %3861 = vmatprep.subr.mxu0 0.0
    %3862 = vmatpush1.msra.mxu0 %v3668
    %3863 = vmatprep.subr.mxu0 0.0
    %3864 = vmatpush1.msra.mxu0 %v3669
    %3865 = vmatprep.subr.mxu0 0.0
    %3866 = vmatpush1.msra.mxu0 %v3670
    %3867 = vmatprep.subr.mxu0 0.0
    %3868 = vmatpush1.msra.mxu0 0.0
    %3869 = vmatprep.subr.mxu0 0.0
    %3870 = vmatpush1.msra.mxu0 0.0
    %3871 = vmatprep.subr.mxu0 0.0
    %3872 = vmatpush1.msra.mxu0 0.0
    %3873 = vmatprep.subr.mxu0 0.0
    %3874 = vmatpush1.msra.mxu0 0.0
    %3875 = vmatprep.subr.mxu0 0.0
    %3876 = vmatpush1.msra.mxu0 0.0
    %3877 = vmatprep.subr.mxu0 0.0
    %3878 = vmatpush1.msra.mxu0 0.0
    %3879 = vmatprep.subr.mxu0 0.0
    %3880 = vmatpush1.msra.mxu0 0.0
    %3881 = vmatprep.subr.mxu0 0.0
    %3882 = vmatpush1.msra.mxu0 0.0
    %3883 = vmatprep.subr.mxu0 0.0
    %3884 = vmatpush1.msra.mxu0 0.0
    %3885 = vmatprep.subr.mxu0 0.0
    %3886 = vmatpush1.msra.mxu0 0.0
    %3887 = vmatprep.subr.mxu0 0.0
    %3888 = vmatpush1.msra.mxu0 0.0
    %3889 = vmatprep.subr.mxu0 0.0
    %3890 = vmatpush1.msra.mxu0 0.0
    %3891 = vmatprep.subr.mxu0 0.0
    %3892 = vmatpush1.msra.mxu0 0.0
    %3893 = vmatprep.subr.mxu0 0.0
    %3894 = vmatpush1.msra.mxu0 0.0
    %3895 = vmatprep.subr.mxu0 0.0
    %3896 = vmatpush1.msra.mxu0 0.0
    %3897 = vmatprep.subr.mxu0 0.0
    %3898 = vmatpush1.msra.mxu0 0.0
    %3899 = vmatprep.subr.mxu0 0.0
    %3900 = vmatpush1.msra.mxu0 0.0
    %3901 = vmatprep.subr.mxu0 0.0
    %3902 = vmatpush1.msra.mxu0 0.0
    %3903 = vmatprep.subr.mxu0 0.0
    %3904 = vmatpush1.msra.mxu0 0.0
    %3905 = vmatprep.subr.mxu0 0.0
    %3906 = vmatpush1.msra.mxu0 0.0
    %3907 = vmatprep.subr.mxu0 0.0
    %3908 = vmatpush1.msra.mxu0 0.0
    %3909 = vmatprep.subr.mxu0 0.0
    %3910 = vmatpush1.msra.mxu0 0.0
    %3911 = vmatprep.subr.mxu0 0.0
    %3912 = vmatpush1.msra.mxu0 0.0
    %3913 = vmatprep.subr.mxu0 0.0
    %3914 = vmatpush1.msra.mxu0 0.0
    %3915 = vmatprep.mubr.f32.mxu0 0.0
    %3916 = vmatmul.mubr.f32.gmra.mrb[0].mxu0 %v3846
    %v3917 = vpop.f32.mrb[0].mxu0
    %v3918 = vadd.f32 %v3837, %v3917
    %v3919 = vpop.f32.mrb[0].mxu0
    %3920 = vmatprep.mubr.f32.mxu0 0.0
    %3921 = vmatmul.mubr.f32.gmra.mrb[0].mxu0 %v3849
    %v3922 = vpop.f32.mrb[0].mxu0
    %v3923 = vadd.f32 %v3842, %v3922
    %v3924 = vpop.f32.mrb[0].mxu0
    %3925 = vdwg.mxu0
    %s3926 = scalar_lea.vmem %s19, 32
    %v3927 = vld [vmem:[%s3926] sm:$0xff]
    %v3928 = vld [vmem:[%s3926 + $0x8] sm:$0xff]
    %v3930 = vsel %vm857, %v3927, 0
    %v3933 = vsel %vm857, %v3928, 0
    %3935 = vmatprep.subr.mxu0 0.0
    %3936 = vmatpush1.msra.mxu0 %v3576
    %3937 = vmatprep.subr.mxu0 0.0
    %3938 = vmatpush1.msra.mxu0 %v3577
    %3939 = vmatprep.subr.mxu0 0.0
    %3940 = vmatpush1.msra.mxu0 %v3578
    %3941 = vmatprep.subr.mxu0 0.0
    %3942 = vmatpush1.msra.mxu0 %v3579
    %3943 = vmatprep.subr.mxu0 0.0
    %3944 = vmatpush1.msra.mxu0 0.0
    %3945 = vmatprep.subr.mxu0 0.0
    %3946 = vmatpush1.msra.mxu0 0.0
    %3947 = vmatprep.subr.mxu0 0.0
    %3948 = vmatpush1.msra.mxu0 0.0
    %3949 = vmatprep.subr.mxu0 0.0
    %3950 = vmatpush1.msra.mxu0 0.0
    %3951 = vmatprep.subr.mxu0 0.0
    %3952 = vmatpush1.msra.mxu0 0.0
    %3953 = vmatprep.subr.mxu0 0.0
    %3954 = vmatpush1.msra.mxu0 0.0
    %3955 = vmatprep.subr.mxu0 0.0
    %3956 = vmatpush1.msra.mxu0 0.0
    %3957 = vmatprep.subr.mxu0 0.0
    %3958 = vmatpush1.msra.mxu0 0.0
    %3959 = vmatprep.subr.mxu0 0.0
    %3960 = vmatpush1.msra.mxu0 0.0
    %3961 = vmatprep.subr.mxu0 0.0
    %3962 = vmatpush1.msra.mxu0 0.0
    %3963 = vmatprep.subr.mxu0 0.0
    %3964 = vmatpush1.msra.mxu0 0.0
    %3965 = vmatprep.subr.mxu0 0.0
    %3966 = vmatpush1.msra.mxu0 0.0
    %3967 = vmatprep.subr.mxu0 0.0
    %3968 = vmatpush1.msra.mxu0 0.0
    %3969 = vmatprep.subr.mxu0 0.0
    %3970 = vmatpush1.msra.mxu0 0.0
    %3971 = vmatprep.subr.mxu0 0.0
    %3972 = vmatpush1.msra.mxu0 0.0
    %3973 = vmatprep.subr.mxu0 0.0
    %3974 = vmatpush1.msra.mxu0 0.0
    %3975 = vmatprep.subr.mxu0 0.0
    %3976 = vmatpush1.msra.mxu0 0.0
    %3977 = vmatprep.subr.mxu0 0.0
    %3978 = vmatpush1.msra.mxu0 0.0
    %3979 = vmatprep.subr.mxu0 0.0
    %3980 = vmatpush1.msra.mxu0 0.0
    %3981 = vmatprep.subr.mxu0 0.0
    %3982 = vmatpush1.msra.mxu0 0.0
    %3983 = vmatprep.subr.mxu0 0.0
    %3984 = vmatpush1.msra.mxu0 0.0
    %3985 = vmatprep.subr.mxu0 0.0
    %3986 = vmatpush1.msra.mxu0 0.0
    %3987 = vmatprep.subr.mxu0 0.0
    %3988 = vmatpush1.msra.mxu0 0.0
    %3989 = vmatprep.subr.mxu0 0.0
    %3990 = vmatpush1.msra.mxu0 0.0
    %3991 = vmatprep.subr.mxu0 0.0
    %3992 = vmatpush1.msra.mxu0 0.0
    %3993 = vmatprep.subr.mxu0 0.0
    %3994 = vmatpush1.msra.mxu0 0.0
    %3995 = vmatprep.subr.mxu0 0.0
    %3996 = vmatpush1.msra.mxu0 0.0
    %3997 = vmatprep.subr.mxu0 0.0
    %3998 = vmatpush1.msra.mxu0 0.0
    %3999 = vmatprep.mubr.f32.mxu0 0.0
    %4000 = vmatmul.mubr.f32.gmra.mrb[0].mxu0 %v3930
    %v4001 = vpop.f32.mrb[0].mxu0
    %v4002 = vadd.f32 0.0, %v4001
    %v4003 = vpop.f32.mrb[0].mxu0
    %4004 = vmatprep.mubr.f32.mxu0 0.0
    %4005 = vmatmul.mubr.f32.gmra.mrb[0].mxu0 %v3933
    %v4006 = vpop.f32.mrb[0].mxu0
    %v4007 = vadd.f32 0.0, %v4006
    %v4008 = vpop.f32.mrb[0].mxu0
    %4009 = vdwg.mxu0
    %s4010 = scalar_lea.vmem %s20, 128
    %v4011 = vld [vmem:[%s4010] sm:$0xff]
    %v4012 = vld [vmem:[%s4010 + $0x8] sm:$0xff]
    %v4013 = vld [vmem:[%s4010 + $0x10] sm:$0xff]
    %v4014 = vld [vmem:[%s4010 + $0x18] sm:$0xff]
    %v4015 = vld [vmem:[%s4010 + $0x20] sm:$0xff]
    %v4016 = vld [vmem:[%s4010 + $0x28] sm:$0xff]
    %v4017 = vld [vmem:[%s4010 + $0x30] sm:$0xff]
    %v4018 = vld [vmem:[%s4010 + $0x38] sm:$0xff]
    %v4020 = vsel %vm1123, %v4002, 0
    %v4023 = vsel %vm1123, %v4007, 0
    %4025 = vmatprep.subr.mxu0 0.0
    %4026 = vmatpush1.msra.mxu0 %v4011
    %4027 = vmatprep.subr.mxu0 0.0
    %4028 = vmatpush1.msra.mxu0 %v4012
    %4029 = vmatprep.subr.mxu0 0.0
    %4030 = vmatpush1.msra.mxu0 %v4013
    %4031 = vmatprep.subr.mxu0 0.0
    %4032 = vmatpush1.msra.mxu0 %v4014
    %4033 = vmatprep.subr.mxu0 0.0
    %4034 = vmatpush1.msra.mxu0 %v4015
    %4035 = vmatprep.subr.mxu0 0.0
    %4036 = vmatpush1.msra.mxu0 %v4016
    %4037 = vmatprep.subr.mxu0 0.0
    %4038 = vmatpush1.msra.mxu0 %v4017
    %4039 = vmatprep.subr.mxu0 0.0
    %4040 = vmatpush1.msra.mxu0 %v4018
    %4041 = vmatprep.subr.mxu0 0.0
    %4042 = vmatpush1.msra.mxu0 0.0
    %4043 = vmatprep.subr.mxu0 0.0
    %4044 = vmatpush1.msra.mxu0 0.0
    %4045 = vmatprep.subr.mxu0 0.0
    %4046 = vmatpush1.msra.mxu0 0.0
    %4047 = vmatprep.subr.mxu0 0.0
    %4048 = vmatpush1.msra.mxu0 0.0
    %4049 = vmatprep.subr.mxu0 0.0
    %4050 = vmatpush1.msra.mxu0 0.0
    %4051 = vmatprep.subr.mxu0 0.0
    %4052 = vmatpush1.msra.mxu0 0.0
    %4053 = vmatprep.subr.mxu0 0.0
    %4054 = vmatpush1.msra.mxu0 0.0
    %4055 = vmatprep.subr.mxu0 0.0
    %4056 = vmatpush1.msra.mxu0 0.0
    %4057 = vmatprep.subr.mxu0 0.0
    %4058 = vmatpush1.msra.mxu0 0.0
    %4059 = vmatprep.subr.mxu0 0.0
    %4060 = vmatpush1.msra.mxu0 0.0
    %4061 = vmatprep.subr.mxu0 0.0
    %4062 = vmatpush1.msra.mxu0 0.0
    %4063 = vmatprep.subr.mxu0 0.0
    %4064 = vmatpush1.msra.mxu0 0.0
    %4065 = vmatprep.subr.mxu0 0.0
    %4066 = vmatpush1.msra.mxu0 0.0
    %4067 = vmatprep.subr.mxu0 0.0
    %4068 = vmatpush1.msra.mxu0 0.0
    %4069 = vmatprep.subr.mxu0 0.0
    %4070 = vmatpush1.msra.mxu0 0.0
    %4071 = vmatprep.subr.mxu0 0.0
    %4072 = vmatpush1.msra.mxu0 0.0
    %4073 = vmatprep.subr.mxu0 0.0
    %4074 = vmatpush1.msra.mxu0 0.0
    %4075 = vmatprep.subr.mxu0 0.0
    %4076 = vmatpush1.msra.mxu0 0.0
    %4077 = vmatprep.subr.mxu0 0.0
    %4078 = vmatpush1.msra.mxu0 0.0
    %4079 = vmatprep.subr.mxu0 0.0
    %4080 = vmatpush1.msra.mxu0 0.0
    %4081 = vmatprep.subr.mxu0 0.0
    %4082 = vmatpush1.msra.mxu0 0.0
    %4083 = vmatprep.subr.mxu0 0.0
    %4084 = vmatpush1.msra.mxu0 0.0
    %4085 = vmatprep.subr.mxu0 0.0
    %4086 = vmatpush1.msra.mxu0 0.0
    %4087 = vmatprep.subr.mxu0 0.0
    %4088 = vmatpush1.msra.mxu0 0.0
    %4089 = vmatprep.mubr.f32.mxu0 0.0
    %4090 = vmatmul.mubr.f32.gmra.mrb[0].mxu0 %v4020
    %v4091 = vpop.f32.mrb[0].mxu0
    %v4092 = vadd.f32 0.0, %v4091
    %v4093 = vpop.f32.mrb[0].mxu0
    %4094 = vmatprep.mubr.f32.mxu0 0.0
    %4095 = vmatmul.mubr.f32.gmra.mrb[0].mxu0 %v4023
    %v4096 = vpop.f32.mrb[0].mxu0
    %v4097 = vadd.f32 0.0, %v4096
    %v4098 = vpop.f32.mrb[0].mxu0
    %4099 = vdwg.mxu0
    %v4100 = vadd.f32 %v3918, %v4092
    %v4101 = vadd.f32 %v3923, %v4097
    %s4102 = scalar_lea.vmem %s19, 48
    %v4103 = vld [vmem:[%s4102] sm:$0xff]
    %v4104 = vld [vmem:[%s4102 + $0x8] sm:$0xff]
    %v4106 = vsel %vm857, %v4103, 0
    %v4109 = vsel %vm857, %v4104, 0
    %4111 = vmatprep.subr.mxu0 0.0
    %4112 = vmatpush1.msra.mxu0 %v3576
    %4113 = vmatprep.subr.mxu0 0.0
    %4114 = vmatpush1.msra.mxu0 %v3577
    %4115 = vmatprep.subr.mxu0 0.0
    %4116 = vmatpush1.msra.mxu0 %v3578
    %4117 = vmatprep.subr.mxu0 0.0
    %4118 = vmatpush1.msra.mxu0 %v3579
    %4119 = vmatprep.subr.mxu0 0.0
    %4120 = vmatpush1.msra.mxu0 0.0
    %4121 = vmatprep.subr.mxu0 0.0
    %4122 = vmatpush1.msra.mxu0 0.0
    %4123 = vmatprep.subr.mxu0 0.0
    %4124 = vmatpush1.msra.mxu0 0.0
    %4125 = vmatprep.subr.mxu0 0.0
    %4126 = vmatpush1.msra.mxu0 0.0
    %4127 = vmatprep.subr.mxu0 0.0
    %4128 = vmatpush1.msra.mxu0 0.0
    %4129 = vmatprep.subr.mxu0 0.0
    %4130 = vmatpush1.msra.mxu0 0.0
    %4131 = vmatprep.subr.mxu0 0.0
    %4132 = vmatpush1.msra.mxu0 0.0
    %4133 = vmatprep.subr.mxu0 0.0
    %4134 = vmatpush1.msra.mxu0 0.0
    %4135 = vmatprep.subr.mxu0 0.0
    %4136 = vmatpush1.msra.mxu0 0.0
    %4137 = vmatprep.subr.mxu0 0.0
    %4138 = vmatpush1.msra.mxu0 0.0
    %4139 = vmatprep.subr.mxu0 0.0
    %4140 = vmatpush1.msra.mxu0 0.0
    %4141 = vmatprep.subr.mxu0 0.0
    %4142 = vmatpush1.msra.mxu0 0.0
    %4143 = vmatprep.subr.mxu0 0.0
    %4144 = vmatpush1.msra.mxu0 0.0
    %4145 = vmatprep.subr.mxu0 0.0
    %4146 = vmatpush1.msra.mxu0 0.0
    %4147 = vmatprep.subr.mxu0 0.0
    %4148 = vmatpush1.msra.mxu0 0.0
    %4149 = vmatprep.subr.mxu0 0.0
    %4150 = vmatpush1.msra.mxu0 0.0
    %4151 = vmatprep.subr.mxu0 0.0
    %4152 = vmatpush1.msra.mxu0 0.0
    %4153 = vmatprep.subr.mxu0 0.0
    %4154 = vmatpush1.msra.mxu0 0.0
    %4155 = vmatprep.subr.mxu0 0.0
    %4156 = vmatpush1.msra.mxu0 0.0
    %4157 = vmatprep.subr.mxu0 0.0
    %4158 = vmatpush1.msra.mxu0 0.0
    %4159 = vmatprep.subr.mxu0 0.0
    %4160 = vmatpush1.msra.mxu0 0.0
    %4161 = vmatprep.subr.mxu0 0.0
    %4162 = vmatpush1.msra.mxu0 0.0
    %4163 = vmatprep.subr.mxu0 0.0
    %4164 = vmatpush1.msra.mxu0 0.0
    %4165 = vmatprep.subr.mxu0 0.0
    %4166 = vmatpush1.msra.mxu0 0.0
    %4167 = vmatprep.subr.mxu0 0.0
    %4168 = vmatpush1.msra.mxu0 0.0
    %4169 = vmatprep.subr.mxu0 0.0
    %4170 = vmatpush1.msra.mxu0 0.0
    %4171 = vmatprep.subr.mxu0 0.0
    %4172 = vmatpush1.msra.mxu0 0.0
    %4173 = vmatprep.subr.mxu0 0.0
    %4174 = vmatpush1.msra.mxu0 0.0
    %4175 = vmatprep.mubr.f32.mxu0 0.0
    %4176 = vmatmul.mubr.f32.gmra.mrb[0].mxu0 %v4106
    %v4177 = vpop.f32.mrb[0].mxu0
    %v4178 = vadd.f32 0.0, %v4177
    %v4179 = vpop.f32.mrb[0].mxu0
    %4180 = vmatprep.mubr.f32.mxu0 0.0
    %4181 = vmatmul.mubr.f32.gmra.mrb[0].mxu0 %v4109
    %v4182 = vpop.f32.mrb[0].mxu0
    %v4183 = vadd.f32 0.0, %v4182
    %v4184 = vpop.f32.mrb[0].mxu0
    %4185 = vdwg.mxu0
    %s4186 = scalar_lea.vmem %s20, 192
    %v4187 = vld [vmem:[%s4186] sm:$0xff]
    %v4188 = vld [vmem:[%s4186 + $0x8] sm:$0xff]
    %v4189 = vld [vmem:[%s4186 + $0x10] sm:$0xff]
    %v4190 = vld [vmem:[%s4186 + $0x18] sm:$0xff]
    %v4191 = vld [vmem:[%s4186 + $0x20] sm:$0xff]
    %v4192 = vld [vmem:[%s4186 + $0x28] sm:$0xff]
    %v4193 = vld [vmem:[%s4186 + $0x30] sm:$0xff]
    %v4194 = vld [vmem:[%s4186 + $0x38] sm:$0xff]
    %v4196 = vsel %vm1123, %v4178, 0
    %v4199 = vsel %vm1123, %v4183, 0
    %4201 = vmatprep.subr.mxu0 0.0
    %4202 = vmatpush1.msra.mxu0 %v4187
    %4203 = vmatprep.subr.mxu0 0.0
    %4204 = vmatpush1.msra.mxu0 %v4188
    %4205 = vmatprep.subr.mxu0 0.0
    %4206 = vmatpush1.msra.mxu0 %v4189
    %4207 = vmatprep.subr.mxu0 0.0
    %4208 = vmatpush1.msra.mxu0 %v4190
    %4209 = vmatprep.subr.mxu0 0.0
    %4210 = vmatpush1.msra.mxu0 %v4191
    %4211 = vmatprep.subr.mxu0 0.0
    %4212 = vmatpush1.msra.mxu0 %v4192
    %4213 = vmatprep.subr.mxu0 0.0
    %4214 = vmatpush1.msra.mxu0 %v4193
    %4215 = vmatprep.subr.mxu0 0.0
    %4216 = vmatpush1.msra.mxu0 %v4194
    %4217 = vmatprep.subr.mxu0 0.0
    %4218 = vmatpush1.msra.mxu0 0.0
    %4219 = vmatprep.subr.mxu0 0.0
    %4220 = vmatpush1.msra.mxu0 0.0
    %4221 = vmatprep.subr.mxu0 0.0
    %4222 = vmatpush1.msra.mxu0 0.0
    %4223 = vmatprep.subr.mxu0 0.0
    %4224 = vmatpush1.msra.mxu0 0.0
    %4225 = vmatprep.subr.mxu0 0.0
    %4226 = vmatpush1.msra.mxu0 0.0
    %4227 = vmatprep.subr.mxu0 0.0
    %4228 = vmatpush1.msra.mxu0 0.0
    %4229 = vmatprep.subr.mxu0 0.0
    %4230 = vmatpush1.msra.mxu0 0.0
    %4231 = vmatprep.subr.mxu0 0.0
    %4232 = vmatpush1.msra.mxu0 0.0
    %4233 = vmatprep.subr.mxu0 0.0
    %4234 = vmatpush1.msra.mxu0 0.0
    %4235 = vmatprep.subr.mxu0 0.0
    %4236 = vmatpush1.msra.mxu0 0.0
    %4237 = vmatprep.subr.mxu0 0.0
    %4238 = vmatpush1.msra.mxu0 0.0
    %4239 = vmatprep.subr.mxu0 0.0
    %4240 = vmatpush1.msra.mxu0 0.0
    %4241 = vmatprep.subr.mxu0 0.0
    %4242 = vmatpush1.msra.mxu0 0.0
    %4243 = vmatprep.subr.mxu0 0.0
    %4244 = vmatpush1.msra.mxu0 0.0
    %4245 = vmatprep.subr.mxu0 0.0
    %4246 = vmatpush1.msra.mxu0 0.0
    %4247 = vmatprep.subr.mxu0 0.0
    %4248 = vmatpush1.msra.mxu0 0.0
    %4249 = vmatprep.subr.mxu0 0.0
    %4250 = vmatpush1.msra.mxu0 0.0
    %4251 = vmatprep.subr.mxu0 0.0
    %4252 = vmatpush1.msra.mxu0 0.0
    %4253 = vmatprep.subr.mxu0 0.0
    %4254 = vmatpush1.msra.mxu0 0.0
    %4255 = vmatprep.subr.mxu0 0.0
    %4256 = vmatpush1.msra.mxu0 0.0
    %4257 = vmatprep.subr.mxu0 0.0
    %4258 = vmatpush1.msra.mxu0 0.0
    %4259 = vmatprep.subr.mxu0 0.0
    %4260 = vmatpush1.msra.mxu0 0.0
    %4261 = vmatprep.subr.mxu0 0.0
    %4262 = vmatpush1.msra.mxu0 0.0
    %4263 = vmatprep.subr.mxu0 0.0
    %4264 = vmatpush1.msra.mxu0 0.0
    %4265 = vmatprep.mubr.f32.mxu0 0.0
    %4266 = vmatmul.mubr.f32.gmra.mrb[0].mxu0 %v4196
    %v4267 = vpop.f32.mrb[0].mxu0
    %v4268 = vadd.f32 0.0, %v4267
    %v4269 = vpop.f32.mrb[0].mxu0
    %4270 = vmatprep.mubr.f32.mxu0 0.0
    %4271 = vmatmul.mubr.f32.gmra.mrb[0].mxu0 %v4199
    %v4272 = vpop.f32.mrb[0].mxu0
    %v4273 = vadd.f32 0.0, %v4272
    %v4274 = vpop.f32.mrb[0].mxu0
    %4275 = vdwg.mxu0
    %v4276 = vadd.f32 %v4100, %v4268
    %v4277 = vadd.f32 %v4101, %v4273
    %v4278 = vld [vmem:[%s21] sm:$0x1]
    %v4280 = vlaneseq
    %v4281 = vshrl.u32 %v4280, 7
    %v4282 = vsub.s32 0, %v4281
    %v4283 = vrot.slane %v4278, %v4282
    %v4285 = vadd.f32 %v4276, %v4283
    %v4286 = vadd.f32 %v4277, %v4283
    %vm4287 = vcmp.ge.f32.partialorder %v4285, 0.0
    %vm4288 = vcmp.ge.f32.partialorder %v4286, 0.0
    %v4289 = vmul.f32 %v4285, 0.2
    %v4290 = vmul.f32 %v4286, 0.2
    %v4291 = vsel %vm4287, %v4285, %v4289
    %v4292 = vsel %vm4288, %v4286, %v4290
    %v4293 = vld [vmem:[%s22] sm:$0xf]
    %v4295 = vsel %vm133, %v4293, 0
    %4297 = vmatprep.subr.mxu0 0.0
    %4298 = vmatpush1.msra.mxu0 %v4291
    %4299 = vmatprep.subr.mxu0 0.0
    %4300 = vmatpush1.msra.mxu0 %v4292
    %4301 = vmatprep.subr.mxu0 0.0
    %4302 = vmatpush1.msra.mxu0 0.0
    %4303 = vmatprep.subr.mxu0 0.0
    %4304 = vmatpush1.msra.mxu0 0.0
    %4305 = vmatprep.subr.mxu0 0.0
    %4306 = vmatpush1.msra.mxu0 0.0
    %4307 = vmatprep.subr.mxu0 0.0
    %4308 = vmatpush1.msra.mxu0 0.0
    %4309 = vmatprep.subr.mxu0 0.0
    %4310 = vmatpush1.msra.mxu0 0.0
    %4311 = vmatprep.subr.mxu0 0.0
    %4312 = vmatpush1.msra.mxu0 0.0
    %4313 = vmatprep.subr.mxu0 0.0
    %4314 = vmatpush1.msra.mxu0 0.0
    %4315 = vmatprep.subr.mxu0 0.0
    %4316 = vmatpush1.msra.mxu0 0.0
    %4317 = vmatprep.subr.mxu0 0.0
    %4318 = vmatpush1.msra.mxu0 0.0
    %4319 = vmatprep.subr.mxu0 0.0
    %4320 = vmatpush1.msra.mxu0 0.0
    %4321 = vmatprep.subr.mxu0 0.0
    %4322 = vmatpush1.msra.mxu0 0.0
    %4323 = vmatprep.subr.mxu0 0.0
    %4324 = vmatpush1.msra.mxu0 0.0
    %4325 = vmatprep.subr.mxu0 0.0
    %4326 = vmatpush1.msra.mxu0 0.0
    %4327 = vmatprep.subr.mxu0 0.0
    %4328 = vmatpush1.msra.mxu0 0.0
    %4329 = vmatprep.subr.mxu0 0.0
    %4330 = vmatpush1.msra.mxu0 0.0
    %4331 = vmatprep.subr.mxu0 0.0
    %4332 = vmatpush1.msra.mxu0 0.0
    %4333 = vmatprep.subr.mxu0 0.0
    %4334 = vmatpush1.msra.mxu0 0.0
    %4335 = vmatprep.subr.mxu0 0.0
    %4336 = vmatpush1.msra.mxu0 0.0
    %4337 = vmatprep.subr.mxu0 0.0
    %4338 = vmatpush1.msra.mxu0 0.0
    %4339 = vmatprep.subr.mxu0 0.0
    %4340 = vmatpush1.msra.mxu0 0.0
    %4341 = vmatprep.subr.mxu0 0.0
    %4342 = vmatpush1.msra.mxu0 0.0
    %4343 = vmatprep.subr.mxu0 0.0
    %4344 = vmatpush1.msra.mxu0 0.0
    %4345 = vmatprep.subr.mxu0 0.0
    %4346 = vmatpush1.msra.mxu0 0.0
    %4347 = vmatprep.subr.mxu0 0.0
    %4348 = vmatpush1.msra.mxu0 0.0
    %4349 = vmatprep.subr.mxu0 0.0
    %4350 = vmatpush1.msra.mxu0 0.0
    %4351 = vmatprep.subr.mxu0 0.0
    %4352 = vmatpush1.msra.mxu0 0.0
    %4353 = vmatprep.subr.mxu0 0.0
    %4354 = vmatpush1.msra.mxu0 0.0
    %4355 = vmatprep.subr.mxu0 0.0
    %4356 = vmatpush1.msra.mxu0 0.0
    %4357 = vmatprep.subr.mxu0 0.0
    %4358 = vmatpush1.msra.mxu0 0.0
    %4359 = vmatprep.subr.mxu0 0.0
    %4360 = vmatpush1.msra.mxu0 0.0
    %4361 = vmatprep.mubr.f32.mxu0 0.0
    %4362 = vmatmul.mubr.f32.gmra.mrb[0].mxu0 %v4295
    %v4363 = vpop.f32.mrb[0].mxu0
    %v4364 = vadd.f32 0.0, %v4363
    %v4365 = vpop.f32.mrb[0].mxu0
    %4366 = vdwg.mxu0
    %v4367 = vld [vmem:[%s23] sm:$0xff]
    %v4368 = vld [vmem:[%s23 + $0x8] sm:$0xff]
    %v4369 = vld [vmem:[%s23 + $0x10] sm:$0xff]
    %v4370 = vld [vmem:[%s23 + $0x18] sm:$0xff]
    %v4371 = vld [vmem:[%s23 + $0x20] sm:$0xff]
    %v4372 = vld [vmem:[%s23 + $0x28] sm:$0xff]
    %v4373 = vld [vmem:[%s23 + $0x30] sm:$0xff]
    %v4374 = vld [vmem:[%s23 + $0x38] sm:$0xff]
    %s4375 = scalar_lea.vmem %s22, 4
    %v4376 = vld [vmem:[%s4375] sm:$0xf]
    %v4378 = vsel %vm133, %v4376, 0
    %4380 = vmatprep.subr.mxu0 0.0
    %4381 = vmatpush1.msra.mxu0 %v4291
    %4382 = vmatprep.subr.mxu0 0.0
    %4383 = vmatpush1.msra.mxu0 %v4292
    %4384 = vmatprep.subr.mxu0 0.0
    %4385 = vmatpush1.msra.mxu0 0.0
    %4386 = vmatprep.subr.mxu0 0.0
    %4387 = vmatpush1.msra.mxu0 0.0
    %4388 = vmatprep.subr.mxu0 0.0
    %4389 = vmatpush1.msra.mxu0 0.0
    %4390 = vmatprep.subr.mxu0 0.0
    %4391 = vmatpush1.msra.mxu0 0.0
    %4392 = vmatprep.subr.mxu0 0.0
    %4393 = vmatpush1.msra.mxu0 0.0
    %4394 = vmatprep.subr.mxu0 0.0
    %4395 = vmatpush1.msra.mxu0 0.0
    %4396 = vmatprep.subr.mxu0 0.0
    %4397 = vmatpush1.msra.mxu0 0.0
    %4398 = vmatprep.subr.mxu0 0.0
    %4399 = vmatpush1.msra.mxu0 0.0
    %4400 = vmatprep.subr.mxu0 0.0
    %4401 = vmatpush1.msra.mxu0 0.0
    %4402 = vmatprep.subr.mxu0 0.0
    %4403 = vmatpush1.msra.mxu0 0.0
    %4404 = vmatprep.subr.mxu0 0.0
    %4405 = vmatpush1.msra.mxu0 0.0
    %4406 = vmatprep.subr.mxu0 0.0
    %4407 = vmatpush1.msra.mxu0 0.0
    %4408 = vmatprep.subr.mxu0 0.0
    %4409 = vmatpush1.msra.mxu0 0.0
    %4410 = vmatprep.subr.mxu0 0.0
    %4411 = vmatpush1.msra.mxu0 0.0
    %4412 = vmatprep.subr.mxu0 0.0
    %4413 = vmatpush1.msra.mxu0 0.0
    %4414 = vmatprep.subr.mxu0 0.0
    %4415 = vmatpush1.msra.mxu0 0.0
    %4416 = vmatprep.subr.mxu0 0.0
    %4417 = vmatpush1.msra.mxu0 0.0
    %4418 = vmatprep.subr.mxu0 0.0
    %4419 = vmatpush1.msra.mxu0 0.0
    %4420 = vmatprep.subr.mxu0 0.0
    %4421 = vmatpush1.msra.mxu0 0.0
    %4422 = vmatprep.subr.mxu0 0.0
    %4423 = vmatpush1.msra.mxu0 0.0
    %4424 = vmatprep.subr.mxu0 0.0
    %4425 = vmatpush1.msra.mxu0 0.0
    %4426 = vmatprep.subr.mxu0 0.0
    %4427 = vmatpush1.msra.mxu0 0.0
    %4428 = vmatprep.subr.mxu0 0.0
    %4429 = vmatpush1.msra.mxu0 0.0
    %4430 = vmatprep.subr.mxu0 0.0
    %4431 = vmatpush1.msra.mxu0 0.0
    %4432 = vmatprep.subr.mxu0 0.0
    %4433 = vmatpush1.msra.mxu0 0.0
    %4434 = vmatprep.subr.mxu0 0.0
    %4435 = vmatpush1.msra.mxu0 0.0
    %4436 = vmatprep.subr.mxu0 0.0
    %4437 = vmatpush1.msra.mxu0 0.0
    %4438 = vmatprep.subr.mxu0 0.0
    %4439 = vmatpush1.msra.mxu0 0.0
    %4440 = vmatprep.subr.mxu0 0.0
    %4441 = vmatpush1.msra.mxu0 0.0
    %4442 = vmatprep.subr.mxu0 0.0
    %4443 = vmatpush1.msra.mxu0 0.0
    %4444 = vmatprep.mubr.f32.mxu0 0.0
    %4445 = vmatmul.mubr.f32.gmra.mrb[0].mxu0 %v4378
    %v4446 = vpop.f32.mrb[0].mxu0
    %v4447 = vadd.f32 0.0, %v4446
    %v4448 = vpop.f32.mrb[0].mxu0
    %4449 = vdwg.mxu0
    %s4450 = scalar_lea.vmem %s23, 64
    %v4451 = vld [vmem:[%s4450] sm:$0xff]
    %v4452 = vld [vmem:[%s4450 + $0x8] sm:$0xff]
    %v4453 = vld [vmem:[%s4450 + $0x10] sm:$0xff]
    %v4454 = vld [vmem:[%s4450 + $0x18] sm:$0xff]
    %v4455 = vld [vmem:[%s4450 + $0x20] sm:$0xff]
    %v4456 = vld [vmem:[%s4450 + $0x28] sm:$0xff]
    %v4457 = vld [vmem:[%s4450 + $0x30] sm:$0xff]
    %v4458 = vld [vmem:[%s4450 + $0x38] sm:$0xff]
    %v4460 = vsel %vm1123, %v4447, 0
    %4462 = vmatprep.subr.mxu0 0.0
    %4463 = vmatpush1.msra.mxu0 %v4451
    %4464 = vmatprep.subr.mxu0 0.0
    %4465 = vmatpush1.msra.mxu0 %v4452
    %4466 = vmatprep.subr.mxu0 0.0
    %4467 = vmatpush1.msra.mxu0 %v4453
    %4468 = vmatprep.subr.mxu0 0.0
    %4469 = vmatpush1.msra.mxu0 %v4454
    %4470 = vmatprep.subr.mxu0 0.0
    %4471 = vmatpush1.msra.mxu0 %v4455
    %4472 = vmatprep.subr.mxu0 0.0
    %4473 = vmatpush1.msra.mxu0 %v4456
    %4474 = vmatprep.subr.mxu0 0.0
    %4475 = vmatpush1.msra.mxu0 %v4457
    %4476 = vmatprep.subr.mxu0 0.0
    %4477 = vmatpush1.msra.mxu0 %v4458
    %4478 = vmatprep.subr.mxu0 0.0
    %4479 = vmatpush1.msra.mxu0 0.0
    %4480 = vmatprep.subr.mxu0 0.0
    %4481 = vmatpush1.msra.mxu0 0.0
    %4482 = vmatprep.subr.mxu0 0.0
    %4483 = vmatpush1.msra.mxu0 0.0
    %4484 = vmatprep.subr.mxu0 0.0
    %4485 = vmatpush1.msra.mxu0 0.0
    %4486 = vmatprep.subr.mxu0 0.0
    %4487 = vmatpush1.msra.mxu0 0.0
    %4488 = vmatprep.subr.mxu0 0.0
    %4489 = vmatpush1.msra.mxu0 0.0
    %4490 = vmatprep.subr.mxu0 0.0
    %4491 = vmatpush1.msra.mxu0 0.0
    %4492 = vmatprep.subr.mxu0 0.0
    %4493 = vmatpush1.msra.mxu0 0.0
    %4494 = vmatprep.subr.mxu0 0.0
    %4495 = vmatpush1.msra.mxu0 0.0
    %4496 = vmatprep.subr.mxu0 0.0
    %4497 = vmatpush1.msra.mxu0 0.0
    %4498 = vmatprep.subr.mxu0 0.0
    %4499 = vmatpush1.msra.mxu0 0.0
    %4500 = vmatprep.subr.mxu0 0.0
    %4501 = vmatpush1.msra.mxu0 0.0
    %4502 = vmatprep.subr.mxu0 0.0
    %4503 = vmatpush1.msra.mxu0 0.0
    %4504 = vmatprep.subr.mxu0 0.0
    %4505 = vmatpush1.msra.mxu0 0.0
    %4506 = vmatprep.subr.mxu0 0.0
    %4507 = vmatpush1.msra.mxu0 0.0
    %4508 = vmatprep.subr.mxu0 0.0
    %4509 = vmatpush1.msra.mxu0 0.0
    %4510 = vmatprep.subr.mxu0 0.0
    %4511 = vmatpush1.msra.mxu0 0.0
    %4512 = vmatprep.subr.mxu0 0.0
    %4513 = vmatpush1.msra.mxu0 0.0
    %4514 = vmatprep.subr.mxu0 0.0
    %4515 = vmatpush1.msra.mxu0 0.0
    %4516 = vmatprep.subr.mxu0 0.0
    %4517 = vmatpush1.msra.mxu0 0.0
    %4518 = vmatprep.subr.mxu0 0.0
    %4519 = vmatpush1.msra.mxu0 0.0
    %4520 = vmatprep.subr.mxu0 0.0
    %4521 = vmatpush1.msra.mxu0 0.0
    %4522 = vmatprep.subr.mxu0 0.0
    %4523 = vmatpush1.msra.mxu0 0.0
    %4524 = vmatprep.subr.mxu0 0.0
    %4525 = vmatpush1.msra.mxu0 0.0
    %4526 = vmatprep.mubr.f32.mxu0 0.0
    %4527 = vmatmul.mubr.f32.gmra.mrb[0].mxu0 %v4460
    %v4528 = vpop.f32.mrb[0].mxu0
    %v4529 = vadd.f32 0.0, %v4528
    %v4530 = vpop.f32.mrb[0].mxu0
    %4531 = vdwg.mxu0
    %v4533 = vsel %vm1123, %v4364, 0
    %4535 = vmatprep.subr.mxu0 0.0
    %4536 = vmatpush1.msra.mxu0 %v4367
    %4537 = vmatprep.subr.mxu0 0.0
    %4538 = vmatpush1.msra.mxu0 %v4368
    %4539 = vmatprep.subr.mxu0 0.0
    %4540 = vmatpush1.msra.mxu0 %v4369
    %4541 = vmatprep.subr.mxu0 0.0
    %4542 = vmatpush1.msra.mxu0 %v4370
    %4543 = vmatprep.subr.mxu0 0.0
    %4544 = vmatpush1.msra.mxu0 %v4371
    %4545 = vmatprep.subr.mxu0 0.0
    %4546 = vmatpush1.msra.mxu0 %v4372
    %4547 = vmatprep.subr.mxu0 0.0
    %4548 = vmatpush1.msra.mxu0 %v4373
    %4549 = vmatprep.subr.mxu0 0.0
    %4550 = vmatpush1.msra.mxu0 %v4374
    %4551 = vmatprep.subr.mxu0 0.0
    %4552 = vmatpush1.msra.mxu0 0.0
    %4553 = vmatprep.subr.mxu0 0.0
    %4554 = vmatpush1.msra.mxu0 0.0
    %4555 = vmatprep.subr.mxu0 0.0
    %4556 = vmatpush1.msra.mxu0 0.0
    %4557 = vmatprep.subr.mxu0 0.0
    %4558 = vmatpush1.msra.mxu0 0.0
    %4559 = vmatprep.subr.mxu0 0.0
    %4560 = vmatpush1.msra.mxu0 0.0
    %4561 = vmatprep.subr.mxu0 0.0
    %4562 = vmatpush1.msra.mxu0 0.0
    %4563 = vmatprep.subr.mxu0 0.0
    %4564 = vmatpush1.msra.mxu0 0.0
    %4565 = vmatprep.subr.mxu0 0.0
    %4566 = vmatpush1.msra.mxu0 0.0
    %4567 = vmatprep.subr.mxu0 0.0
    %4568 = vmatpush1.msra.mxu0 0.0
    %4569 = vmatprep.subr.mxu0 0.0
    %4570 = vmatpush1.msra.mxu0 0.0
    %4571 = vmatprep.subr.mxu0 0.0
    %4572 = vmatpush1.msra.mxu0 0.0
    %4573 = vmatprep.subr.mxu0 0.0
    %4574 = vmatpush1.msra.mxu0 0.0
    %4575 = vmatprep.subr.mxu0 0.0
    %4576 = vmatpush1.msra.mxu0 0.0
    %4577 = vmatprep.subr.mxu0 0.0
    %4578 = vmatpush1.msra.mxu0 0.0
    %4579 = vmatprep.subr.mxu0 0.0
    %4580 = vmatpush1.msra.mxu0 0.0
    %4581 = vmatprep.subr.mxu0 0.0
    %4582 = vmatpush1.msra.mxu0 0.0
    %4583 = vmatprep.subr.mxu0 0.0
    %4584 = vmatpush1.msra.mxu0 0.0
    %4585 = vmatprep.subr.mxu0 0.0
    %4586 = vmatpush1.msra.mxu0 0.0
    %4587 = vmatprep.subr.mxu0 0.0
    %4588 = vmatpush1.msra.mxu0 0.0
    %4589 = vmatprep.subr.mxu0 0.0
    %4590 = vmatpush1.msra.mxu0 0.0
    %4591 = vmatprep.subr.mxu0 0.0
    %4592 = vmatpush1.msra.mxu0 0.0
    %4593 = vmatprep.subr.mxu0 0.0
    %4594 = vmatpush1.msra.mxu0 0.0
    %4595 = vmatprep.subr.mxu0 0.0
    %4596 = vmatpush1.msra.mxu0 0.0
    %4597 = vmatprep.subr.mxu0 0.0
    %4598 = vmatpush1.msra.mxu0 0.0
    %4599 = vmatprep.mubr.f32.mxu0 0.0
    %4600 = vmatmul.mubr.f32.gmra.mrb[0].mxu0 %v4533
    %v4601 = vpop.f32.mrb[0].mxu0
    %v4602 = vadd.f32 %v4529, %v4601
    %v4603 = vpop.f32.mrb[0].mxu0
    %4604 = vdwg.mxu0
    %s4605 = scalar_lea.vmem %s22, 8
    %v4606 = vld [vmem:[%s4605] sm:$0xf]
    %v4608 = vsel %vm133, %v4606, 0
    %4610 = vmatprep.subr.mxu0 0.0
    %4611 = vmatpush1.msra.mxu0 %v4291
    %4612 = vmatprep.subr.mxu0 0.0
    %4613 = vmatpush1.msra.mxu0 %v4292
    %4614 = vmatprep.subr.mxu0 0.0
    %4615 = vmatpush1.msra.mxu0 0.0
    %4616 = vmatprep.subr.mxu0 0.0
    %4617 = vmatpush1.msra.mxu0 0.0
    %4618 = vmatprep.subr.mxu0 0.0
    %4619 = vmatpush1.msra.mxu0 0.0
    %4620 = vmatprep.subr.mxu0 0.0
    %4621 = vmatpush1.msra.mxu0 0.0
    %4622 = vmatprep.subr.mxu0 0.0
    %4623 = vmatpush1.msra.mxu0 0.0
    %4624 = vmatprep.subr.mxu0 0.0
    %4625 = vmatpush1.msra.mxu0 0.0
    %4626 = vmatprep.subr.mxu0 0.0
    %4627 = vmatpush1.msra.mxu0 0.0
    %4628 = vmatprep.subr.mxu0 0.0
    %4629 = vmatpush1.msra.mxu0 0.0
    %4630 = vmatprep.subr.mxu0 0.0
    %4631 = vmatpush1.msra.mxu0 0.0
    %4632 = vmatprep.subr.mxu0 0.0
    %4633 = vmatpush1.msra.mxu0 0.0
    %4634 = vmatprep.subr.mxu0 0.0
    %4635 = vmatpush1.msra.mxu0 0.0
    %4636 = vmatprep.subr.mxu0 0.0
    %4637 = vmatpush1.msra.mxu0 0.0
    %4638 = vmatprep.subr.mxu0 0.0
    %4639 = vmatpush1.msra.mxu0 0.0
    %4640 = vmatprep.subr.mxu0 0.0
    %4641 = vmatpush1.msra.mxu0 0.0
    %4642 = vmatprep.subr.mxu0 0.0
    %4643 = vmatpush1.msra.mxu0 0.0
    %4644 = vmatprep.subr.mxu0 0.0
    %4645 = vmatpush1.msra.mxu0 0.0
    %4646 = vmatprep.subr.mxu0 0.0
    %4647 = vmatpush1.msra.mxu0 0.0
    %4648 = vmatprep.subr.mxu0 0.0
    %4649 = vmatpush1.msra.mxu0 0.0
    %4650 = vmatprep.subr.mxu0 0.0
    %4651 = vmatpush1.msra.mxu0 0.0
    %4652 = vmatprep.subr.mxu0 0.0
    %4653 = vmatpush1.msra.mxu0 0.0
    %4654 = vmatprep.subr.mxu0 0.0
    %4655 = vmatpush1.msra.mxu0 0.0
    %4656 = vmatprep.subr.mxu0 0.0
    %4657 = vmatpush1.msra.mxu0 0.0
    %4658 = vmatprep.subr.mxu0 0.0
    %4659 = vmatpush1.msra.mxu0 0.0
    %4660 = vmatprep.subr.mxu0 0.0
    %4661 = vmatpush1.msra.mxu0 0.0
    %4662 = vmatprep.subr.mxu0 0.0
    %4663 = vmatpush1.msra.mxu0 0.0
    %4664 = vmatprep.subr.mxu0 0.0
    %4665 = vmatpush1.msra.mxu0 0.0
    %4666 = vmatprep.subr.mxu0 0.0
    %4667 = vmatpush1.msra.mxu0 0.0
    %4668 = vmatprep.subr.mxu0 0.0
    %4669 = vmatpush1.msra.mxu0 0.0
    %4670 = vmatprep.subr.mxu0 0.0
    %4671 = vmatpush1.msra.mxu0 0.0
    %4672 = vmatprep.subr.mxu0 0.0
    %4673 = vmatpush1.msra.mxu0 0.0
    %4674 = vmatprep.mubr.f32.mxu0 0.0
    %4675 = vmatmul.mubr.f32.gmra.mrb[0].mxu0 %v4608
    %v4676 = vpop.f32.mrb[0].mxu0
    %v4677 = vadd.f32 0.0, %v4676
    %v4678 = vpop.f32.mrb[0].mxu0
    %4679 = vdwg.mxu0
    %s4680 = scalar_lea.vmem %s23, 128
    %v4681 = vld [vmem:[%s4680] sm:$0xff]
    %v4682 = vld [vmem:[%s4680 + $0x8] sm:$0xff]
    %v4683 = vld [vmem:[%s4680 + $0x10] sm:$0xff]
    %v4684 = vld [vmem:[%s4680 + $0x18] sm:$0xff]
    %v4685 = vld [vmem:[%s4680 + $0x20] sm:$0xff]
    %v4686 = vld [vmem:[%s4680 + $0x28] sm:$0xff]
    %v4687 = vld [vmem:[%s4680 + $0x30] sm:$0xff]
    %v4688 = vld [vmem:[%s4680 + $0x38] sm:$0xff]
    %v4690 = vsel %vm1123, %v4677, 0
    %4692 = vmatprep.subr.mxu0 0.0
    %4693 = vmatpush1.msra.mxu0 %v4681
    %4694 = vmatprep.subr.mxu0 0.0
    %4695 = vmatpush1.msra.mxu0 %v4682
    %4696 = vmatprep.subr.mxu0 0.0
    %4697 = vmatpush1.msra.mxu0 %v4683
    %4698 = vmatprep.subr.mxu0 0.0
    %4699 = vmatpush1.msra.mxu0 %v4684
    %4700 = vmatprep.subr.mxu0 0.0
    %4701 = vmatpush1.msra.mxu0 %v4685
    %4702 = vmatprep.subr.mxu0 0.0
    %4703 = vmatpush1.msra.mxu0 %v4686
    %4704 = vmatprep.subr.mxu0 0.0
    %4705 = vmatpush1.msra.mxu0 %v4687
    %4706 = vmatprep.subr.mxu0 0.0
    %4707 = vmatpush1.msra.mxu0 %v4688
    %4708 = vmatprep.subr.mxu0 0.0
    %4709 = vmatpush1.msra.mxu0 0.0
    %4710 = vmatprep.subr.mxu0 0.0
    %4711 = vmatpush1.msra.mxu0 0.0
    %4712 = vmatprep.subr.mxu0 0.0
    %4713 = vmatpush1.msra.mxu0 0.0
    %4714 = vmatprep.subr.mxu0 0.0
    %4715 = vmatpush1.msra.mxu0 0.0
    %4716 = vmatprep.subr.mxu0 0.0
    %4717 = vmatpush1.msra.mxu0 0.0
    %4718 = vmatprep.subr.mxu0 0.0
    %4719 = vmatpush1.msra.mxu0 0.0
    %4720 = vmatprep.subr.mxu0 0.0
    %4721 = vmatpush1.msra.mxu0 0.0
    %4722 = vmatprep.subr.mxu0 0.0
    %4723 = vmatpush1.msra.mxu0 0.0
    %4724 = vmatprep.subr.mxu0 0.0
    %4725 = vmatpush1.msra.mxu0 0.0
    %4726 = vmatprep.subr.mxu0 0.0
    %4727 = vmatpush1.msra.mxu0 0.0
    %4728 = vmatprep.subr.mxu0 0.0
    %4729 = vmatpush1.msra.mxu0 0.0
    %4730 = vmatprep.subr.mxu0 0.0
    %4731 = vmatpush1.msra.mxu0 0.0
    %4732 = vmatprep.subr.mxu0 0.0
    %4733 = vmatpush1.msra.mxu0 0.0
    %4734 = vmatprep.subr.mxu0 0.0
    %4735 = vmatpush1.msra.mxu0 0.0
    %4736 = vmatprep.subr.mxu0 0.0
    %4737 = vmatpush1.msra.mxu0 0.0
    %4738 = vmatprep.subr.mxu0 0.0
    %4739 = vmatpush1.msra.mxu0 0.0
    %4740 = vmatprep.subr.mxu0 0.0
    %4741 = vmatpush1.msra.mxu0 0.0
    %4742 = vmatprep.subr.mxu0 0.0
    %4743 = vmatpush1.msra.mxu0 0.0
    %4744 = vmatprep.subr.mxu0 0.0
    %4745 = vmatpush1.msra.mxu0 0.0
    %4746 = vmatprep.subr.mxu0 0.0
    %4747 = vmatpush1.msra.mxu0 0.0
    %4748 = vmatprep.subr.mxu0 0.0
    %4749 = vmatpush1.msra.mxu0 0.0
    %4750 = vmatprep.subr.mxu0 0.0
    %4751 = vmatpush1.msra.mxu0 0.0
    %4752 = vmatprep.subr.mxu0 0.0
    %4753 = vmatpush1.msra.mxu0 0.0
    %4754 = vmatprep.subr.mxu0 0.0
    %4755 = vmatpush1.msra.mxu0 0.0
    %4756 = vmatprep.mubr.f32.mxu0 0.0
    %4757 = vmatmul.mubr.f32.gmra.mrb[0].mxu0 %v4690
    %v4758 = vpop.f32.mrb[0].mxu0
    %v4759 = vadd.f32 0.0, %v4758
    %v4760 = vpop.f32.mrb[0].mxu0
    %4761 = vdwg.mxu0
    %v4762 = vadd.f32 %v4602, %v4759
    %s4763 = scalar_lea.vmem %s22, 12
    %v4764 = vld [vmem:[%s4763] sm:$0xf]
    %v4766 = vsel %vm133, %v4764, 0
    %4768 = vmatprep.subr.mxu0 0.0
    %4769 = vmatpush1.msra.mxu0 %v4291
    %4770 = vmatprep.subr.mxu0 0.0
    %4771 = vmatpush1.msra.mxu0 %v4292
    %4772 = vmatprep.subr.mxu0 0.0
    %4773 = vmatpush1.msra.mxu0 0.0
    %4774 = vmatprep.subr.mxu0 0.0
    %4775 = vmatpush1.msra.mxu0 0.0
    %4776 = vmatprep.subr.mxu0 0.0
    %4777 = vmatpush1.msra.mxu0 0.0
    %4778 = vmatprep.subr.mxu0 0.0
    %4779 = vmatpush1.msra.mxu0 0.0
    %4780 = vmatprep.subr.mxu0 0.0
    %4781 = vmatpush1.msra.mxu0 0.0
    %4782 = vmatprep.subr.mxu0 0.0
    %4783 = vmatpush1.msra.mxu0 0.0
    %4784 = vmatprep.subr.mxu0 0.0
    %4785 = vmatpush1.msra.mxu0 0.0
    %4786 = vmatprep.subr.mxu0 0.0
    %4787 = vmatpush1.msra.mxu0 0.0
    %4788 = vmatprep.subr.mxu0 0.0
    %4789 = vmatpush1.msra.mxu0 0.0
    %4790 = vmatprep.subr.mxu0 0.0
    %4791 = vmatpush1.msra.mxu0 0.0
    %4792 = vmatprep.subr.mxu0 0.0
    %4793 = vmatpush1.msra.mxu0 0.0
    %4794 = vmatprep.subr.mxu0 0.0
    %4795 = vmatpush1.msra.mxu0 0.0
    %4796 = vmatprep.subr.mxu0 0.0
    %4797 = vmatpush1.msra.mxu0 0.0
    %4798 = vmatprep.subr.mxu0 0.0
    %4799 = vmatpush1.msra.mxu0 0.0
    %4800 = vmatprep.subr.mxu0 0.0
    %4801 = vmatpush1.msra.mxu0 0.0
    %4802 = vmatprep.subr.mxu0 0.0
    %4803 = vmatpush1.msra.mxu0 0.0
    %4804 = vmatprep.subr.mxu0 0.0
    %4805 = vmatpush1.msra.mxu0 0.0
    %4806 = vmatprep.subr.mxu0 0.0
    %4807 = vmatpush1.msra.mxu0 0.0
    %4808 = vmatprep.subr.mxu0 0.0
    %4809 = vmatpush1.msra.mxu0 0.0
    %4810 = vmatprep.subr.mxu0 0.0
    %4811 = vmatpush1.msra.mxu0 0.0
    %4812 = vmatprep.subr.mxu0 0.0
    %4813 = vmatpush1.msra.mxu0 0.0
    %4814 = vmatprep.subr.mxu0 0.0
    %4815 = vmatpush1.msra.mxu0 0.0
    %4816 = vmatprep.subr.mxu0 0.0
    %4817 = vmatpush1.msra.mxu0 0.0
    %4818 = vmatprep.subr.mxu0 0.0
    %4819 = vmatpush1.msra.mxu0 0.0
    %4820 = vmatprep.subr.mxu0 0.0
    %4821 = vmatpush1.msra.mxu0 0.0
    %4822 = vmatprep.subr.mxu0 0.0
    %4823 = vmatpush1.msra.mxu0 0.0
    %4824 = vmatprep.subr.mxu0 0.0
    %4825 = vmatpush1.msra.mxu0 0.0
    %4826 = vmatprep.subr.mxu0 0.0
    %4827 = vmatpush1.msra.mxu0 0.0
    %4828 = vmatprep.subr.mxu0 0.0
    %4829 = vmatpush1.msra.mxu0 0.0
    %4830 = vmatprep.subr.mxu0 0.0
    %4831 = vmatpush1.msra.mxu0 0.0
    %4832 = vmatprep.mubr.f32.mxu0 0.0
    %4833 = vmatmul.mubr.f32.gmra.mrb[0].mxu0 %v4766
    %v4834 = vpop.f32.mrb[0].mxu0
    %v4835 = vadd.f32 0.0, %v4834
    %v4836 = vpop.f32.mrb[0].mxu0
    %4837 = vdwg.mxu0
    %s4838 = scalar_lea.vmem %s23, 192
    %v4839 = vld [vmem:[%s4838] sm:$0xff]
    %v4840 = vld [vmem:[%s4838 + $0x8] sm:$0xff]
    %v4841 = vld [vmem:[%s4838 + $0x10] sm:$0xff]
    %v4842 = vld [vmem:[%s4838 + $0x18] sm:$0xff]
    %v4843 = vld [vmem:[%s4838 + $0x20] sm:$0xff]
    %v4844 = vld [vmem:[%s4838 + $0x28] sm:$0xff]
    %v4845 = vld [vmem:[%s4838 + $0x30] sm:$0xff]
    %v4846 = vld [vmem:[%s4838 + $0x38] sm:$0xff]
    %v4848 = vsel %vm1123, %v4835, 0
    %4850 = vmatprep.subr.mxu0 0.0
    %4851 = vmatpush1.msra.mxu0 %v4839
    %4852 = vmatprep.subr.mxu0 0.0
    %4853 = vmatpush1.msra.mxu0 %v4840
    %4854 = vmatprep.subr.mxu0 0.0
    %4855 = vmatpush1.msra.mxu0 %v4841
    %4856 = vmatprep.subr.mxu0 0.0
    %4857 = vmatpush1.msra.mxu0 %v4842
    %4858 = vmatprep.subr.mxu0 0.0
    %4859 = vmatpush1.msra.mxu0 %v4843
    %4860 = vmatprep.subr.mxu0 0.0
    %4861 = vmatpush1.msra.mxu0 %v4844
    %4862 = vmatprep.subr.mxu0 0.0
    %4863 = vmatpush1.msra.mxu0 %v4845
    %4864 = vmatprep.subr.mxu0 0.0
    %4865 = vmatpush1.msra.mxu0 %v4846
    %4866 = vmatprep.subr.mxu0 0.0
    %4867 = vmatpush1.msra.mxu0 0.0
    %4868 = vmatprep.subr.mxu0 0.0
    %4869 = vmatpush1.msra.mxu0 0.0
    %4870 = vmatprep.subr.mxu0 0.0
    %4871 = vmatpush1.msra.mxu0 0.0
    %4872 = vmatprep.subr.mxu0 0.0
    %4873 = vmatpush1.msra.mxu0 0.0
    %4874 = vmatprep.subr.mxu0 0.0
    %4875 = vmatpush1.msra.mxu0 0.0
    %4876 = vmatprep.subr.mxu0 0.0
    %4877 = vmatpush1.msra.mxu0 0.0
    %4878 = vmatprep.subr.mxu0 0.0
    %4879 = vmatpush1.msra.mxu0 0.0
    %4880 = vmatprep.subr.mxu0 0.0
    %4881 = vmatpush1.msra.mxu0 0.0
    %4882 = vmatprep.subr.mxu0 0.0
    %4883 = vmatpush1.msra.mxu0 0.0
    %4884 = vmatprep.subr.mxu0 0.0
    %4885 = vmatpush1.msra.mxu0 0.0
    %4886 = vmatprep.subr.mxu0 0.0
    %4887 = vmatpush1.msra.mxu0 0.0
    %4888 = vmatprep.subr.mxu0 0.0
    %4889 = vmatpush1.msra.mxu0 0.0
    %4890 = vmatprep.subr.mxu0 0.0
    %4891 = vmatpush1.msra.mxu0 0.0
    %4892 = vmatprep.subr.mxu0 0.0
    %4893 = vmatpush1.msra.mxu0 0.0
    %4894 = vmatprep.subr.mxu0 0.0
    %4895 = vmatpush1.msra.mxu0 0.0
    %4896 = vmatprep.subr.mxu0 0.0
    %4897 = vmatpush1.msra.mxu0 0.0
    %4898 = vmatprep.subr.mxu0 0.0
    %4899 = vmatpush1.msra.mxu0 0.0
    %4900 = vmatprep.subr.mxu0 0.0
    %4901 = vmatpush1.msra.mxu0 0.0
    %4902 = vmatprep.subr.mxu0 0.0
    %4903 = vmatpush1.msra.mxu0 0.0
    %4904 = vmatprep.subr.mxu0 0.0
    %4905 = vmatpush1.msra.mxu0 0.0
    %4906 = vmatprep.subr.mxu0 0.0
    %4907 = vmatpush1.msra.mxu0 0.0
    %4908 = vmatprep.subr.mxu0 0.0
    %4909 = vmatpush1.msra.mxu0 0.0
    %4910 = vmatprep.subr.mxu0 0.0
    %4911 = vmatpush1.msra.mxu0 0.0
    %4912 = vmatprep.subr.mxu0 0.0
    %4913 = vmatpush1.msra.mxu0 0.0
    %4914 = vmatprep.mubr.f32.mxu0 0.0
    %4915 = vmatmul.mubr.f32.gmra.mrb[0].mxu0 %v4848
    %v4916 = vpop.f32.mrb[0].mxu0
    %v4917 = vadd.f32 0.0, %v4916
    %v4918 = vpop.f32.mrb[0].mxu0
    %4919 = vdwg.mxu0
    %v4920 = vadd.f32 %v4762, %v4917
    %v4921 = vld [vmem:[#allocation2] sm:$0x1]
    %v4923 = vlaneseq
    %v4924 = vshrl.u32 %v4923, 7
    %v4925 = vsub.s32 0, %v4924
    %v4926 = vrot.slane %v4921, %v4925
    %v4928 = vadd.f32 %v4920, %v4926
    %v4929 = vsub.f32 0.0, %v4928
    %v4930 = vmul.f32 %v4929, 1.442695
    %v4931 = vpow.pop %v4930
    %v4932 = vadd.f32 %v4931, 1.0
    %v4933 = vrcp.pop %v4932
    %vm4934 = vcmask 3072
    %4935 = vst.msk [vmem:[%s25] sm:$0xf] %vm4934, %v4933
    // Predicated region
    $region114: #{dcgan_forward.1} parent=1 // pred_check
      _
    $region115: #{dcgan_forward.1} parent=1 // pred_check_branch
      %4937 = sbr.rel (0) target = $region117
    $region116: #{dcgan_forward.1} parent=1 // pred_region
      _
    $region117: #{dcgan_forward.1} parent=1 // pred_fallthru
      _
    // Predicated region
    $region118: #{dcgan_forward.1} parent=1 // pred_check
      _
    $region119: #{dcgan_forward.1} parent=1 // pred_check_branch
      %4939 = sbr.rel (0) target = $region121
    $region120: #{dcgan_forward.1} parent=1 // pred_region
      _
    $region121: #{dcgan_forward.1} parent=1 // pred_fallthru
      _
    %4940 = vsyncpa [#allocation4], 1
    %4941 = vsyncpa [#allocation6], 1

</llo_original>
